<compile_context>
chip_gen: v7x
topology: tpu7x:2x2x1
jax: 0.10.0
libtpu: 0.0.40
codegen_flags: <defaults>
</compile_context>

<pallas_src>
import jax
import jax.numpy as jnp
from jax import lax
from jax.experimental import pallas as pl
from jax.experimental.pallas import tpu as pltpu

MXU_DTYPE = jnp.float32   # set jnp.bfloat16 on v6e/v7x for 2x MXU throughput on feed-forward matmuls
GX_DTYPE = jnp.float32    # set jnp.bfloat16 to halve the largest scratch (helps v7x's 64 MiB VMEM)


def fused_kernel(x_ref, wc_ref, bc_ref, wih_ref, bg_ref,
                 whhf_ref, whhb_ref, wa_ref, ba_ref,
                 out_ref, gxf_ref, gxb_ref, hsf_ref, hsb_ref):
    # x_ref:   (T, Bt, F)  time-major batch tile
    # wc_ref:  (3, F, C)   conv taps (k=0 uses x[t-1], k=1 x[t], k=2 x[t+1]);  bc_ref: (1, C)
    # wih_ref: (C, 8H)     [Wih_fwd | Wih_bwd];  bg_ref: (1, 8H) = b_ih + b_hh for both dirs
    # whhf_ref/whhb_ref: (H, 4H) recurrent weights;  wa_ref: (2H, 1);  ba_ref: (1, 1)
    # out_ref: (Bt, 2H)    attention context for this batch tile
    # gxf/gxb: (T, Bt, 4H) hoisted input projections;  hsf/hsb: (T, Bt, H) hidden states
    T, Bt, F = x_ref.shape
    H = whhf_ref.shape[0]

    # ---- Conv1d(kernel=3, padding=1) + ReLU: three per-tap matmuls (no im2col concat) -------
    x = x_ref[...].astype(MXU_DTYPE)                                  # (T, Bt, F)
    zrow = jnp.zeros((1, Bt, F), MXU_DTYPE)
    x_prev = jnp.concatenate([zrow, x[:T - 1]], axis=0)               # x[t-1]  (zero at t=0)
    x_next = jnp.concatenate([x[1:], zrow], axis=0)                   # x[t+1]  (zero at t=T-1)

    def tap(xk, k):
        return jnp.dot(xk.reshape(T * Bt, F), wc_ref[k],
                       preferred_element_type=jnp.float32)

    conv = tap(x_prev, 0) + tap(x, 1) + tap(x_next, 2) + bc_ref[...]  # (T*Bt, C) f32
    conv = jnp.maximum(conv, 0.0)

    # ---- hoisted LSTM input projection (both directions, gate biases folded in) -------------
    gx = jnp.dot(conv.astype(MXU_DTYPE), wih_ref[...],
                 preferred_element_type=jnp.float32) + bg_ref[...]    # (T*Bt, 8H) f32
    gxf_ref[...] = gx[:, :4 * H].reshape(T, Bt, 4 * H).astype(gxf_ref.dtype)
    gxb_ref[...] = gx[:, 4 * H:].reshape(T, Bt, 4 * H).astype(gxb_ref.dtype)

    # ---- fused bidirectional LSTM recurrence over the whole batch tile ----------------------
    whh_f = whhf_ref[...]                                             # recurrent math stays f32
    whh_b = whhb_ref[...]

    def step(t, carry):
        h_f, c_f, h_b, c_b = carry
        g_f = gxf_ref[t] + jnp.dot(h_f, whh_f, preferred_element_type=jnp.float32)       # (Bt,4H)
        g_b = gxb_ref[T - 1 - t] + jnp.dot(h_b, whh_b, preferred_element_type=jnp.float32)
        # PyTorch gate order: i, f, g, o  (slices are lane-aligned at production H=128).
        i_f = jax.nn.sigmoid(g_f[:, 0:H]);          i_b = jax.nn.sigmoid(g_b[:, 0:H])
        f_f = jax.nn.sigmoid(g_f[:, H:2 * H]);      f_b = jax.nn.sigmoid(g_b[:, H:2 * H])
        gg_f = jnp.tanh(g_f[:, 2 * H:3 * H]);       gg_b = jnp.tanh(g_b[:, 2 * H:3 * H])
        o_f = jax.nn.sigmoid(g_f[:, 3 * H:4 * H]);  o_b = jax.nn.sigmoid(g_b[:, 3 * H:4 * H])
        c_f = f_f * c_f + i_f * gg_f
        c_b = f_b * c_b + i_b * gg_b
        h_f = o_f * jnp.tanh(c_f)
        h_b = o_b * jnp.tanh(c_b)
        hsf_ref[t] = h_f                                              # fwd output at time t
        hsb_ref[T - 1 - t] = h_b                                      # bwd output at time T-1-t
        return (h_f, c_f, h_b, c_b)

    zero = jnp.zeros((Bt, H), jnp.float32)
    lax.fori_loop(0, T, step, (zero, zero, zero, zero), unroll=min(8, T))

    # ---- attention pooling over time (scores on MXU, softmax per batch column) --------------
    hsf = hsf_ref[...]                                                # (T, Bt, H) f32
    hsb = hsb_ref[...]
    sf = jnp.dot(hsf.reshape(T * Bt, H).astype(MXU_DTYPE), wa_ref[0:H],
                 preferred_element_type=jnp.float32)
    sb = jnp.dot(hsb.reshape(T * Bt, H).astype(MXU_DTYPE), wa_ref[H:2 * H],
                 preferred_element_type=jnp.float32)
    scores = (sf + sb + ba_ref[...]).reshape(T, Bt, 1)                # (T, Bt, 1)
    m = jnp.max(scores, axis=0, keepdims=True)
    e = jnp.exp(scores - m)
    w = e * pl.reciprocal(jnp.sum(e, axis=0, keepdims=True), approx=True)
    # context written as two static lane-half stores (no (T,2H) concat copy in the kernel)
    out_ref[:, 0:H] = jnp.sum(hsf * w, axis=0).astype(out_ref.dtype)
    out_ref[:, H:2 * H] = jnp.sum(hsb * w, axis=0).astype(out_ref.dtype)


def _round_up(n, m):
    return ((n + m - 1) // m) * m


def _vmem_bytes(bt, T, F, C, H, gx_bytes, w_bytes):
    x_blk = 2 * bt * T * F * 4                                        # input block, double-buffered
    out_blk = 2 * bt * 2 * H * 4                                      # output block, double-buffered
    weights = ((3 * F * C + C * 8 * H + 2 * H * 4 * H + 2 * H) * w_bytes
               + (C + 8 * H + 1) * 4)                                 # single-buffered weights/biases
    scratch = T * bt * 8 * H * gx_bytes + T * bt * 2 * H * 4          # gx + hidden-state scratch
    return x_blk + out_blk + weights + scratch


def _choose_b_tile(B, T, F, C, H, budget_bytes=48 << 20):
    gx_bytes = jnp.dtype(GX_DTYPE).itemsize
    w_bytes = jnp.dtype(MXU_DTYPE).itemsize
    bt = 64
    while bt > 8 and _vmem_bytes(bt, T, F, C, H, gx_bytes, w_bytes) > budget_bytes:
        bt //= 2
    bt = min(bt, _round_up(max(B, 1), 8))             # don't tile past the (padded) batch
    if bt >= 16 and (B + bt - 1) // bt < 2 and B > 8:
        bt //= 2                                      # keep >= 2 programs for v7x's 2 TensorCores
    return max(bt, 8)


def fused_forward(params, x):
    # x: (B, T, F) -> attention context (B, 2H); the tiny (2H -> 2) FC runs in XLA so the
    # Pallas output stays lane-dense (avoids a 2-wide masked store).
    B, T, F = x.shape
    C = params["conv_w"].shape[2]
    H = params["whh_fwd"].shape[0]

    Bt = _choose_b_tile(B, T, F, C, H)
    B_pad = _round_up(B, Bt)
    grid = (B_pad // Bt,)

    # time-major layout: every per-timestep slab inside the kernel is a contiguous leading-axis tile
    x_tm = jnp.transpose(x, (1, 0, 2))                                # (T, B, F)
    if B_pad != B:
        x_tm = jnp.pad(x_tm, ((0, 0), (0, B_pad - B), (0, 0)))

    # pre-cast feed-forward matmul weights once (no per-grid-step in-kernel weight casts)
    wc = params["conv_w"].astype(MXU_DTYPE)
    wih = params["wih_cat"].astype(MXU_DTYPE)
    wa = params["attn_w"].astype(MXU_DTYPE)

    gx_bytes = jnp.dtype(GX_DTYPE).itemsize
    w_bytes = jnp.dtype(MXU_DTYPE).itemsize
    need = _vmem_bytes(Bt, T, F, C, H, gx_bytes, w_bytes)
    vmem_limit = int(min(64 << 20, max(32 << 20, need + (8 << 20))))

    def _wspec(shape):
        # grid-invariant weights/biases: single-buffered, constant index map
        return pl.BlockSpec(shape, lambda b, _n=len(shape): (0,) * _n,
                            pipeline_mode=pl.Buffered(1))

    # TODO(synk): for very long production T, additionally tile the time axis (extra grid axis
    # marked "arbitrary" with h/c carried in scratch) so per-program scratch stays in budget.
    out = pl.pallas_call(
        fused_kernel,
        out_shape=jax.ShapeDtypeStruct((B_pad, 2 * H), jnp.float32),
        grid=grid,
        in_specs=[
            pl.BlockSpec((T, Bt, F), lambda b: (0, b, 0)),
            _wspec((3, F, C)),
            _wspec((1, C)),
            _wspec((C, 8 * H)),
            _wspec((1, 8 * H)),
            _wspec((H, 4 * H)),
            _wspec((H, 4 * H)),
            _wspec((2 * H, 1)),
            _wspec((1, 1)),
        ],
        out_specs=pl.BlockSpec((Bt, 2 * H), lambda b: (b, 0)),
        scratch_shapes=[
            pltpu.VMEM((T, Bt, 4 * H), GX_DTYPE),      # fwd input projections
            pltpu.VMEM((T, Bt, 4 * H), GX_DTYPE),      # bwd input projections (read at T-1-t)
            pltpu.VMEM((T, Bt, H), jnp.float32),       # fwd hidden states
            pltpu.VMEM((T, Bt, H), jnp.float32),       # bwd hidden states (time-aligned)
        ],
        compiler_params=pltpu.CompilerParams(
            dimension_semantics=("parallel",),
            vmem_limit_bytes=vmem_limit,
        ),
    )(x_tm, wc, params["conv_b"], wih, params["b_gates"],
      params["whh_fwd"], params["whh_bwd"], wa, params["attn_b"])
    return out[:B]                                                    # (B, 2H)


def model_forward(params, x):
    ctx = fused_forward(params, x)                                    # (B, 2H)
    return ctx @ params["fc_w"] + params["fc_b"]                      # (B, 2)


# ----------------------------------- parameters --------------------------------------
def init_params(key, input_size, hidden_size, conv_channels=64):
    F, C, H = input_size, conv_channels, hidden_size
    ks = jax.random.split(key, 14)
    s = 0.1
    # Conv1d(F, C, kernel_size=3): torch weight (C, F, 3) -> tap-major (3, F, C)
    w_conv_pt = s * jax.random.normal(ks[0], (C, F, 3), jnp.float32)
    conv_w = jnp.transpose(w_conv_pt, (2, 1, 0))
    conv_b = s * jax.random.normal(ks[1], (1, C), jnp.float32)
    # Bidirectional LSTM(C -> H): per-direction torch weights (4H, C), (4H, H), biases (4H,)
    wih, whh, bg = {}, {}, {}
    for d, k0 in (("fwd", 2), ("bwd", 6)):
        w_ih = s * jax.random.normal(ks[k0 + 0], (4 * H, C), jnp.float32)
        w_hh = s * jax.random.normal(ks[k0 + 1], (4 * H, H), jnp.float32)
        b_ih = s * jax.random.normal(ks[k0 + 2], (4 * H,), jnp.float32)
        b_hh = s * jax.random.normal(ks[k0 + 3], (4 * H,), jnp.float32)
        wih[d] = w_ih.T                       # (C, 4H)
        whh[d] = w_hh.T                       # (H, 4H)
        bg[d] = b_ih + b_hh                   # (4H,)
    return {
        "conv_w": conv_w, "conv_b": conv_b,
        "wih_cat": jnp.concatenate([wih["fwd"], wih["bwd"]], axis=1),     # (C, 8H)
        "b_gates": jnp.concatenate([bg["fwd"], bg["bwd"]])[None, :],      # (1, 8H)
        "whh_fwd": whh["fwd"], "whh_bwd": whh["bwd"],
        # Attention: Linear(2H, 1);  FC: Linear(2H, 2)
        "attn_w": jnp.transpose(s * jax.random.normal(ks[10], (1, 2 * H), jnp.float32)),  # (2H, 1)
        "attn_b": s * jax.random.normal(ks[11], (1, 1), jnp.float32),
        "fc_w": jnp.transpose(s * jax.random.normal(ks[12], (2, 2 * H), jnp.float32)),    # (2H, 2)
        "fc_b": s * jax.random.normal(ks[13], (2,), jnp.float32),
    }


if __name__ == "__main__":
    B, T, F, H = 2, 8, 4, 32
    key = jax.random.PRNGKey(0)
    kx, kp = jax.random.split(key)
    x = jax.random.normal(kx, (B, T, F), jnp.float32)
    params = init_params(kp, F, H)

    fwd = jax.jit(model_forward)
    out = fwd(params, x)
    jax.block_until_ready(out)
    assert out.shape == (B, 2) and out.dtype == jnp.float32
    assert bool(jnp.all(jnp.isfinite(out)))
    print("KERNEL_OK")
</pallas_src>

<mosaic_0001>
module attributes {stable_mosaic.version = 11 : i64} {
  func.func @fused_kernel(%arg0: i32, %arg1: memref<8x8x4xf32, #tpu.memory_space<vmem>>, %arg2: memref<3x4x64xf32, #tpu.memory_space<vmem>>, %arg3: memref<1x64xf32, #tpu.memory_space<vmem>>, %arg4: memref<64x256xf32, #tpu.memory_space<vmem>>, %arg5: memref<1x256xf32, #tpu.memory_space<vmem>>, %arg6: memref<32x128xf32, #tpu.memory_space<vmem>>, %arg7: memref<32x128xf32, #tpu.memory_space<vmem>>, %arg8: memref<64x1xf32, #tpu.memory_space<vmem>>, %arg9: memref<1x1xf32, #tpu.memory_space<vmem>>, %arg10: memref<8x64xf32, #tpu.memory_space<vmem>>, %arg11: memref<8x8x128xf32, #tpu.memory_space<vmem>>, %arg12: memref<8x8x128xf32, #tpu.memory_space<vmem>>, %arg13: memref<8x8x32xf32, #tpu.memory_space<vmem>>, %arg14: memref<8x8x32xf32, #tpu.memory_space<vmem>>) attributes {dimension_semantics = [#tpu.dimension_semantics<parallel>], iteration_bounds = array<i64: 1>, scalar_prefetch = 0 : i64, scratch_operands = 4 : i64, tpu.core_type = #tpu.core_type<tc>, window_params = [{transform_indices = @transform_0, window_bounds = array<i64: 8, 8, 4>}, {pipeline_mode = #tpu.pipeline_mode<synchronous>, transform_indices = @transform_1, window_bounds = array<i64: 3, 4, 64>}, {pipeline_mode = #tpu.pipeline_mode<synchronous>, transform_indices = @transform_2, window_bounds = array<i64: 1, 64>}, {pipeline_mode = #tpu.pipeline_mode<synchronous>, transform_indices = @transform_3, window_bounds = array<i64: 64, 256>}, {pipeline_mode = #tpu.pipeline_mode<synchronous>, transform_indices = @transform_4, window_bounds = array<i64: 1, 256>}, {pipeline_mode = #tpu.pipeline_mode<synchronous>, transform_indices = @transform_5, window_bounds = array<i64: 32, 128>}, {pipeline_mode = #tpu.pipeline_mode<synchronous>, transform_indices = @transform_6, window_bounds = array<i64: 32, 128>}, {pipeline_mode = #tpu.pipeline_mode<synchronous>, transform_indices = @transform_7, window_bounds = array<i64: 64, 1>}, {pipeline_mode = #tpu.pipeline_mode<synchronous>, transform_indices = @transform_8, window_bounds = array<i64: 1, 1>}, {transform_indices = @transform_9, window_bounds = array<i64: 8, 64>}]} {
    %c0 = arith.constant 0 : index
    %c0_0 = arith.constant 0 : index
    %c0_1 = arith.constant 0 : index
    %0 = vector.load %arg1[%c0, %c0_0, %c0_1] : memref<8x8x4xf32, #tpu.memory_space<vmem>>, vector<8x8x4xf32>
    %cst = arith.constant 0.000000e+00 : f32
    %1 = vector.broadcast %cst : f32 to vector<1x8x4xf32>
    %2 = vector.extract_strided_slice %0 {offsets = [0, 0, 0], sizes = [7, 8, 4], strides = [1, 1, 1]} : vector<8x8x4xf32> to vector<7x8x4xf32>
    %3 = tpu.concatenate %1, %2 in 0 : vector<1x8x4xf32>, vector<7x8x4xf32> -> vector<8x8x4xf32>
    %4 = vector.extract_strided_slice %0 {offsets = [1, 0, 0], sizes = [7, 8, 4], strides = [1, 1, 1]} : vector<8x8x4xf32> to vector<7x8x4xf32>
    %5 = tpu.concatenate %4, %1 in 0 : vector<7x8x4xf32>, vector<1x8x4xf32> -> vector<8x8x4xf32>
    %6 = vector.shape_cast %3 : vector<8x8x4xf32> to vector<64x4xf32>
    %c0_2 = arith.constant 0 : index
    %c0_3 = arith.constant 0 : index
    %c0_4 = arith.constant 0 : index
    %7 = vector.load %arg2[%c0_2, %c0_3, %c0_4] : memref<3x4x64xf32, #tpu.memory_space<vmem>>, vector<1x4x64xf32>
    %8 = vector.shape_cast %7 : vector<1x4x64xf32> to vector<4x64xf32>
    %cst_5 = arith.constant dense<0.000000e+00> : vector<64x64xf32>
    %9 = tpu.matmul %6, %8, %cst_5 {dimension_numbers = #tpu.dot_dimension_numbers<[1], [0], [0], [1], [0, 0, 1, 1], [], []>} : vector<64x4xf32>, vector<4x64xf32>, vector<64x64xf32> -> vector<64x64xf32>
    %10 = vector.shape_cast %0 : vector<8x8x4xf32> to vector<64x4xf32>
    %c1 = arith.constant 1 : index
    %c0_6 = arith.constant 0 : index
    %c0_7 = arith.constant 0 : index
    %11 = vector.load %arg2[%c1, %c0_6, %c0_7] : memref<3x4x64xf32, #tpu.memory_space<vmem>>, vector<1x4x64xf32>
    %12 = vector.shape_cast %11 : vector<1x4x64xf32> to vector<4x64xf32>
    %cst_8 = arith.constant dense<0.000000e+00> : vector<64x64xf32>
    %13 = tpu.matmul %10, %12, %cst_8 {dimension_numbers = #tpu.dot_dimension_numbers<[1], [0], [0], [1], [0, 0, 1, 1], [], []>} : vector<64x4xf32>, vector<4x64xf32>, vector<64x64xf32> -> vector<64x64xf32>
    %14 = arith.addf %9, %13 : vector<64x64xf32>
    %15 = vector.shape_cast %5 : vector<8x8x4xf32> to vector<64x4xf32>
    %c2 = arith.constant 2 : index
    %c0_9 = arith.constant 0 : index
    %c0_10 = arith.constant 0 : index
    %16 = vector.load %arg2[%c2, %c0_9, %c0_10] : memref<3x4x64xf32, #tpu.memory_space<vmem>>, vector<1x4x64xf32>
    %17 = vector.shape_cast %16 : vector<1x4x64xf32> to vector<4x64xf32>
    %cst_11 = arith.constant dense<0.000000e+00> : vector<64x64xf32>
    %18 = tpu.matmul %15, %17, %cst_11 {dimension_numbers = #tpu.dot_dimension_numbers<[1], [0], [0], [1], [0, 0, 1, 1], [], []>} : vector<64x4xf32>, vector<4x64xf32>, vector<64x64xf32> -> vector<64x64xf32>
    %19 = arith.addf %14, %18 : vector<64x64xf32>
    %c0_12 = arith.constant 0 : index
    %c0_13 = arith.constant 0 : index
    %20 = vector.load %arg3[%c0_12, %c0_13] : memref<1x64xf32, #tpu.memory_space<vmem>>, vector<1x64xf32>
    %21 = vector.broadcast %20 : vector<1x64xf32> to vector<64x64xf32>
    %22 = arith.addf %19, %21 : vector<64x64xf32>
    %cst_14 = arith.constant 0.000000e+00 : f32
    %23 = vector.broadcast %cst_14 : f32 to vector<64x64xf32>
    %24 = arith.maximumf %22, %23 : vector<64x64xf32>
    %c0_15 = arith.constant 0 : index
    %c0_16 = arith.constant 0 : index
    %25 = vector.load %arg4[%c0_15, %c0_16] : memref<64x256xf32, #tpu.memory_space<vmem>>, vector<64x256xf32>
    %cst_17 = arith.constant dense<0.000000e+00> : vector<64x256xf32>
    %26 = tpu.matmul %24, %25, %cst_17 {dimension_numbers = #tpu.dot_dimension_numbers<[1], [0], [0], [1], [0, 0, 1, 1], [], []>} : vector<64x64xf32>, vector<64x256xf32>, vector<64x256xf32> -> vector<64x256xf32>
    %c0_18 = arith.constant 0 : index
    %c0_19 = arith.constant 0 : index
    %27 = vector.load %arg5[%c0_18, %c0_19] : memref<1x256xf32, #tpu.memory_space<vmem>>, vector<1x256xf32>
    %28 = vector.broadcast %27 : vector<1x256xf32> to vector<64x256xf32>
    %29 = arith.addf %26, %28 : vector<64x256xf32>
    %30 = vector.extract_strided_slice %29 {offsets = [0, 0], sizes = [64, 128], strides = [1, 1]} : vector<64x256xf32> to vector<64x128xf32>
    %31 = vector.shape_cast %30 : vector<64x128xf32> to vector<8x8x128xf32>
    %c0_20 = arith.constant 0 : index
    %c0_21 = arith.constant 0 : index
    %c0_22 = arith.constant 0 : index
    %32 = vector.load %arg11[%c0_20, %c0_21, %c0_22] : memref<8x8x128xf32, #tpu.memory_space<vmem>>, vector<8x8x128xf32>
    tpu.vector_store %arg11[%c0_20, %c0_21, %c0_22], %31 {strides = array<i32>} : memref<8x8x128xf32, #tpu.memory_space<vmem>>, vector<8x8x128xf32>,
    %33 = vector.extract_strided_slice %29 {offsets = [0, 128], sizes = [64, 128], strides = [1, 1]} : vector<64x256xf32> to vector<64x128xf32>
    %34 = vector.shape_cast %33 : vector<64x128xf32> to vector<8x8x128xf32>
    %c0_23 = arith.constant 0 : index
    %c0_24 = arith.constant 0 : index
    %c0_25 = arith.constant 0 : index
    %35 = vector.load %arg12[%c0_23, %c0_24, %c0_25] : memref<8x8x128xf32, #tpu.memory_space<vmem>>, vector<8x8x128xf32>
    tpu.vector_store %arg12[%c0_23, %c0_24, %c0_25], %34 {strides = array<i32>} : memref<8x8x128xf32, #tpu.memory_space<vmem>>, vector<8x8x128xf32>,
    %c0_26 = arith.constant 0 : index
    %c0_27 = arith.constant 0 : index
    %36 = vector.load %arg6[%c0_26, %c0_27] : memref<32x128xf32, #tpu.memory_space<vmem>>, vector<32x128xf32>
    %c0_28 = arith.constant 0 : index
    %c0_29 = arith.constant 0 : index
    %37 = vector.load %arg7[%c0_28, %c0_29] : memref<32x128xf32, #tpu.memory_space<vmem>>, vector<32x128xf32>
    %cst_30 = arith.constant 0.000000e+00 : f32
    %38 = vector.broadcast %cst_30 : f32 to vector<8x32xf32>
    %c0_i32 = arith.constant 0 : i32
    %39 = arith.index_cast %c0_i32 : i32 to index
    %c0_31 = arith.constant 0 : index
    %c0_32 = arith.constant 0 : index
    %40 = vector.load %arg11[%39, %c0_31, %c0_32] : memref<8x8x128xf32, #tpu.memory_space<vmem>>, vector<1x8x128xf32>
    %41 = vector.shape_cast %40 : vector<1x8x128xf32> to vector<8x128xf32>
    %cst_33 = arith.constant dense<0.000000e+00> : vector<8x128xf32>
    %42 = tpu.matmul %38, %36, %cst_33 {dimension_numbers = #tpu.dot_dimension_numbers<[1], [0], [0], [1], [0, 0, 1, 1], [], []>} : vector<8x32xf32>, vector<32x128xf32>, vector<8x128xf32> -> vector<8x128xf32>
    %43 = arith.addf %41, %42 : vector<8x128xf32>
    %c7_i32 = arith.constant 7 : i32
    %44 = arith.subi %c7_i32, %c0_i32 : i32
    %45 = arith.index_cast %44 : i32 to index
    %c0_34 = arith.constant 0 : index
    %c0_35 = arith.constant 0 : index
    %46 = vector.load %arg12[%45, %c0_34, %c0_35] : memref<8x8x128xf32, #tpu.memory_space<vmem>>, vector<1x8x128xf32>
    %47 = vector.shape_cast %46 : vector<1x8x128xf32> to vector<8x128xf32>
    %cst_36 = arith.constant dense<0.000000e+00> : vector<8x128xf32>
    %48 = tpu.matmul %38, %37, %cst_36 {dimension_numbers = #tpu.dot_dimension_numbers<[1], [0], [0], [1], [0, 0, 1, 1], [], []>} : vector<8x32xf32>, vector<32x128xf32>, vector<8x128xf32> -> vector<8x128xf32>
    %49 = arith.addf %47, %48 : vector<8x128xf32>
    %50 = vector.extract_strided_slice %43 {offsets = [0, 0], sizes = [8, 32], strides = [1, 1]} : vector<8x128xf32> to vector<8x32xf32>
    %51 = arith.negf %50 : vector<8x32xf32>
    %52 = math.exp %51 : vector<8x32xf32>
    %cst_37 = arith.constant 1.000000e+00 : f32
    %53 = vector.broadcast %cst_37 : f32 to vector<8x32xf32>
    %54 = arith.addf %53, %52 : vector<8x32xf32>
    %55 = arith.divf %53, %54 : vector<8x32xf32>
    %56 = vector.extract_strided_slice %49 {offsets = [0, 0], sizes = [8, 32], strides = [1, 1]} : vector<8x128xf32> to vector<8x32xf32>
    %57 = arith.negf %56 : vector<8x32xf32>
    %58 = math.exp %57 : vector<8x32xf32>
    %cst_38 = arith.constant 1.000000e+00 : f32
    %59 = vector.broadcast %cst_38 : f32 to vector<8x32xf32>
    %60 = arith.addf %59, %58 : vector<8x32xf32>
    %61 = arith.divf %59, %60 : vector<8x32xf32>
    %62 = vector.extract_strided_slice %43 {offsets = [0, 32], sizes = [8, 32], strides = [1, 1]} : vector<8x128xf32> to vector<8x32xf32>
    %63 = arith.negf %62 : vector<8x32xf32>
    %64 = math.exp %63 : vector<8x32xf32>
    %cst_39 = arith.constant 1.000000e+00 : f32
    %65 = vector.broadcast %cst_39 : f32 to vector<8x32xf32>
    %66 = arith.addf %65, %64 : vector<8x32xf32>
    %67 = arith.divf %65, %66 : vector<8x32xf32>
    %68 = vector.extract_strided_slice %49 {offsets = [0, 32], sizes = [8, 32], strides = [1, 1]} : vector<8x128xf32> to vector<8x32xf32>
    %69 = arith.negf %68 : vector<8x32xf32>
    %70 = math.exp %69 : vector<8x32xf32>
    %cst_40 = arith.constant 1.000000e+00 : f32
    %71 = vector.broadcast %cst_40 : f32 to vector<8x32xf32>
    %72 = arith.addf %71, %70 : vector<8x32xf32>
    %73 = arith.divf %71, %72 : vector<8x32xf32>
    %74 = vector.extract_strided_slice %43 {offsets = [0, 64], sizes = [8, 32], strides = [1, 1]} : vector<8x128xf32> to vector<8x32xf32>
    %75 = math.tanh %74 : vector<8x32xf32>
    %76 = vector.extract_strided_slice %49 {offsets = [0, 64], sizes = [8, 32], strides = [1, 1]} : vector<8x128xf32> to vector<8x32xf32>
    %77 = math.tanh %76 : vector<8x32xf32>
    %78 = vector.extract_strided_slice %43 {offsets = [0, 96], sizes = [8, 32], strides = [1, 1]} : vector<8x128xf32> to vector<8x32xf32>
    %79 = arith.negf %78 : vector<8x32xf32>
    %80 = math.exp %79 : vector<8x32xf32>
    %cst_41 = arith.constant 1.000000e+00 : f32
    %81 = vector.broadcast %cst_41 : f32 to vector<8x32xf32>
    %82 = arith.addf %81, %80 : vector<8x32xf32>
    %83 = arith.divf %81, %82 : vector<8x32xf32>
    %84 = vector.extract_strided_slice %49 {offsets = [0, 96], sizes = [8, 32], strides = [1, 1]} : vector<8x128xf32> to vector<8x32xf32>
    %85 = arith.negf %84 : vector<8x32xf32>
    %86 = math.exp %85 : vector<8x32xf32>
    %cst_42 = arith.constant 1.000000e+00 : f32
    %87 = vector.broadcast %cst_42 : f32 to vector<8x32xf32>
    %88 = arith.addf %87, %86 : vector<8x32xf32>
    %89 = arith.divf %87, %88 : vector<8x32xf32>
    %90 = arith.mulf %67, %38 : vector<8x32xf32>
    %91 = arith.mulf %55, %75 : vector<8x32xf32>
    %92 = arith.addf %90, %91 : vector<8x32xf32>
    %93 = arith.mulf %73, %38 : vector<8x32xf32>
    %94 = arith.mulf %61, %77 : vector<8x32xf32>
    %95 = arith.addf %93, %94 : vector<8x32xf32>
    %96 = math.tanh %92 : vector<8x32xf32>
    %97 = arith.mulf %83, %96 : vector<8x32xf32>
    %98 = math.tanh %95 : vector<8x32xf32>
    %99 = arith.mulf %89, %98 : vector<8x32xf32>
    %100 = arith.index_cast %c0_i32 : i32 to index
    %c0_43 = arith.constant 0 : index
    %c0_44 = arith.constant 0 : index
    %101 = vector.load %arg13[%100, %c0_43, %c0_44] : memref<8x8x32xf32, #tpu.memory_space<vmem>>, vector<1x8x32xf32>
    %102 = vector.shape_cast %101 : vector<1x8x32xf32> to vector<8x32xf32>
    %103 = vector.shape_cast %97 : vector<8x32xf32> to vector<1x8x32xf32>
    tpu.vector_store %arg13[%100, %c0_43, %c0_44], %103 {strides = array<i32>} : memref<8x8x32xf32, #tpu.memory_space<vmem>>, vector<1x8x32xf32>,
    %c7_i32_45 = arith.constant 7 : i32
    %104 = arith.subi %c7_i32_45, %c0_i32 : i32
    %105 = arith.index_cast %104 : i32 to index
    %c0_46 = arith.constant 0 : index
    %c0_47 = arith.constant 0 : index
    %106 = vector.load %arg14[%105, %c0_46, %c0_47] : memref<8x8x32xf32, #tpu.memory_space<vmem>>, vector<1x8x32xf32>
    %107 = vector.shape_cast %106 : vector<1x8x32xf32> to vector<8x32xf32>
    %108 = vector.shape_cast %99 : vector<8x32xf32> to vector<1x8x32xf32>
    tpu.vector_store %arg14[%105, %c0_46, %c0_47], %108 {strides = array<i32>} : memref<8x8x32xf32, #tpu.memory_space<vmem>>, vector<1x8x32xf32>,
    %c1_i32 = arith.constant 1 : i32
    %109 = arith.index_cast %c1_i32 : i32 to index
    %c0_48 = arith.constant 0 : index
    %c0_49 = arith.constant 0 : index
    %110 = vector.load %arg11[%109, %c0_48, %c0_49] : memref<8x8x128xf32, #tpu.memory_space<vmem>>, vector<1x8x128xf32>
    %111 = vector.shape_cast %110 : vector<1x8x128xf32> to vector<8x128xf32>
    %cst_50 = arith.constant dense<0.000000e+00> : vector<8x128xf32>
    %112 = tpu.matmul %97, %36, %cst_50 {dimension_numbers = #tpu.dot_dimension_numbers<[1], [0], [0], [1], [0, 0, 1, 1], [], []>} : vector<8x32xf32>, vector<32x128xf32>, vector<8x128xf32> -> vector<8x128xf32>
    %113 = arith.addf %111, %112 : vector<8x128xf32>
    %c7_i32_51 = arith.constant 7 : i32
    %114 = arith.subi %c7_i32_51, %c1_i32 : i32
    %115 = arith.index_cast %114 : i32 to index
    %c0_52 = arith.constant 0 : index
    %c0_53 = arith.constant 0 : index
    %116 = vector.load %arg12[%115, %c0_52, %c0_53] : memref<8x8x128xf32, #tpu.memory_space<vmem>>, vector<1x8x128xf32>
    %117 = vector.shape_cast %116 : vector<1x8x128xf32> to vector<8x128xf32>
    %cst_54 = arith.constant dense<0.000000e+00> : vector<8x128xf32>
    %118 = tpu.matmul %99, %37, %cst_54 {dimension_numbers = #tpu.dot_dimension_numbers<[1], [0], [0], [1], [0, 0, 1, 1], [], []>} : vector<8x32xf32>, vector<32x128xf32>, vector<8x128xf32> -> vector<8x128xf32>
    %119 = arith.addf %117, %118 : vector<8x128xf32>
    %120 = vector.extract_strided_slice %113 {offsets = [0, 0], sizes = [8, 32], strides = [1, 1]} : vector<8x128xf32> to vector<8x32xf32>
    %121 = arith.negf %120 : vector<8x32xf32>
    %122 = math.exp %121 : vector<8x32xf32>
    %cst_55 = arith.constant 1.000000e+00 : f32
    %123 = vector.broadcast %cst_55 : f32 to vector<8x32xf32>
    %124 = arith.addf %123, %122 : vector<8x32xf32>
    %125 = arith.divf %123, %124 : vector<8x32xf32>
    %126 = vector.extract_strided_slice %119 {offsets = [0, 0], sizes = [8, 32], strides = [1, 1]} : vector<8x128xf32> to vector<8x32xf32>
    %127 = arith.negf %126 : vector<8x32xf32>
    %128 = math.exp %127 : vector<8x32xf32>
    %cst_56 = arith.constant 1.000000e+00 : f32
    %129 = vector.broadcast %cst_56 : f32 to vector<8x32xf32>
    %130 = arith.addf %129, %128 : vector<8x32xf32>
    %131 = arith.divf %129, %130 : vector<8x32xf32>
    %132 = vector.extract_strided_slice %113 {offsets = [0, 32], sizes = [8, 32], strides = [1, 1]} : vector<8x128xf32> to vector<8x32xf32>
    %133 = arith.negf %132 : vector<8x32xf32>
    %134 = math.exp %133 : vector<8x32xf32>
    %cst_57 = arith.constant 1.000000e+00 : f32
    %135 = vector.broadcast %cst_57 : f32 to vector<8x32xf32>
    %136 = arith.addf %135, %134 : vector<8x32xf32>
    %137 = arith.divf %135, %136 : vector<8x32xf32>
    %138 = vector.extract_strided_slice %119 {offsets = [0, 32], sizes = [8, 32], strides = [1, 1]} : vector<8x128xf32> to vector<8x32xf32>
    %139 = arith.negf %138 : vector<8x32xf32>
    %140 = math.exp %139 : vector<8x32xf32>
    %cst_58 = arith.constant 1.000000e+00 : f32
    %141 = vector.broadcast %cst_58 : f32 to vector<8x32xf32>
    %142 = arith.addf %141, %140 : vector<8x32xf32>
    %143 = arith.divf %141, %142 : vector<8x32xf32>
    %144 = vector.extract_strided_slice %113 {offsets = [0, 64], sizes = [8, 32], strides = [1, 1]} : vector<8x128xf32> to vector<8x32xf32>
    %145 = math.tanh %144 : vector<8x32xf32>
    %146 = vector.extract_strided_slice %119 {offsets = [0, 64], sizes = [8, 32], strides = [1, 1]} : vector<8x128xf32> to vector<8x32xf32>
    %147 = math.tanh %146 : vector<8x32xf32>
    %148 = vector.extract_strided_slice %113 {offsets = [0, 96], sizes = [8, 32], strides = [1, 1]} : vector<8x128xf32> to vector<8x32xf32>
    %149 = arith.negf %148 : vector<8x32xf32>
    %150 = math.exp %149 : vector<8x32xf32>
    %cst_59 = arith.constant 1.000000e+00 : f32
    %151 = vector.broadcast %cst_59 : f32 to vector<8x32xf32>
    %152 = arith.addf %151, %150 : vector<8x32xf32>
    %153 = arith.divf %151, %152 : vector<8x32xf32>
    %154 = vector.extract_strided_slice %119 {offsets = [0, 96], sizes = [8, 32], strides = [1, 1]} : vector<8x128xf32> to vector<8x32xf32>
    %155 = arith.negf %154 : vector<8x32xf32>
    %156 = math.exp %155 : vector<8x32xf32>
    %cst_60 = arith.constant 1.000000e+00 : f32
    %157 = vector.broadcast %cst_60 : f32 to vector<8x32xf32>
    %158 = arith.addf %157, %156 : vector<8x32xf32>
    %159 = arith.divf %157, %158 : vector<8x32xf32>
    %160 = arith.mulf %137, %92 : vector<8x32xf32>
    %161 = arith.mulf %125, %145 : vector<8x32xf32>
    %162 = arith.addf %160, %161 : vector<8x32xf32>
    %163 = arith.mulf %143, %95 : vector<8x32xf32>
    %164 = arith.mulf %131, %147 : vector<8x32xf32>
    %165 = arith.addf %163, %164 : vector<8x32xf32>
    %166 = math.tanh %162 : vector<8x32xf32>
    %167 = arith.mulf %153, %166 : vector<8x32xf32>
    %168 = math.tanh %165 : vector<8x32xf32>
    %169 = arith.mulf %159, %168 : vector<8x32xf32>
    %170 = arith.index_cast %c1_i32 : i32 to index
    %c0_61 = arith.constant 0 : index
    %c0_62 = arith.constant 0 : index
    %171 = vector.load %arg13[%170, %c0_61, %c0_62] : memref<8x8x32xf32, #tpu.memory_space<vmem>>, vector<1x8x32xf32>
    %172 = vector.shape_cast %171 : vector<1x8x32xf32> to vector<8x32xf32>
    %173 = vector.shape_cast %167 : vector<8x32xf32> to vector<1x8x32xf32>
    tpu.vector_store %arg13[%170, %c0_61, %c0_62], %173 {strides = array<i32>} : memref<8x8x32xf32, #tpu.memory_space<vmem>>, vector<1x8x32xf32>,
    %c7_i32_63 = arith.constant 7 : i32
    %174 = arith.subi %c7_i32_63, %c1_i32 : i32
    %175 = arith.index_cast %174 : i32 to index
    %c0_64 = arith.constant 0 : index
    %c0_65 = arith.constant 0 : index
    %176 = vector.load %arg14[%175, %c0_64, %c0_65] : memref<8x8x32xf32, #tpu.memory_space<vmem>>, vector<1x8x32xf32>
    %177 = vector.shape_cast %176 : vector<1x8x32xf32> to vector<8x32xf32>
    %178 = vector.shape_cast %169 : vector<8x32xf32> to vector<1x8x32xf32>
    tpu.vector_store %arg14[%175, %c0_64, %c0_65], %178 {strides = array<i32>} : memref<8x8x32xf32, #tpu.memory_space<vmem>>, vector<1x8x32xf32>,
    %c2_i32 = arith.constant 2 : i32
    %179 = arith.index_cast %c2_i32 : i32 to index
    %c0_66 = arith.constant 0 : index
    %c0_67 = arith.constant 0 : index
    %180 = vector.load %arg11[%179, %c0_66, %c0_67] : memref<8x8x128xf32, #tpu.memory_space<vmem>>, vector<1x8x128xf32>
    %181 = vector.shape_cast %180 : vector<1x8x128xf32> to vector<8x128xf32>
    %cst_68 = arith.constant dense<0.000000e+00> : vector<8x128xf32>
    %182 = tpu.matmul %167, %36, %cst_68 {dimension_numbers = #tpu.dot_dimension_numbers<[1], [0], [0], [1], [0, 0, 1, 1], [], []>} : vector<8x32xf32>, vector<32x128xf32>, vector<8x128xf32> -> vector<8x128xf32>
    %183 = arith.addf %181, %182 : vector<8x128xf32>
    %c7_i32_69 = arith.constant 7 : i32
    %184 = arith.subi %c7_i32_69, %c2_i32 : i32
    %185 = arith.index_cast %184 : i32 to index
    %c0_70 = arith.constant 0 : index
    %c0_71 = arith.constant 0 : index
    %186 = vector.load %arg12[%185, %c0_70, %c0_71] : memref<8x8x128xf32, #tpu.memory_space<vmem>>, vector<1x8x128xf32>
    %187 = vector.shape_cast %186 : vector<1x8x128xf32> to vector<8x128xf32>
    %cst_72 = arith.constant dense<0.000000e+00> : vector<8x128xf32>
    %188 = tpu.matmul %169, %37, %cst_72 {dimension_numbers = #tpu.dot_dimension_numbers<[1], [0], [0], [1], [0, 0, 1, 1], [], []>} : vector<8x32xf32>, vector<32x128xf32>, vector<8x128xf32> -> vector<8x128xf32>
    %189 = arith.addf %187, %188 : vector<8x128xf32>
    %190 = vector.extract_strided_slice %183 {offsets = [0, 0], sizes = [8, 32], strides = [1, 1]} : vector<8x128xf32> to vector<8x32xf32>
    %191 = arith.negf %190 : vector<8x32xf32>
    %192 = math.exp %191 : vector<8x32xf32>
    %cst_73 = arith.constant 1.000000e+00 : f32
    %193 = vector.broadcast %cst_73 : f32 to vector<8x32xf32>
    %194 = arith.addf %193, %192 : vector<8x32xf32>
    %195 = arith.divf %193, %194 : vector<8x32xf32>
    %196 = vector.extract_strided_slice %189 {offsets = [0, 0], sizes = [8, 32], strides = [1, 1]} : vector<8x128xf32> to vector<8x32xf32>
    %197 = arith.negf %196 : vector<8x32xf32>
    %198 = math.exp %197 : vector<8x32xf32>
    %cst_74 = arith.constant 1.000000e+00 : f32
    %199 = vector.broadcast %cst_74 : f32 to vector<8x32xf32>
    %200 = arith.addf %199, %198 : vector<8x32xf32>
    %201 = arith.divf %199, %200 : vector<8x32xf32>
    %202 = vector.extract_strided_slice %183 {offsets = [0, 32], sizes = [8, 32], strides = [1, 1]} : vector<8x128xf32> to vector<8x32xf32>
    %203 = arith.negf %202 : vector<8x32xf32>
    %204 = math.exp %203 : vector<8x32xf32>
    %cst_75 = arith.constant 1.000000e+00 : f32
    %205 = vector.broadcast %cst_75 : f32 to vector<8x32xf32>
    %206 = arith.addf %205, %204 : vector<8x32xf32>
    %207 = arith.divf %205, %206 : vector<8x32xf32>
    %208 = vector.extract_strided_slice %189 {offsets = [0, 32], sizes = [8, 32], strides = [1, 1]} : vector<8x128xf32> to vector<8x32xf32>
    %209 = arith.negf %208 : vector<8x32xf32>
    %210 = math.exp %209 : vector<8x32xf32>
    %cst_76 = arith.constant 1.000000e+00 : f32
    %211 = vector.broadcast %cst_76 : f32 to vector<8x32xf32>
    %212 = arith.addf %211, %210 : vector<8x32xf32>
    %213 = arith.divf %211, %212 : vector<8x32xf32>
    %214 = vector.extract_strided_slice %183 {offsets = [0, 64], sizes = [8, 32], strides = [1, 1]} : vector<8x128xf32> to vector<8x32xf32>
    %215 = math.tanh %214 : vector<8x32xf32>
    %216 = vector.extract_strided_slice %189 {offsets = [0, 64], sizes = [8, 32], strides = [1, 1]} : vector<8x128xf32> to vector<8x32xf32>
    %217 = math.tanh %216 : vector<8x32xf32>
    %218 = vector.extract_strided_slice %183 {offsets = [0, 96], sizes = [8, 32], strides = [1, 1]} : vector<8x128xf32> to vector<8x32xf32>
    %219 = arith.negf %218 : vector<8x32xf32>
    %220 = math.exp %219 : vector<8x32xf32>
    %cst_77 = arith.constant 1.000000e+00 : f32
    %221 = vector.broadcast %cst_77 : f32 to vector<8x32xf32>
    %222 = arith.addf %221, %220 : vector<8x32xf32>
    %223 = arith.divf %221, %222 : vector<8x32xf32>
    %224 = vector.extract_strided_slice %189 {offsets = [0, 96], sizes = [8, 32], strides = [1, 1]} : vector<8x128xf32> to vector<8x32xf32>
    %225 = arith.negf %224 : vector<8x32xf32>
    %226 = math.exp %225 : vector<8x32xf32>
    %cst_78 = arith.constant 1.000000e+00 : f32
    %227 = vector.broadcast %cst_78 : f32 to vector<8x32xf32>
    %228 = arith.addf %227, %226 : vector<8x32xf32>
    %229 = arith.divf %227, %228 : vector<8x32xf32>
    %230 = arith.mulf %207, %162 : vector<8x32xf32>
    %231 = arith.mulf %195, %215 : vector<8x32xf32>
    %232 = arith.addf %230, %231 : vector<8x32xf32>
    %233 = arith.mulf %213, %165 : vector<8x32xf32>
    %234 = arith.mulf %201, %217 : vector<8x32xf32>
    %235 = arith.addf %233, %234 : vector<8x32xf32>
    %236 = math.tanh %232 : vector<8x32xf32>
    %237 = arith.mulf %223, %236 : vector<8x32xf32>
    %238 = math.tanh %235 : vector<8x32xf32>
    %239 = arith.mulf %229, %238 : vector<8x32xf32>
    %240 = arith.index_cast %c2_i32 : i32 to index
    %c0_79 = arith.constant 0 : index
    %c0_80 = arith.constant 0 : index
    %241 = vector.load %arg13[%240, %c0_79, %c0_80] : memref<8x8x32xf32, #tpu.memory_space<vmem>>, vector<1x8x32xf32>
    %242 = vector.shape_cast %241 : vector<1x8x32xf32> to vector<8x32xf32>
    %243 = vector.shape_cast %237 : vector<8x32xf32> to vector<1x8x32xf32>
    tpu.vector_store %arg13[%240, %c0_79, %c0_80], %243 {strides = array<i32>} : memref<8x8x32xf32, #tpu.memory_space<vmem>>, vector<1x8x32xf32>,
    %c7_i32_81 = arith.constant 7 : i32
    %244 = arith.subi %c7_i32_81, %c2_i32 : i32
    %245 = arith.index_cast %244 : i32 to index
    %c0_82 = arith.constant 0 : index
    %c0_83 = arith.constant 0 : index
    %246 = vector.load %arg14[%245, %c0_82, %c0_83] : memref<8x8x32xf32, #tpu.memory_space<vmem>>, vector<1x8x32xf32>
    %247 = vector.shape_cast %246 : vector<1x8x32xf32> to vector<8x32xf32>
    %248 = vector.shape_cast %239 : vector<8x32xf32> to vector<1x8x32xf32>
    tpu.vector_store %arg14[%245, %c0_82, %c0_83], %248 {strides = array<i32>} : memref<8x8x32xf32, #tpu.memory_space<vmem>>, vector<1x8x32xf32>,
    %c3_i32 = arith.constant 3 : i32
    %249 = arith.index_cast %c3_i32 : i32 to index
    %c0_84 = arith.constant 0 : index
    %c0_85 = arith.constant 0 : index
    %250 = vector.load %arg11[%249, %c0_84, %c0_85] : memref<8x8x128xf32, #tpu.memory_space<vmem>>, vector<1x8x128xf32>
    %251 = vector.shape_cast %250 : vector<1x8x128xf32> to vector<8x128xf32>
    %cst_86 = arith.constant dense<0.000000e+00> : vector<8x128xf32>
    %252 = tpu.matmul %237, %36, %cst_86 {dimension_numbers = #tpu.dot_dimension_numbers<[1], [0], [0], [1], [0, 0, 1, 1], [], []>} : vector<8x32xf32>, vector<32x128xf32>, vector<8x128xf32> -> vector<8x128xf32>
    %253 = arith.addf %251, %252 : vector<8x128xf32>
    %c7_i32_87 = arith.constant 7 : i32
    %254 = arith.subi %c7_i32_87, %c3_i32 : i32
    %255 = arith.index_cast %254 : i32 to index
    %c0_88 = arith.constant 0 : index
    %c0_89 = arith.constant 0 : index
    %256 = vector.load %arg12[%255, %c0_88, %c0_89] : memref<8x8x128xf32, #tpu.memory_space<vmem>>, vector<1x8x128xf32>
    %257 = vector.shape_cast %256 : vector<1x8x128xf32> to vector<8x128xf32>
    %cst_90 = arith.constant dense<0.000000e+00> : vector<8x128xf32>
    %258 = tpu.matmul %239, %37, %cst_90 {dimension_numbers = #tpu.dot_dimension_numbers<[1], [0], [0], [1], [0, 0, 1, 1], [], []>} : vector<8x32xf32>, vector<32x128xf32>, vector<8x128xf32> -> vector<8x128xf32>
    %259 = arith.addf %257, %258 : vector<8x128xf32>
    %260 = vector.extract_strided_slice %253 {offsets = [0, 0], sizes = [8, 32], strides = [1, 1]} : vector<8x128xf32> to vector<8x32xf32>
    %261 = arith.negf %260 : vector<8x32xf32>
    %262 = math.exp %261 : vector<8x32xf32>
    %cst_91 = arith.constant 1.000000e+00 : f32
    %263 = vector.broadcast %cst_91 : f32 to vector<8x32xf32>
    %264 = arith.addf %263, %262 : vector<8x32xf32>
    %265 = arith.divf %263, %264 : vector<8x32xf32>
    %266 = vector.extract_strided_slice %259 {offsets = [0, 0], sizes = [8, 32], strides = [1, 1]} : vector<8x128xf32> to vector<8x32xf32>
    %267 = arith.negf %266 : vector<8x32xf32>
    %268 = math.exp %267 : vector<8x32xf32>
    %cst_92 = arith.constant 1.000000e+00 : f32
    %269 = vector.broadcast %cst_92 : f32 to vector<8x32xf32>
    %270 = arith.addf %269, %268 : vector<8x32xf32>
    %271 = arith.divf %269, %270 : vector<8x32xf32>
    %272 = vector.extract_strided_slice %253 {offsets = [0, 32], sizes = [8, 32], strides = [1, 1]} : vector<8x128xf32> to vector<8x32xf32>
    %273 = arith.negf %272 : vector<8x32xf32>
    %274 = math.exp %273 : vector<8x32xf32>
    %cst_93 = arith.constant 1.000000e+00 : f32
    %275 = vector.broadcast %cst_93 : f32 to vector<8x32xf32>
    %276 = arith.addf %275, %274 : vector<8x32xf32>
    %277 = arith.divf %275, %276 : vector<8x32xf32>
    %278 = vector.extract_strided_slice %259 {offsets = [0, 32], sizes = [8, 32], strides = [1, 1]} : vector<8x128xf32> to vector<8x32xf32>
    %279 = arith.negf %278 : vector<8x32xf32>
    %280 = math.exp %279 : vector<8x32xf32>
    %cst_94 = arith.constant 1.000000e+00 : f32
    %281 = vector.broadcast %cst_94 : f32 to vector<8x32xf32>
    %282 = arith.addf %281, %280 : vector<8x32xf32>
    %283 = arith.divf %281, %282 : vector<8x32xf32>
    %284 = vector.extract_strided_slice %253 {offsets = [0, 64], sizes = [8, 32], strides = [1, 1]} : vector<8x128xf32> to vector<8x32xf32>
    %285 = math.tanh %284 : vector<8x32xf32>
    %286 = vector.extract_strided_slice %259 {offsets = [0, 64], sizes = [8, 32], strides = [1, 1]} : vector<8x128xf32> to vector<8x32xf32>
    %287 = math.tanh %286 : vector<8x32xf32>
    %288 = vector.extract_strided_slice %253 {offsets = [0, 96], sizes = [8, 32], strides = [1, 1]} : vector<8x128xf32> to vector<8x32xf32>
    %289 = arith.negf %288 : vector<8x32xf32>
    %290 = math.exp %289 : vector<8x32xf32>
    %cst_95 = arith.constant 1.000000e+00 : f32
    %291 = vector.broadcast %cst_95 : f32 to vector<8x32xf32>
    %292 = arith.addf %291, %290 : vector<8x32xf32>
    %293 = arith.divf %291, %292 : vector<8x32xf32>
    %294 = vector.extract_strided_slice %259 {offsets = [0, 96], sizes = [8, 32], strides = [1, 1]} : vector<8x128xf32> to vector<8x32xf32>
    %295 = arith.negf %294 : vector<8x32xf32>
    %296 = math.exp %295 : vector<8x32xf32>
    %cst_96 = arith.constant 1.000000e+00 : f32
    %297 = vector.broadcast %cst_96 : f32 to vector<8x32xf32>
    %298 = arith.addf %297, %296 : vector<8x32xf32>
    %299 = arith.divf %297, %298 : vector<8x32xf32>
    %300 = arith.mulf %277, %232 : vector<8x32xf32>
    %301 = arith.mulf %265, %285 : vector<8x32xf32>
    %302 = arith.addf %300, %301 : vector<8x32xf32>
    %303 = arith.mulf %283, %235 : vector<8x32xf32>
    %304 = arith.mulf %271, %287 : vector<8x32xf32>
    %305 = arith.addf %303, %304 : vector<8x32xf32>
    %306 = math.tanh %302 : vector<8x32xf32>
    %307 = arith.mulf %293, %306 : vector<8x32xf32>
    %308 = math.tanh %305 : vector<8x32xf32>
    %309 = arith.mulf %299, %308 : vector<8x32xf32>
    %310 = arith.index_cast %c3_i32 : i32 to index
    %c0_97 = arith.constant 0 : index
    %c0_98 = arith.constant 0 : index
    %311 = vector.load %arg13[%310, %c0_97, %c0_98] : memref<8x8x32xf32, #tpu.memory_space<vmem>>, vector<1x8x32xf32>
    %312 = vector.shape_cast %311 : vector<1x8x32xf32> to vector<8x32xf32>
    %313 = vector.shape_cast %307 : vector<8x32xf32> to vector<1x8x32xf32>
    tpu.vector_store %arg13[%310, %c0_97, %c0_98], %313 {strides = array<i32>} : memref<8x8x32xf32, #tpu.memory_space<vmem>>, vector<1x8x32xf32>,
    %c7_i32_99 = arith.constant 7 : i32
    %314 = arith.subi %c7_i32_99, %c3_i32 : i32
    %315 = arith.index_cast %314 : i32 to index
    %c0_100 = arith.constant 0 : index
    %c0_101 = arith.constant 0 : index
    %316 = vector.load %arg14[%315, %c0_100, %c0_101] : memref<8x8x32xf32, #tpu.memory_space<vmem>>, vector<1x8x32xf32>
    %317 = vector.shape_cast %316 : vector<1x8x32xf32> to vector<8x32xf32>
    %318 = vector.shape_cast %309 : vector<8x32xf32> to vector<1x8x32xf32>
    tpu.vector_store %arg14[%315, %c0_100, %c0_101], %318 {strides = array<i32>} : memref<8x8x32xf32, #tpu.memory_space<vmem>>, vector<1x8x32xf32>,
    %c4_i32 = arith.constant 4 : i32
    %319 = arith.index_cast %c4_i32 : i32 to index
    %c0_102 = arith.constant 0 : index
    %c0_103 = arith.constant 0 : index
    %320 = vector.load %arg11[%319, %c0_102, %c0_103] : memref<8x8x128xf32, #tpu.memory_space<vmem>>, vector<1x8x128xf32>
    %321 = vector.shape_cast %320 : vector<1x8x128xf32> to vector<8x128xf32>
    %cst_104 = arith.constant dense<0.000000e+00> : vector<8x128xf32>
    %322 = tpu.matmul %307, %36, %cst_104 {dimension_numbers = #tpu.dot_dimension_numbers<[1], [0], [0], [1], [0, 0, 1, 1], [], []>} : vector<8x32xf32>, vector<32x128xf32>, vector<8x128xf32> -> vector<8x128xf32>
    %323 = arith.addf %321, %322 : vector<8x128xf32>
    %c7_i32_105 = arith.constant 7 : i32
    %324 = arith.subi %c7_i32_105, %c4_i32 : i32
    %325 = arith.index_cast %324 : i32 to index
    %c0_106 = arith.constant 0 : index
    %c0_107 = arith.constant 0 : index
    %326 = vector.load %arg12[%325, %c0_106, %c0_107] : memref<8x8x128xf32, #tpu.memory_space<vmem>>, vector<1x8x128xf32>
    %327 = vector.shape_cast %326 : vector<1x8x128xf32> to vector<8x128xf32>
    %cst_108 = arith.constant dense<0.000000e+00> : vector<8x128xf32>
    %328 = tpu.matmul %309, %37, %cst_108 {dimension_numbers = #tpu.dot_dimension_numbers<[1], [0], [0], [1], [0, 0, 1, 1], [], []>} : vector<8x32xf32>, vector<32x128xf32>, vector<8x128xf32> -> vector<8x128xf32>
    %329 = arith.addf %327, %328 : vector<8x128xf32>
    %330 = vector.extract_strided_slice %323 {offsets = [0, 0], sizes = [8, 32], strides = [1, 1]} : vector<8x128xf32> to vector<8x32xf32>
    %331 = arith.negf %330 : vector<8x32xf32>
    %332 = math.exp %331 : vector<8x32xf32>
    %cst_109 = arith.constant 1.000000e+00 : f32
    %333 = vector.broadcast %cst_109 : f32 to vector<8x32xf32>
    %334 = arith.addf %333, %332 : vector<8x32xf32>
    %335 = arith.divf %333, %334 : vector<8x32xf32>
    %336 = vector.extract_strided_slice %329 {offsets = [0, 0], sizes = [8, 32], strides = [1, 1]} : vector<8x128xf32> to vector<8x32xf32>
    %337 = arith.negf %336 : vector<8x32xf32>
    %338 = math.exp %337 : vector<8x32xf32>
    %cst_110 = arith.constant 1.000000e+00 : f32
    %339 = vector.broadcast %cst_110 : f32 to vector<8x32xf32>
    %340 = arith.addf %339, %338 : vector<8x32xf32>
    %341 = arith.divf %339, %340 : vector<8x32xf32>
    %342 = vector.extract_strided_slice %323 {offsets = [0, 32], sizes = [8, 32], strides = [1, 1]} : vector<8x128xf32> to vector<8x32xf32>
    %343 = arith.negf %342 : vector<8x32xf32>
    %344 = math.exp %343 : vector<8x32xf32>
    %cst_111 = arith.constant 1.000000e+00 : f32
    %345 = vector.broadcast %cst_111 : f32 to vector<8x32xf32>
    %346 = arith.addf %345, %344 : vector<8x32xf32>
    %347 = arith.divf %345, %346 : vector<8x32xf32>
    %348 = vector.extract_strided_slice %329 {offsets = [0, 32], sizes = [8, 32], strides = [1, 1]} : vector<8x128xf32> to vector<8x32xf32>
    %349 = arith.negf %348 : vector<8x32xf32>
    %350 = math.exp %349 : vector<8x32xf32>
    %cst_112 = arith.constant 1.000000e+00 : f32
    %351 = vector.broadcast %cst_112 : f32 to vector<8x32xf32>
    %352 = arith.addf %351, %350 : vector<8x32xf32>
    %353 = arith.divf %351, %352 : vector<8x32xf32>
    %354 = vector.extract_strided_slice %323 {offsets = [0, 64], sizes = [8, 32], strides = [1, 1]} : vector<8x128xf32> to vector<8x32xf32>
    %355 = math.tanh %354 : vector<8x32xf32>
    %356 = vector.extract_strided_slice %329 {offsets = [0, 64], sizes = [8, 32], strides = [1, 1]} : vector<8x128xf32> to vector<8x32xf32>
    %357 = math.tanh %356 : vector<8x32xf32>
    %358 = vector.extract_strided_slice %323 {offsets = [0, 96], sizes = [8, 32], strides = [1, 1]} : vector<8x128xf32> to vector<8x32xf32>
    %359 = arith.negf %358 : vector<8x32xf32>
    %360 = math.exp %359 : vector<8x32xf32>
    %cst_113 = arith.constant 1.000000e+00 : f32
    %361 = vector.broadcast %cst_113 : f32 to vector<8x32xf32>
    %362 = arith.addf %361, %360 : vector<8x32xf32>
    %363 = arith.divf %361, %362 : vector<8x32xf32>
    %364 = vector.extract_strided_slice %329 {offsets = [0, 96], sizes = [8, 32], strides = [1, 1]} : vector<8x128xf32> to vector<8x32xf32>
    %365 = arith.negf %364 : vector<8x32xf32>
    %366 = math.exp %365 : vector<8x32xf32>
    %cst_114 = arith.constant 1.000000e+00 : f32
    %367 = vector.broadcast %cst_114 : f32 to vector<8x32xf32>
    %368 = arith.addf %367, %366 : vector<8x32xf32>
    %369 = arith.divf %367, %368 : vector<8x32xf32>
    %370 = arith.mulf %347, %302 : vector<8x32xf32>
    %371 = arith.mulf %335, %355 : vector<8x32xf32>
    %372 = arith.addf %370, %371 : vector<8x32xf32>
    %373 = arith.mulf %353, %305 : vector<8x32xf32>
    %374 = arith.mulf %341, %357 : vector<8x32xf32>
    %375 = arith.addf %373, %374 : vector<8x32xf32>
    %376 = math.tanh %372 : vector<8x32xf32>
    %377 = arith.mulf %363, %376 : vector<8x32xf32>
    %378 = math.tanh %375 : vector<8x32xf32>
    %379 = arith.mulf %369, %378 : vector<8x32xf32>
    %380 = arith.index_cast %c4_i32 : i32 to index
    %c0_115 = arith.constant 0 : index
    %c0_116 = arith.constant 0 : index
    %381 = vector.load %arg13[%380, %c0_115, %c0_116] : memref<8x8x32xf32, #tpu.memory_space<vmem>>, vector<1x8x32xf32>
    %382 = vector.shape_cast %381 : vector<1x8x32xf32> to vector<8x32xf32>
    %383 = vector.shape_cast %377 : vector<8x32xf32> to vector<1x8x32xf32>
    tpu.vector_store %arg13[%380, %c0_115, %c0_116], %383 {strides = array<i32>} : memref<8x8x32xf32, #tpu.memory_space<vmem>>, vector<1x8x32xf32>,
    %c7_i32_117 = arith.constant 7 : i32
    %384 = arith.subi %c7_i32_117, %c4_i32 : i32
    %385 = arith.index_cast %384 : i32 to index
    %c0_118 = arith.constant 0 : index
    %c0_119 = arith.constant 0 : index
    %386 = vector.load %arg14[%385, %c0_118, %c0_119] : memref<8x8x32xf32, #tpu.memory_space<vmem>>, vector<1x8x32xf32>
    %387 = vector.shape_cast %386 : vector<1x8x32xf32> to vector<8x32xf32>
    %388 = vector.shape_cast %379 : vector<8x32xf32> to vector<1x8x32xf32>
    tpu.vector_store %arg14[%385, %c0_118, %c0_119], %388 {strides = array<i32>} : memref<8x8x32xf32, #tpu.memory_space<vmem>>, vector<1x8x32xf32>,
    %c5_i32 = arith.constant 5 : i32
    %389 = arith.index_cast %c5_i32 : i32 to index
    %c0_120 = arith.constant 0 : index
    %c0_121 = arith.constant 0 : index
    %390 = vector.load %arg11[%389, %c0_120, %c0_121] : memref<8x8x128xf32, #tpu.memory_space<vmem>>, vector<1x8x128xf32>
    %391 = vector.shape_cast %390 : vector<1x8x128xf32> to vector<8x128xf32>
    %cst_122 = arith.constant dense<0.000000e+00> : vector<8x128xf32>
    %392 = tpu.matmul %377, %36, %cst_122 {dimension_numbers = #tpu.dot_dimension_numbers<[1], [0], [0], [1], [0, 0, 1, 1], [], []>} : vector<8x32xf32>, vector<32x128xf32>, vector<8x128xf32> -> vector<8x128xf32>
    %393 = arith.addf %391, %392 : vector<8x128xf32>
    %c7_i32_123 = arith.constant 7 : i32
    %394 = arith.subi %c7_i32_123, %c5_i32 : i32
    %395 = arith.index_cast %394 : i32 to index
    %c0_124 = arith.constant 0 : index
    %c0_125 = arith.constant 0 : index
    %396 = vector.load %arg12[%395, %c0_124, %c0_125] : memref<8x8x128xf32, #tpu.memory_space<vmem>>, vector<1x8x128xf32>
    %397 = vector.shape_cast %396 : vector<1x8x128xf32> to vector<8x128xf32>
    %cst_126 = arith.constant dense<0.000000e+00> : vector<8x128xf32>
    %398 = tpu.matmul %379, %37, %cst_126 {dimension_numbers = #tpu.dot_dimension_numbers<[1], [0], [0], [1], [0, 0, 1, 1], [], []>} : vector<8x32xf32>, vector<32x128xf32>, vector<8x128xf32> -> vector<8x128xf32>
    %399 = arith.addf %397, %398 : vector<8x128xf32>
    %400 = vector.extract_strided_slice %393 {offsets = [0, 0], sizes = [8, 32], strides = [1, 1]} : vector<8x128xf32> to vector<8x32xf32>
    %401 = arith.negf %400 : vector<8x32xf32>
    %402 = math.exp %401 : vector<8x32xf32>
    %cst_127 = arith.constant 1.000000e+00 : f32
    %403 = vector.broadcast %cst_127 : f32 to vector<8x32xf32>
    %404 = arith.addf %403, %402 : vector<8x32xf32>
    %405 = arith.divf %403, %404 : vector<8x32xf32>
    %406 = vector.extract_strided_slice %399 {offsets = [0, 0], sizes = [8, 32], strides = [1, 1]} : vector<8x128xf32> to vector<8x32xf32>
    %407 = arith.negf %406 : vector<8x32xf32>
    %408 = math.exp %407 : vector<8x32xf32>
    %cst_128 = arith.constant 1.000000e+00 : f32
    %409 = vector.broadcast %cst_128 : f32 to vector<8x32xf32>
    %410 = arith.addf %409, %408 : vector<8x32xf32>
    %411 = arith.divf %409, %410 : vector<8x32xf32>
    %412 = vector.extract_strided_slice %393 {offsets = [0, 32], sizes = [8, 32], strides = [1, 1]} : vector<8x128xf32> to vector<8x32xf32>
    %413 = arith.negf %412 : vector<8x32xf32>
    %414 = math.exp %413 : vector<8x32xf32>
    %cst_129 = arith.constant 1.000000e+00 : f32
    %415 = vector.broadcast %cst_129 : f32 to vector<8x32xf32>
    %416 = arith.addf %415, %414 : vector<8x32xf32>
    %417 = arith.divf %415, %416 : vector<8x32xf32>
    %418 = vector.extract_strided_slice %399 {offsets = [0, 32], sizes = [8, 32], strides = [1, 1]} : vector<8x128xf32> to vector<8x32xf32>
    %419 = arith.negf %418 : vector<8x32xf32>
    %420 = math.exp %419 : vector<8x32xf32>
    %cst_130 = arith.constant 1.000000e+00 : f32
    %421 = vector.broadcast %cst_130 : f32 to vector<8x32xf32>
    %422 = arith.addf %421, %420 : vector<8x32xf32>
    %423 = arith.divf %421, %422 : vector<8x32xf32>
    %424 = vector.extract_strided_slice %393 {offsets = [0, 64], sizes = [8, 32], strides = [1, 1]} : vector<8x128xf32> to vector<8x32xf32>
    %425 = math.tanh %424 : vector<8x32xf32>
    %426 = vector.extract_strided_slice %399 {offsets = [0, 64], sizes = [8, 32], strides = [1, 1]} : vector<8x128xf32> to vector<8x32xf32>
    %427 = math.tanh %426 : vector<8x32xf32>
    %428 = vector.extract_strided_slice %393 {offsets = [0, 96], sizes = [8, 32], strides = [1, 1]} : vector<8x128xf32> to vector<8x32xf32>
    %429 = arith.negf %428 : vector<8x32xf32>
    %430 = math.exp %429 : vector<8x32xf32>
    %cst_131 = arith.constant 1.000000e+00 : f32
    %431 = vector.broadcast %cst_131 : f32 to vector<8x32xf32>
    %432 = arith.addf %431, %430 : vector<8x32xf32>
    %433 = arith.divf %431, %432 : vector<8x32xf32>
    %434 = vector.extract_strided_slice %399 {offsets = [0, 96], sizes = [8, 32], strides = [1, 1]} : vector<8x128xf32> to vector<8x32xf32>
    %435 = arith.negf %434 : vector<8x32xf32>
    %436 = math.exp %435 : vector<8x32xf32>
    %cst_132 = arith.constant 1.000000e+00 : f32
    %437 = vector.broadcast %cst_132 : f32 to vector<8x32xf32>
    %438 = arith.addf %437, %436 : vector<8x32xf32>
    %439 = arith.divf %437, %438 : vector<8x32xf32>
    %440 = arith.mulf %417, %372 : vector<8x32xf32>
    %441 = arith.mulf %405, %425 : vector<8x32xf32>
    %442 = arith.addf %440, %441 : vector<8x32xf32>
    %443 = arith.mulf %423, %375 : vector<8x32xf32>
    %444 = arith.mulf %411, %427 : vector<8x32xf32>
    %445 = arith.addf %443, %444 : vector<8x32xf32>
    %446 = math.tanh %442 : vector<8x32xf32>
    %447 = arith.mulf %433, %446 : vector<8x32xf32>
    %448 = math.tanh %445 : vector<8x32xf32>
    %449 = arith.mulf %439, %448 : vector<8x32xf32>
    %450 = arith.index_cast %c5_i32 : i32 to index
    %c0_133 = arith.constant 0 : index
    %c0_134 = arith.constant 0 : index
    %451 = vector.load %arg13[%450, %c0_133, %c0_134] : memref<8x8x32xf32, #tpu.memory_space<vmem>>, vector<1x8x32xf32>
    %452 = vector.shape_cast %451 : vector<1x8x32xf32> to vector<8x32xf32>
    %453 = vector.shape_cast %447 : vector<8x32xf32> to vector<1x8x32xf32>
    tpu.vector_store %arg13[%450, %c0_133, %c0_134], %453 {strides = array<i32>} : memref<8x8x32xf32, #tpu.memory_space<vmem>>, vector<1x8x32xf32>,
    %c7_i32_135 = arith.constant 7 : i32
    %454 = arith.subi %c7_i32_135, %c5_i32 : i32
    %455 = arith.index_cast %454 : i32 to index
    %c0_136 = arith.constant 0 : index
    %c0_137 = arith.constant 0 : index
    %456 = vector.load %arg14[%455, %c0_136, %c0_137] : memref<8x8x32xf32, #tpu.memory_space<vmem>>, vector<1x8x32xf32>
    %457 = vector.shape_cast %456 : vector<1x8x32xf32> to vector<8x32xf32>
    %458 = vector.shape_cast %449 : vector<8x32xf32> to vector<1x8x32xf32>
    tpu.vector_store %arg14[%455, %c0_136, %c0_137], %458 {strides = array<i32>} : memref<8x8x32xf32, #tpu.memory_space<vmem>>, vector<1x8x32xf32>,
    %c6_i32 = arith.constant 6 : i32
    %459 = arith.index_cast %c6_i32 : i32 to index
    %c0_138 = arith.constant 0 : index
    %c0_139 = arith.constant 0 : index
    %460 = vector.load %arg11[%459, %c0_138, %c0_139] : memref<8x8x128xf32, #tpu.memory_space<vmem>>, vector<1x8x128xf32>
    %461 = vector.shape_cast %460 : vector<1x8x128xf32> to vector<8x128xf32>
    %cst_140 = arith.constant dense<0.000000e+00> : vector<8x128xf32>
    %462 = tpu.matmul %447, %36, %cst_140 {dimension_numbers = #tpu.dot_dimension_numbers<[1], [0], [0], [1], [0, 0, 1, 1], [], []>} : vector<8x32xf32>, vector<32x128xf32>, vector<8x128xf32> -> vector<8x128xf32>
    %463 = arith.addf %461, %462 : vector<8x128xf32>
    %c7_i32_141 = arith.constant 7 : i32
    %464 = arith.subi %c7_i32_141, %c6_i32 : i32
    %465 = arith.index_cast %464 : i32 to index
    %c0_142 = arith.constant 0 : index
    %c0_143 = arith.constant 0 : index
    %466 = vector.load %arg12[%465, %c0_142, %c0_143] : memref<8x8x128xf32, #tpu.memory_space<vmem>>, vector<1x8x128xf32>
    %467 = vector.shape_cast %466 : vector<1x8x128xf32> to vector<8x128xf32>
    %cst_144 = arith.constant dense<0.000000e+00> : vector<8x128xf32>
    %468 = tpu.matmul %449, %37, %cst_144 {dimension_numbers = #tpu.dot_dimension_numbers<[1], [0], [0], [1], [0, 0, 1, 1], [], []>} : vector<8x32xf32>, vector<32x128xf32>, vector<8x128xf32> -> vector<8x128xf32>
    %469 = arith.addf %467, %468 : vector<8x128xf32>
    %470 = vector.extract_strided_slice %463 {offsets = [0, 0], sizes = [8, 32], strides = [1, 1]} : vector<8x128xf32> to vector<8x32xf32>
    %471 = arith.negf %470 : vector<8x32xf32>
    %472 = math.exp %471 : vector<8x32xf32>
    %cst_145 = arith.constant 1.000000e+00 : f32
    %473 = vector.broadcast %cst_145 : f32 to vector<8x32xf32>
    %474 = arith.addf %473, %472 : vector<8x32xf32>
    %475 = arith.divf %473, %474 : vector<8x32xf32>
    %476 = vector.extract_strided_slice %469 {offsets = [0, 0], sizes = [8, 32], strides = [1, 1]} : vector<8x128xf32> to vector<8x32xf32>
    %477 = arith.negf %476 : vector<8x32xf32>
    %478 = math.exp %477 : vector<8x32xf32>
    %cst_146 = arith.constant 1.000000e+00 : f32
    %479 = vector.broadcast %cst_146 : f32 to vector<8x32xf32>
    %480 = arith.addf %479, %478 : vector<8x32xf32>
    %481 = arith.divf %479, %480 : vector<8x32xf32>
    %482 = vector.extract_strided_slice %463 {offsets = [0, 32], sizes = [8, 32], strides = [1, 1]} : vector<8x128xf32> to vector<8x32xf32>
    %483 = arith.negf %482 : vector<8x32xf32>
    %484 = math.exp %483 : vector<8x32xf32>
    %cst_147 = arith.constant 1.000000e+00 : f32
    %485 = vector.broadcast %cst_147 : f32 to vector<8x32xf32>
    %486 = arith.addf %485, %484 : vector<8x32xf32>
    %487 = arith.divf %485, %486 : vector<8x32xf32>
    %488 = vector.extract_strided_slice %469 {offsets = [0, 32], sizes = [8, 32], strides = [1, 1]} : vector<8x128xf32> to vector<8x32xf32>
    %489 = arith.negf %488 : vector<8x32xf32>
    %490 = math.exp %489 : vector<8x32xf32>
    %cst_148 = arith.constant 1.000000e+00 : f32
    %491 = vector.broadcast %cst_148 : f32 to vector<8x32xf32>
    %492 = arith.addf %491, %490 : vector<8x32xf32>
    %493 = arith.divf %491, %492 : vector<8x32xf32>
    %494 = vector.extract_strided_slice %463 {offsets = [0, 64], sizes = [8, 32], strides = [1, 1]} : vector<8x128xf32> to vector<8x32xf32>
    %495 = math.tanh %494 : vector<8x32xf32>
    %496 = vector.extract_strided_slice %469 {offsets = [0, 64], sizes = [8, 32], strides = [1, 1]} : vector<8x128xf32> to vector<8x32xf32>
    %497 = math.tanh %496 : vector<8x32xf32>
    %498 = vector.extract_strided_slice %463 {offsets = [0, 96], sizes = [8, 32], strides = [1, 1]} : vector<8x128xf32> to vector<8x32xf32>
    %499 = arith.negf %498 : vector<8x32xf32>
    %500 = math.exp %499 : vector<8x32xf32>
    %cst_149 = arith.constant 1.000000e+00 : f32
    %501 = vector.broadcast %cst_149 : f32 to vector<8x32xf32>
    %502 = arith.addf %501, %500 : vector<8x32xf32>
    %503 = arith.divf %501, %502 : vector<8x32xf32>
    %504 = vector.extract_strided_slice %469 {offsets = [0, 96], sizes = [8, 32], strides = [1, 1]} : vector<8x128xf32> to vector<8x32xf32>
    %505 = arith.negf %504 : vector<8x32xf32>
    %506 = math.exp %505 : vector<8x32xf32>
    %cst_150 = arith.constant 1.000000e+00 : f32
    %507 = vector.broadcast %cst_150 : f32 to vector<8x32xf32>
    %508 = arith.addf %507, %506 : vector<8x32xf32>
    %509 = arith.divf %507, %508 : vector<8x32xf32>
    %510 = arith.mulf %487, %442 : vector<8x32xf32>
    %511 = arith.mulf %475, %495 : vector<8x32xf32>
    %512 = arith.addf %510, %511 : vector<8x32xf32>
    %513 = arith.mulf %493, %445 : vector<8x32xf32>
    %514 = arith.mulf %481, %497 : vector<8x32xf32>
    %515 = arith.addf %513, %514 : vector<8x32xf32>
    %516 = math.tanh %512 : vector<8x32xf32>
    %517 = arith.mulf %503, %516 : vector<8x32xf32>
    %518 = math.tanh %515 : vector<8x32xf32>
    %519 = arith.mulf %509, %518 : vector<8x32xf32>
    %520 = arith.index_cast %c6_i32 : i32 to index
    %c0_151 = arith.constant 0 : index
    %c0_152 = arith.constant 0 : index
    %521 = vector.load %arg13[%520, %c0_151, %c0_152] : memref<8x8x32xf32, #tpu.memory_space<vmem>>, vector<1x8x32xf32>
    %522 = vector.shape_cast %521 : vector<1x8x32xf32> to vector<8x32xf32>
    %523 = vector.shape_cast %517 : vector<8x32xf32> to vector<1x8x32xf32>
    tpu.vector_store %arg13[%520, %c0_151, %c0_152], %523 {strides = array<i32>} : memref<8x8x32xf32, #tpu.memory_space<vmem>>, vector<1x8x32xf32>,
    %c7_i32_153 = arith.constant 7 : i32
    %524 = arith.subi %c7_i32_153, %c6_i32 : i32
    %525 = arith.index_cast %524 : i32 to index
    %c0_154 = arith.constant 0 : index
    %c0_155 = arith.constant 0 : index
    %526 = vector.load %arg14[%525, %c0_154, %c0_155] : memref<8x8x32xf32, #tpu.memory_space<vmem>>, vector<1x8x32xf32>
    %527 = vector.shape_cast %526 : vector<1x8x32xf32> to vector<8x32xf32>
    %528 = vector.shape_cast %519 : vector<8x32xf32> to vector<1x8x32xf32>
    tpu.vector_store %arg14[%525, %c0_154, %c0_155], %528 {strides = array<i32>} : memref<8x8x32xf32, #tpu.memory_space<vmem>>, vector<1x8x32xf32>,
    %c7_i32_156 = arith.constant 7 : i32
    %529 = arith.index_cast %c7_i32_156 : i32 to index
    %c0_157 = arith.constant 0 : index
    %c0_158 = arith.constant 0 : index
    %530 = vector.load %arg11[%529, %c0_157, %c0_158] : memref<8x8x128xf32, #tpu.memory_space<vmem>>, vector<1x8x128xf32>
    %531 = vector.shape_cast %530 : vector<1x8x128xf32> to vector<8x128xf32>
    %cst_159 = arith.constant dense<0.000000e+00> : vector<8x128xf32>
    %532 = tpu.matmul %517, %36, %cst_159 {dimension_numbers = #tpu.dot_dimension_numbers<[1], [0], [0], [1], [0, 0, 1, 1], [], []>} : vector<8x32xf32>, vector<32x128xf32>, vector<8x128xf32> -> vector<8x128xf32>
    %533 = arith.addf %531, %532 : vector<8x128xf32>
    %c7_i32_160 = arith.constant 7 : i32
    %534 = arith.subi %c7_i32_160, %c7_i32_156 : i32
    %535 = arith.index_cast %534 : i32 to index
    %c0_161 = arith.constant 0 : index
    %c0_162 = arith.constant 0 : index
    %536 = vector.load %arg12[%535, %c0_161, %c0_162] : memref<8x8x128xf32, #tpu.memory_space<vmem>>, vector<1x8x128xf32>
    %537 = vector.shape_cast %536 : vector<1x8x128xf32> to vector<8x128xf32>
    %cst_163 = arith.constant dense<0.000000e+00> : vector<8x128xf32>
    %538 = tpu.matmul %519, %37, %cst_163 {dimension_numbers = #tpu.dot_dimension_numbers<[1], [0], [0], [1], [0, 0, 1, 1], [], []>} : vector<8x32xf32>, vector<32x128xf32>, vector<8x128xf32> -> vector<8x128xf32>
    %539 = arith.addf %537, %538 : vector<8x128xf32>
    %540 = vector.extract_strided_slice %533 {offsets = [0, 0], sizes = [8, 32], strides = [1, 1]} : vector<8x128xf32> to vector<8x32xf32>
    %541 = arith.negf %540 : vector<8x32xf32>
    %542 = math.exp %541 : vector<8x32xf32>
    %cst_164 = arith.constant 1.000000e+00 : f32
    %543 = vector.broadcast %cst_164 : f32 to vector<8x32xf32>
    %544 = arith.addf %543, %542 : vector<8x32xf32>
    %545 = arith.divf %543, %544 : vector<8x32xf32>
    %546 = vector.extract_strided_slice %539 {offsets = [0, 0], sizes = [8, 32], strides = [1, 1]} : vector<8x128xf32> to vector<8x32xf32>
    %547 = arith.negf %546 : vector<8x32xf32>
    %548 = math.exp %547 : vector<8x32xf32>
    %cst_165 = arith.constant 1.000000e+00 : f32
    %549 = vector.broadcast %cst_165 : f32 to vector<8x32xf32>
    %550 = arith.addf %549, %548 : vector<8x32xf32>
    %551 = arith.divf %549, %550 : vector<8x32xf32>
    %552 = vector.extract_strided_slice %533 {offsets = [0, 32], sizes = [8, 32], strides = [1, 1]} : vector<8x128xf32> to vector<8x32xf32>
    %553 = arith.negf %552 : vector<8x32xf32>
    %554 = math.exp %553 : vector<8x32xf32>
    %cst_166 = arith.constant 1.000000e+00 : f32
    %555 = vector.broadcast %cst_166 : f32 to vector<8x32xf32>
    %556 = arith.addf %555, %554 : vector<8x32xf32>
    %557 = arith.divf %555, %556 : vector<8x32xf32>
    %558 = vector.extract_strided_slice %539 {offsets = [0, 32], sizes = [8, 32], strides = [1, 1]} : vector<8x128xf32> to vector<8x32xf32>
    %559 = arith.negf %558 : vector<8x32xf32>
    %560 = math.exp %559 : vector<8x32xf32>
    %cst_167 = arith.constant 1.000000e+00 : f32
    %561 = vector.broadcast %cst_167 : f32 to vector<8x32xf32>
    %562 = arith.addf %561, %560 : vector<8x32xf32>
    %563 = arith.divf %561, %562 : vector<8x32xf32>
    %564 = vector.extract_strided_slice %533 {offsets = [0, 64], sizes = [8, 32], strides = [1, 1]} : vector<8x128xf32> to vector<8x32xf32>
    %565 = math.tanh %564 : vector<8x32xf32>
    %566 = vector.extract_strided_slice %539 {offsets = [0, 64], sizes = [8, 32], strides = [1, 1]} : vector<8x128xf32> to vector<8x32xf32>
    %567 = math.tanh %566 : vector<8x32xf32>
    %568 = vector.extract_strided_slice %533 {offsets = [0, 96], sizes = [8, 32], strides = [1, 1]} : vector<8x128xf32> to vector<8x32xf32>
    %569 = arith.negf %568 : vector<8x32xf32>
    %570 = math.exp %569 : vector<8x32xf32>
    %cst_168 = arith.constant 1.000000e+00 : f32
    %571 = vector.broadcast %cst_168 : f32 to vector<8x32xf32>
    %572 = arith.addf %571, %570 : vector<8x32xf32>
    %573 = arith.divf %571, %572 : vector<8x32xf32>
    %574 = vector.extract_strided_slice %539 {offsets = [0, 96], sizes = [8, 32], strides = [1, 1]} : vector<8x128xf32> to vector<8x32xf32>
    %575 = arith.negf %574 : vector<8x32xf32>
    %576 = math.exp %575 : vector<8x32xf32>
    %cst_169 = arith.constant 1.000000e+00 : f32
    %577 = vector.broadcast %cst_169 : f32 to vector<8x32xf32>
    %578 = arith.addf %577, %576 : vector<8x32xf32>
    %579 = arith.divf %577, %578 : vector<8x32xf32>
    %580 = arith.mulf %557, %512 : vector<8x32xf32>
    %581 = arith.mulf %545, %565 : vector<8x32xf32>
    %582 = arith.addf %580, %581 : vector<8x32xf32>
    %583 = arith.mulf %563, %515 : vector<8x32xf32>
    %584 = arith.mulf %551, %567 : vector<8x32xf32>
    %585 = arith.addf %583, %584 : vector<8x32xf32>
    %586 = math.tanh %582 : vector<8x32xf32>
    %587 = arith.mulf %573, %586 : vector<8x32xf32>
    %588 = math.tanh %585 : vector<8x32xf32>
    %589 = arith.mulf %579, %588 : vector<8x32xf32>
    %590 = arith.index_cast %c7_i32_156 : i32 to index
    %c0_170 = arith.constant 0 : index
    %c0_171 = arith.constant 0 : index
    %591 = vector.load %arg13[%590, %c0_170, %c0_171] : memref<8x8x32xf32, #tpu.memory_space<vmem>>, vector<1x8x32xf32>
    %592 = vector.shape_cast %591 : vector<1x8x32xf32> to vector<8x32xf32>
    %593 = vector.shape_cast %587 : vector<8x32xf32> to vector<1x8x32xf32>
    tpu.vector_store %arg13[%590, %c0_170, %c0_171], %593 {strides = array<i32>} : memref<8x8x32xf32, #tpu.memory_space<vmem>>, vector<1x8x32xf32>,
    %c7_i32_172 = arith.constant 7 : i32
    %594 = arith.subi %c7_i32_172, %c7_i32_156 : i32
    %595 = arith.index_cast %594 : i32 to index
    %c0_173 = arith.constant 0 : index
    %c0_174 = arith.constant 0 : index
    %596 = vector.load %arg14[%595, %c0_173, %c0_174] : memref<8x8x32xf32, #tpu.memory_space<vmem>>, vector<1x8x32xf32>
    %597 = vector.shape_cast %596 : vector<1x8x32xf32> to vector<8x32xf32>
    %598 = vector.shape_cast %589 : vector<8x32xf32> to vector<1x8x32xf32>
    tpu.vector_store %arg14[%595, %c0_173, %c0_174], %598 {strides = array<i32>} : memref<8x8x32xf32, #tpu.memory_space<vmem>>, vector<1x8x32xf32>,
    %c8_i32 = arith.constant 8 : i32
    %c0_175 = arith.constant 0 : index
    %c0_176 = arith.constant 0 : index
    %c0_177 = arith.constant 0 : index
    %599 = vector.load %arg13[%c0_175, %c0_176, %c0_177] : memref<8x8x32xf32, #tpu.memory_space<vmem>>, vector<8x8x32xf32>
    %c0_178 = arith.constant 0 : index
    %c0_179 = arith.constant 0 : index
    %c0_180 = arith.constant 0 : index
    %600 = vector.load %arg14[%c0_178, %c0_179, %c0_180] : memref<8x8x32xf32, #tpu.memory_space<vmem>>, vector<8x8x32xf32>
    %601 = vector.shape_cast %599 : vector<8x8x32xf32> to vector<64x32xf32>
    %c0_181 = arith.constant 0 : index
    %c0_182 = arith.constant 0 : index
    %602 = vector.load %arg8[%c0_181, %c0_182] : memref<64x1xf32, #tpu.memory_space<vmem>>, vector<32x1xf32>
    %cst_183 = arith.constant dense<0.000000e+00> : vector<64x1xf32>
    %603 = tpu.matmul %601, %602, %cst_183 {dimension_numbers = #tpu.dot_dimension_numbers<[1], [0], [0], [1], [0, 0, 1, 1], [], []>} : vector<64x32xf32>, vector<32x1xf32>, vector<64x1xf32> -> vector<64x1xf32>
    %604 = vector.shape_cast %600 : vector<8x8x32xf32> to vector<64x32xf32>
    %c32 = arith.constant 32 : index
    %c0_184 = arith.constant 0 : index
    %605 = vector.load %arg8[%c32, %c0_184] : memref<64x1xf32, #tpu.memory_space<vmem>>, vector<32x1xf32>
    %cst_185 = arith.constant dense<0.000000e+00> : vector<64x1xf32>
    %606 = tpu.matmul %604, %605, %cst_185 {dimension_numbers = #tpu.dot_dimension_numbers<[1], [0], [0], [1], [0, 0, 1, 1], [], []>} : vector<64x32xf32>, vector<32x1xf32>, vector<64x1xf32> -> vector<64x1xf32>
    %607 = arith.addf %603, %606 : vector<64x1xf32>
    %c0_186 = arith.constant 0 : index
    %c0_187 = arith.constant 0 : index
    %608 = vector.load %arg9[%c0_186, %c0_187] : memref<1x1xf32, #tpu.memory_space<vmem>>, vector<1x1xf32>
    %609 = vector.broadcast %608 : vector<1x1xf32> to vector<64x1xf32>
    %610 = arith.addf %607, %609 : vector<64x1xf32>
    %611 = vector.shape_cast %610 : vector<64x1xf32> to vector<8x8x1xf32>
    %cst_188 = arith.constant dense<0xFF800000> : vector<8x1xf32>
    %612 = vector.multi_reduction <maximumf>, %611, %cst_188 [0] : vector<8x8x1xf32> to vector<8x1xf32>
    %613 = vector.shape_cast %612 : vector<8x1xf32> to vector<1x8x1xf32>
    %614 = vector.broadcast %613 : vector<1x8x1xf32> to vector<8x8x1xf32>
    %615 = arith.subf %611, %614 : vector<8x8x1xf32>
    %616 = math.exp %615 : vector<8x8x1xf32>
    %cst_189 = arith.constant dense<0.000000e+00> : vector<8x1xf32>
    %617 = vector.multi_reduction <add>, %616, %cst_189 [0] : vector<8x8x1xf32> to vector<8x1xf32>
    %618 = vector.shape_cast %617 : vector<8x1xf32> to vector<1x8x1xf32>
    %619 = tpu.reciprocal %618 {approx = true} : vector<1x8x1xf32> -> vector<1x8x1xf32>
    %620 = vector.broadcast %619 : vector<1x8x1xf32> to vector<8x8x1xf32>
    %621 = arith.mulf %616, %620 : vector<8x8x1xf32>
    %622 = vector.broadcast %621 : vector<8x8x1xf32> to vector<8x8x32xf32>
    %623 = arith.mulf %599, %622 : vector<8x8x32xf32>
    %cst_190 = arith.constant dense<0.000000e+00> : vector<8x32xf32>
    %624 = vector.multi_reduction <add>, %623, %cst_190 [0] : vector<8x8x32xf32> to vector<8x32xf32>
    %c0_191 = arith.constant 0 : index
    %c0_192 = arith.constant 0 : index
    %625 = vector.load %arg10[%c0_191, %c0_192] : memref<8x64xf32, #tpu.memory_space<vmem>>, vector<8x32xf32>
    tpu.vector_store %arg10[%c0_191, %c0_192], %624 {strides = array<i32>} : memref<8x64xf32, #tpu.memory_space<vmem>>, vector<8x32xf32>,
    %626 = vector.broadcast %621 : vector<8x8x1xf32> to vector<8x8x32xf32>
    %627 = arith.mulf %600, %626 : vector<8x8x32xf32>
    %cst_193 = arith.constant dense<0.000000e+00> : vector<8x32xf32>
    %628 = vector.multi_reduction <add>, %627, %cst_193 [0] : vector<8x8x32xf32> to vector<8x32xf32>
    %c0_194 = arith.constant 0 : index
    %c32_195 = arith.constant 32 : index
    %629 = vector.load %arg10[%c0_194, %c32_195] : memref<8x64xf32, #tpu.memory_space<vmem>>, vector<8x32xf32>
    tpu.vector_store %arg10[%c0_194, %c32_195], %628 {strides = array<i32>} : memref<8x64xf32, #tpu.memory_space<vmem>>, vector<8x32xf32>,
    return
  }
  func.func @transform_0(%arg0: i32) -> (i32, i32, i32) {
    %c0_i32 = arith.constant 0 : i32
    %c0_i32_0 = arith.constant 0 : i32
    %c0_i32_1 = arith.constant 0 : i32
    return %c0_i32, %arg0, %c0_i32_0 : i32, i32, i32
  }
  func.func @transform_1(%arg0: i32) -> (i32, i32, i32) {
    %c0_i32 = arith.constant 0 : i32
    %c0_i32_0 = arith.constant 0 : i32
    %c0_i32_1 = arith.constant 0 : i32
    %c0_i32_2 = arith.constant 0 : i32
    return %c0_i32, %c0_i32_0, %c0_i32_1 : i32, i32, i32
  }
  func.func @transform_2(%arg0: i32) -> (i32, i32) {
    %c0_i32 = arith.constant 0 : i32
    %c0_i32_0 = arith.constant 0 : i32
    %c0_i32_1 = arith.constant 0 : i32
    return %c0_i32, %c0_i32_0 : i32, i32
  }
  func.func @transform_3(%arg0: i32) -> (i32, i32) {
    %c0_i32 = arith.constant 0 : i32
    %c0_i32_0 = arith.constant 0 : i32
    %c0_i32_1 = arith.constant 0 : i32
    return %c0_i32, %c0_i32_0 : i32, i32
  }
  func.func @transform_4(%arg0: i32) -> (i32, i32) {
    %c0_i32 = arith.constant 0 : i32
    %c0_i32_0 = arith.constant 0 : i32
    %c0_i32_1 = arith.constant 0 : i32
    return %c0_i32, %c0_i32_0 : i32, i32
  }
  func.func @transform_5(%arg0: i32) -> (i32, i32) {
    %c0_i32 = arith.constant 0 : i32
    %c0_i32_0 = arith.constant 0 : i32
    %c0_i32_1 = arith.constant 0 : i32
    return %c0_i32, %c0_i32_0 : i32, i32
  }
  func.func @transform_6(%arg0: i32) -> (i32, i32) {
    %c0_i32 = arith.constant 0 : i32
    %c0_i32_0 = arith.constant 0 : i32
    %c0_i32_1 = arith.constant 0 : i32
    return %c0_i32, %c0_i32_0 : i32, i32
  }
  func.func @transform_7(%arg0: i32) -> (i32, i32) {
    %c0_i32 = arith.constant 0 : i32
    %c0_i32_0 = arith.constant 0 : i32
    %c0_i32_1 = arith.constant 0 : i32
    return %c0_i32, %c0_i32_0 : i32, i32
  }
  func.func @transform_8(%arg0: i32) -> (i32, i32) {
    %c0_i32 = arith.constant 0 : i32
    %c0_i32_0 = arith.constant 0 : i32
    %c0_i32_1 = arith.constant 0 : i32
    return %c0_i32, %c0_i32_0 : i32, i32
  }
  func.func @transform_9(%arg0: i32) -> (i32, i32) {
    %c0_i32 = arith.constant 0 : i32
    %c0_i32_0 = arith.constant 0 : i32
    return %arg0, %c0_i32 : i32, i32
  }
}

</mosaic_0001>

<llo_original>
// kernel: model_forward.1
$region0: #{model_forward.1}
  #allocation0 [shape = 'u32[]', space=smem, size = 0x4, offset = 0x4, fixed_abs, tag = 'smem constant byte address 0x4 - core index']
  #allocation1 [shape = 'u32[144,128]{1,0:T(1,128)}', space=vmem, size = 0x12000, scoped, tag = 'internal scratch']
  #allocation2 [shape = 'f32[8,8,128]{2,1,0:T(8,128)}', space=vmem, size = 0x8000, scoped, tag = 'scratch operand']
  #allocation3 [shape = 'f32[8,8,128]{2,1,0:T(8,128)}', space=vmem, size = 0x8000, scoped, tag = 'scratch operand']
  #allocation4 [shape = 'f32[8,8,32]{2,1,0:T(8,128)}', space=vmem, size = 0x8000, scoped, tag = 'scratch operand']
  #allocation5 [shape = 'f32[8,8,32]{2,1,0:T(8,128)}', space=vmem, size = 0x8000, scoped, tag = 'scratch operand']
  #allocation6 [shape = 'f32[1,1]{1,0:T(1,128)S(1)}', space=vmem, size = 0x200, scoped, tag = 'scoped memory for model_forward.1']
  %s0 = inlined_call_operand.vmem [shape: f32[8,8,4], index: 0, kind: input, shape index: {}]
  %s1 = inlined_call_operand.vmem [shape: f32[3,4,64], index: 1, kind: input, shape index: {}]
  %s2 = inlined_call_operand.hbm [shape: f32[1,64], index: 2, kind: input, shape index: {}]
  %s3 = inlined_call_operand.vmem [shape: f32[64,256], index: 3, kind: input, shape index: {}]
  %s4 = inlined_call_operand.vmem [shape: f32[1,256], index: 4, kind: input, shape index: {}]
  %s5 = inlined_call_operand.vmem [shape: f32[32,128], index: 5, kind: input, shape index: {}]
  %s6 = inlined_call_operand.vmem [shape: f32[32,128], index: 6, kind: input, shape index: {}]
  %s7 = inlined_call_operand.vmem [shape: f32[64,1], index: 7, kind: input, shape index: {}]
  %s8 = inlined_call_operand.<no memory space> [shape: f32[1,1], index: 8, kind: input, shape index: {}]
  %s9 = inlined_call_operand.vmem [shape: f32[8,64], index: 9, kind: output, shape index: {}]
  %s10 = sld [smem:[#allocation0]]
  $region50: #{model_forward.1} parent=0
    _
  %s12 = ssub.s32 1, %s10
  %s13 = scalar_select 0, %s12, %s10
  %v14 = vstv %s8
  %15 = vst [vmem:[#allocation6] sm:$0x1] %v14
  $region1: #{model_forward.1} parent=0
    #allocation7 [shape = 'u8[512]{0}', space=vmem, size = 0x400, scoped, tag = 'input window, operand 2, single buffered']
    #allocation8 [shape = 's32[1]{0}', space=sflag, size = 0x4, scoped, tag = 'scoped memory for model_forward.1']
    %16 = vsyncpa [#allocation8], 0
    // Predicated region
    $region2: #{model_forward.1} parent=1 // pred_check
      _
    $region3: #{model_forward.1} parent=1 // pred_check_branch
      %18 = sbr.rel (0) target = $region5
    $region4: #{model_forward.1} parent=1 // pred_region
      _
    $region5: #{model_forward.1} parent=1 // pred_fallthru
      _
    // Predicated region
    $region6: #{model_forward.1} parent=1 // pred_check
      _
    $region7: #{model_forward.1} parent=1 // pred_check_branch
      %20 = sbr.rel (0) target = $region9
    $region8: #{model_forward.1} parent=1 // pred_region
      _
    $region9: #{model_forward.1} parent=1 // pred_fallthru
      _
    // Predicated region
    $region10: #{model_forward.1} parent=1 // pred_check
      _
    $region11: #{model_forward.1} parent=1 // pred_check_branch
      %22 = sbr.rel (0) target = $region13
    $region12: #{model_forward.1} parent=1 // pred_region
      %s24 = ssub.s32 16, 16
      %25 = vsyncadd [#allocation8], %s24
      %s27 = sshll.u32 [#allocation7], 4
      %s28 = int_to_ptr.vmem [resolvable:$true] %s27
      %30 = dma.hbm_to_vmem [thread:$0]  %s2, 16, %s28, [#allocation8]
    $region13: #{model_forward.1} parent=1 // pred_fallthru
      _
    // Predicated region
    $region14: #{model_forward.1} parent=1 // pred_check
      _
    $region15: #{model_forward.1} parent=1 // pred_check_branch
      %32 = sbr.rel (0) target = $region17
    $region16: #{model_forward.1} parent=1 // pred_region
      _
    $region17: #{model_forward.1} parent=1 // pred_fallthru
      _
    // Predicated region
    $region18: #{model_forward.1} parent=1 // pred_check
      _
    $region19: #{model_forward.1} parent=1 // pred_check_branch
      %34 = sbr.rel (0) target = $region21
    $region20: #{model_forward.1} parent=1 // pred_region
      _
    $region21: #{model_forward.1} parent=1 // pred_fallthru
      _
    // Predicated region
    $region22: #{model_forward.1} parent=1 // pred_check
      _
    $region23: #{model_forward.1} parent=1 // pred_check_branch
      %36 = sbr.rel (0) target = $region25
    $region24: #{model_forward.1} parent=1 // pred_region
      _
    $region25: #{model_forward.1} parent=1 // pred_fallthru
      _
    // Predicated region
    $region26: #{model_forward.1} parent=1 // pred_check
      _
    $region27: #{model_forward.1} parent=1 // pred_check_branch
      %38 = sbr.rel (0) target = $region29
    $region28: #{model_forward.1} parent=1 // pred_region
      _
    $region29: #{model_forward.1} parent=1 // pred_fallthru
      _
    // Predicated region
    $region30: #{model_forward.1} parent=1 // pred_check
      _
    $region31: #{model_forward.1} parent=1 // pred_check_branch
      %40 = sbr.rel (0) target = $region33
    $region32: #{model_forward.1} parent=1 // pred_region
      _
    $region33: #{model_forward.1} parent=1 // pred_fallthru
      _
    // Predicated region
    $region34: #{model_forward.1} parent=1 // pred_check
      _
    $region35: #{model_forward.1} parent=1 // pred_check_branch
      %42 = sbr.rel (0) target = $region37
    $region36: #{model_forward.1} parent=1 // pred_region
      _
    $region37: #{model_forward.1} parent=1 // pred_fallthru
      _
    // Predicated region
    $region38: #{model_forward.1} parent=1 // pred_check
      _
    $region39: #{model_forward.1} parent=1 // pred_check_branch
      %44 = sbr.rel (0) target = $region41
    $region40: #{model_forward.1} parent=1 // pred_region
      %45 = dma.done [#allocation8], 16
    $region41: #{model_forward.1} parent=1 // pred_fallthru
      _
    %v46 = vld [vmem:[%s0] sm:$0xff]
    %v47 = vld [vmem:[%s0 + $0x8] sm:$0xff]
    %v48 = vld [vmem:[%s0 + $0x10] sm:$0xff]
    %v49 = vld [vmem:[%s0 + $0x18] sm:$0xff]
    %v50 = vld [vmem:[%s0 + $0x20] sm:$0xff]
    %v51 = vld [vmem:[%s0 + $0x28] sm:$0xff]
    %v52 = vld [vmem:[%s0 + $0x30] sm:$0xff]
    %v53 = vld [vmem:[%s0 + $0x38] sm:$0xff]
    %v54 = vld [vmem:[%s1] sm:$0xf]
    %s55 = scalar_lea.vmem %s1, 4
    %v56 = vld [vmem:[%s55] sm:$0xf]
    %vm57 = vcmask 31744
    %v59 = vsel %vm57, %v46, 0
    %v62 = vsel %vm57, %v47, 0
    %v65 = vsel %vm57, %v48, 0
    %v68 = vsel %vm57, %v49, 0
    %v71 = vsel %vm57, %v50, 0
    %v74 = vsel %vm57, %v51, 0
    %v77 = vsel %vm57, %v52, 0
    %v80 = vsel %vm57, %v53, 0
    %vm82 = vcmask 1043456
    %v84 = vsel %vm82, %v56, 0
    %86 = vmatprep.subr.mxu0 0.0
    %87 = vmatpush1.msra.mxu0 %v84
    %88 = vmatprep.subr.mxu0 0.0
    %89 = vmatpush1.msra.mxu0 0.0
    %90 = vmatprep.subr.mxu0 0.0
    %91 = vmatpush1.msra.mxu0 0.0
    %92 = vmatprep.subr.mxu0 0.0
    %93 = vmatpush1.msra.mxu0 0.0
    %94 = vmatprep.subr.mxu0 0.0
    %95 = vmatpush1.msra.mxu0 0.0
    %96 = vmatprep.subr.mxu0 0.0
    %97 = vmatpush1.msra.mxu0 0.0
    %98 = vmatprep.subr.mxu0 0.0
    %99 = vmatpush1.msra.mxu0 0.0
    %100 = vmatprep.subr.mxu0 0.0
    %101 = vmatpush1.msra.mxu0 0.0
    %102 = vmatprep.subr.mxu0 0.0
    %103 = vmatpush1.msra.mxu0 0.0
    %104 = vmatprep.subr.mxu0 0.0
    %105 = vmatpush1.msra.mxu0 0.0
    %106 = vmatprep.subr.mxu0 0.0
    %107 = vmatpush1.msra.mxu0 0.0
    %108 = vmatprep.subr.mxu0 0.0
    %109 = vmatpush1.msra.mxu0 0.0
    %110 = vmatprep.subr.mxu0 0.0
    %111 = vmatpush1.msra.mxu0 0.0
    %112 = vmatprep.subr.mxu0 0.0
    %113 = vmatpush1.msra.mxu0 0.0
    %114 = vmatprep.subr.mxu0 0.0
    %115 = vmatpush1.msra.mxu0 0.0
    %116 = vmatprep.subr.mxu0 0.0
    %117 = vmatpush1.msra.mxu0 0.0
    %118 = vmatprep.subr.mxu0 0.0
    %119 = vmatpush1.msra.mxu0 0.0
    %120 = vmatprep.subr.mxu0 0.0
    %121 = vmatpush1.msra.mxu0 0.0
    %122 = vmatprep.subr.mxu0 0.0
    %123 = vmatpush1.msra.mxu0 0.0
    %124 = vmatprep.subr.mxu0 0.0
    %125 = vmatpush1.msra.mxu0 0.0
    %126 = vmatprep.subr.mxu0 0.0
    %127 = vmatpush1.msra.mxu0 0.0
    %128 = vmatprep.subr.mxu0 0.0
    %129 = vmatpush1.msra.mxu0 0.0
    %130 = vmatprep.subr.mxu0 0.0
    %131 = vmatpush1.msra.mxu0 0.0
    %132 = vmatprep.subr.mxu0 0.0
    %133 = vmatpush1.msra.mxu0 0.0
    %134 = vmatprep.subr.mxu0 0.0
    %135 = vmatpush1.msra.mxu0 0.0
    %136 = vmatprep.subr.mxu0 0.0
    %137 = vmatpush1.msra.mxu0 0.0
    %138 = vmatprep.subr.mxu0 0.0
    %139 = vmatpush1.msra.mxu0 0.0
    %140 = vmatprep.subr.mxu0 0.0
    %141 = vmatpush1.msra.mxu0 0.0
    %142 = vmatprep.subr.mxu0 0.0
    %143 = vmatpush1.msra.mxu0 0.0
    %144 = vmatprep.subr.mxu0 0.0
    %145 = vmatpush1.msra.mxu0 0.0
    %146 = vmatprep.subr.mxu0 0.0
    %147 = vmatpush1.msra.mxu0 0.0
    %148 = vmatprep.subr.mxu0 0.0
    %149 = vmatpush1.msra.mxu0 0.0
    %150 = vmatprep.mubr.f32.mxu0 0.0
    %151 = vmatmul.mubr.f32.gmra.mrb[0].mxu0 %v59
    %v152 = vpop.f32.mrb[0].mxu0
    %v153 = vadd.f32 0.0, %v152
    %v154 = vpop.f32.mrb[0].mxu0
    %155 = vmatprep.mubr.f32.mxu0 0.0
    %156 = vmatmul.mubr.f32.gmra.mrb[0].mxu0 %v62
    %v157 = vpop.f32.mrb[0].mxu0
    %v158 = vadd.f32 0.0, %v157
    %v159 = vpop.f32.mrb[0].mxu0
    %160 = vmatprep.mubr.f32.mxu0 0.0
    %161 = vmatmul.mubr.f32.gmra.mrb[0].mxu0 %v65
    %v162 = vpop.f32.mrb[0].mxu0
    %v163 = vadd.f32 0.0, %v162
    %v164 = vpop.f32.mrb[0].mxu0
    %165 = vmatprep.mubr.f32.mxu0 0.0
    %166 = vmatmul.mubr.f32.gmra.mrb[0].mxu0 %v68
    %v167 = vpop.f32.mrb[0].mxu0
    %v168 = vadd.f32 0.0, %v167
    %v169 = vpop.f32.mrb[0].mxu0
    %170 = vmatprep.mubr.f32.mxu0 0.0
    %171 = vmatmul.mubr.f32.gmra.mrb[0].mxu0 %v71
    %v172 = vpop.f32.mrb[0].mxu0
    %v173 = vadd.f32 0.0, %v172
    %v174 = vpop.f32.mrb[0].mxu0
    %175 = vmatprep.mubr.f32.mxu0 0.0
    %176 = vmatmul.mubr.f32.gmra.mrb[0].mxu0 %v74
    %v177 = vpop.f32.mrb[0].mxu0
    %v178 = vadd.f32 0.0, %v177
    %v179 = vpop.f32.mrb[0].mxu0
    %180 = vmatprep.mubr.f32.mxu0 0.0
    %181 = vmatmul.mubr.f32.gmra.mrb[0].mxu0 %v77
    %v182 = vpop.f32.mrb[0].mxu0
    %v183 = vadd.f32 0.0, %v182
    %v184 = vpop.f32.mrb[0].mxu0
    %185 = vmatprep.mubr.f32.mxu0 0.0
    %186 = vmatmul.mubr.f32.gmra.mrb[0].mxu0 %v80
    %v187 = vpop.f32.mrb[0].mxu0
    %v188 = vadd.f32 0.0, %v187
    %v189 = vpop.f32.mrb[0].mxu0
    %190 = vdwg.mxu0
    %v192 = vsel %vm57, 0.0, 0
    %v195 = vsel %vm82, %v54, 0
    %197 = vmatprep.subr.mxu0 0.0
    %198 = vmatpush1.msra.mxu0 %v195
    %199 = vmatprep.subr.mxu0 0.0
    %200 = vmatpush1.msra.mxu0 0.0
    %201 = vmatprep.subr.mxu0 0.0
    %202 = vmatpush1.msra.mxu0 0.0
    %203 = vmatprep.subr.mxu0 0.0
    %204 = vmatpush1.msra.mxu0 0.0
    %205 = vmatprep.subr.mxu0 0.0
    %206 = vmatpush1.msra.mxu0 0.0
    %207 = vmatprep.subr.mxu0 0.0
    %208 = vmatpush1.msra.mxu0 0.0
    %209 = vmatprep.subr.mxu0 0.0
    %210 = vmatpush1.msra.mxu0 0.0
    %211 = vmatprep.subr.mxu0 0.0
    %212 = vmatpush1.msra.mxu0 0.0
    %213 = vmatprep.subr.mxu0 0.0
    %214 = vmatpush1.msra.mxu0 0.0
    %215 = vmatprep.subr.mxu0 0.0
    %216 = vmatpush1.msra.mxu0 0.0
    %217 = vmatprep.subr.mxu0 0.0
    %218 = vmatpush1.msra.mxu0 0.0
    %219 = vmatprep.subr.mxu0 0.0
    %220 = vmatpush1.msra.mxu0 0.0
    %221 = vmatprep.subr.mxu0 0.0
    %222 = vmatpush1.msra.mxu0 0.0
    %223 = vmatprep.subr.mxu0 0.0
    %224 = vmatpush1.msra.mxu0 0.0
    %225 = vmatprep.subr.mxu0 0.0
    %226 = vmatpush1.msra.mxu0 0.0
    %227 = vmatprep.subr.mxu0 0.0
    %228 = vmatpush1.msra.mxu0 0.0
    %229 = vmatprep.subr.mxu0 0.0
    %230 = vmatpush1.msra.mxu0 0.0
    %231 = vmatprep.subr.mxu0 0.0
    %232 = vmatpush1.msra.mxu0 0.0
    %233 = vmatprep.subr.mxu0 0.0
    %234 = vmatpush1.msra.mxu0 0.0
    %235 = vmatprep.subr.mxu0 0.0
    %236 = vmatpush1.msra.mxu0 0.0
    %237 = vmatprep.subr.mxu0 0.0
    %238 = vmatpush1.msra.mxu0 0.0
    %239 = vmatprep.subr.mxu0 0.0
    %240 = vmatpush1.msra.mxu0 0.0
    %241 = vmatprep.subr.mxu0 0.0
    %242 = vmatpush1.msra.mxu0 0.0
    %243 = vmatprep.subr.mxu0 0.0
    %244 = vmatpush1.msra.mxu0 0.0
    %245 = vmatprep.subr.mxu0 0.0
    %246 = vmatpush1.msra.mxu0 0.0
    %247 = vmatprep.subr.mxu0 0.0
    %248 = vmatpush1.msra.mxu0 0.0
    %249 = vmatprep.subr.mxu0 0.0
    %250 = vmatpush1.msra.mxu0 0.0
    %251 = vmatprep.subr.mxu0 0.0
    %252 = vmatpush1.msra.mxu0 0.0
    %253 = vmatprep.subr.mxu0 0.0
    %254 = vmatpush1.msra.mxu0 0.0
    %255 = vmatprep.subr.mxu0 0.0
    %256 = vmatpush1.msra.mxu0 0.0
    %257 = vmatprep.subr.mxu0 0.0
    %258 = vmatpush1.msra.mxu0 0.0
    %259 = vmatprep.subr.mxu0 0.0
    %260 = vmatpush1.msra.mxu0 0.0
    %261 = vmatprep.mubr.f32.mxu0 0.0
    %262 = vmatmul.mubr.f32.gmra.mrb[0].mxu0 %v192
    %v263 = vpop.f32.mrb[0].mxu0
    %v264 = vadd.f32 %v153, %v263
    %v265 = vpop.f32.mrb[0].mxu0
    %266 = vmatprep.mubr.f32.mxu0 0.0
    %267 = vmatmul.mubr.f32.gmra.mrb[0].mxu0 %v59
    %v268 = vpop.f32.mrb[0].mxu0
    %v269 = vadd.f32 %v158, %v268
    %v270 = vpop.f32.mrb[0].mxu0
    %271 = vmatprep.mubr.f32.mxu0 0.0
    %272 = vmatmul.mubr.f32.gmra.mrb[0].mxu0 %v62
    %v273 = vpop.f32.mrb[0].mxu0
    %v274 = vadd.f32 %v163, %v273
    %v275 = vpop.f32.mrb[0].mxu0
    %276 = vmatprep.mubr.f32.mxu0 0.0
    %277 = vmatmul.mubr.f32.gmra.mrb[0].mxu0 %v65
    %v278 = vpop.f32.mrb[0].mxu0
    %v279 = vadd.f32 %v168, %v278
    %v280 = vpop.f32.mrb[0].mxu0
    %281 = vmatprep.mubr.f32.mxu0 0.0
    %282 = vmatmul.mubr.f32.gmra.mrb[0].mxu0 %v68
    %v283 = vpop.f32.mrb[0].mxu0
    %v284 = vadd.f32 %v173, %v283
    %v285 = vpop.f32.mrb[0].mxu0
    %286 = vmatprep.mubr.f32.mxu0 0.0
    %287 = vmatmul.mubr.f32.gmra.mrb[0].mxu0 %v71
    %v288 = vpop.f32.mrb[0].mxu0
    %v289 = vadd.f32 %v178, %v288
    %v290 = vpop.f32.mrb[0].mxu0
    %291 = vmatprep.mubr.f32.mxu0 0.0
    %292 = vmatmul.mubr.f32.gmra.mrb[0].mxu0 %v74
    %v293 = vpop.f32.mrb[0].mxu0
    %v294 = vadd.f32 %v183, %v293
    %v295 = vpop.f32.mrb[0].mxu0
    %296 = vmatprep.mubr.f32.mxu0 0.0
    %297 = vmatmul.mubr.f32.gmra.mrb[0].mxu0 %v77
    %v298 = vpop.f32.mrb[0].mxu0
    %v299 = vadd.f32 %v188, %v298
    %v300 = vpop.f32.mrb[0].mxu0
    %301 = vdwg.mxu0
    %s302 = scalar_lea.vmem %s1, 8
    %v303 = vld [vmem:[%s302] sm:$0xf]
    %v305 = vsel %vm82, %v303, 0
    %307 = vmatprep.subr.mxu0 0.0
    %308 = vmatpush1.msra.mxu0 %v305
    %309 = vmatprep.subr.mxu0 0.0
    %310 = vmatpush1.msra.mxu0 0.0
    %311 = vmatprep.subr.mxu0 0.0
    %312 = vmatpush1.msra.mxu0 0.0
    %313 = vmatprep.subr.mxu0 0.0
    %314 = vmatpush1.msra.mxu0 0.0
    %315 = vmatprep.subr.mxu0 0.0
    %316 = vmatpush1.msra.mxu0 0.0
    %317 = vmatprep.subr.mxu0 0.0
    %318 = vmatpush1.msra.mxu0 0.0
    %319 = vmatprep.subr.mxu0 0.0
    %320 = vmatpush1.msra.mxu0 0.0
    %321 = vmatprep.subr.mxu0 0.0
    %322 = vmatpush1.msra.mxu0 0.0
    %323 = vmatprep.subr.mxu0 0.0
    %324 = vmatpush1.msra.mxu0 0.0
    %325 = vmatprep.subr.mxu0 0.0
    %326 = vmatpush1.msra.mxu0 0.0
    %327 = vmatprep.subr.mxu0 0.0
    %328 = vmatpush1.msra.mxu0 0.0
    %329 = vmatprep.subr.mxu0 0.0
    %330 = vmatpush1.msra.mxu0 0.0
    %331 = vmatprep.subr.mxu0 0.0
    %332 = vmatpush1.msra.mxu0 0.0
    %333 = vmatprep.subr.mxu0 0.0
    %334 = vmatpush1.msra.mxu0 0.0
    %335 = vmatprep.subr.mxu0 0.0
    %336 = vmatpush1.msra.mxu0 0.0
    %337 = vmatprep.subr.mxu0 0.0
    %338 = vmatpush1.msra.mxu0 0.0
    %339 = vmatprep.subr.mxu0 0.0
    %340 = vmatpush1.msra.mxu0 0.0
    %341 = vmatprep.subr.mxu0 0.0
    %342 = vmatpush1.msra.mxu0 0.0
    %343 = vmatprep.subr.mxu0 0.0
    %344 = vmatpush1.msra.mxu0 0.0
    %345 = vmatprep.subr.mxu0 0.0
    %346 = vmatpush1.msra.mxu0 0.0
    %347 = vmatprep.subr.mxu0 0.0
    %348 = vmatpush1.msra.mxu0 0.0
    %349 = vmatprep.subr.mxu0 0.0
    %350 = vmatpush1.msra.mxu0 0.0
    %351 = vmatprep.subr.mxu0 0.0
    %352 = vmatpush1.msra.mxu0 0.0
    %353 = vmatprep.subr.mxu0 0.0
    %354 = vmatpush1.msra.mxu0 0.0
    %355 = vmatprep.subr.mxu0 0.0
    %356 = vmatpush1.msra.mxu0 0.0
    %357 = vmatprep.subr.mxu0 0.0
    %358 = vmatpush1.msra.mxu0 0.0
    %359 = vmatprep.subr.mxu0 0.0
    %360 = vmatpush1.msra.mxu0 0.0
    %361 = vmatprep.subr.mxu0 0.0
    %362 = vmatpush1.msra.mxu0 0.0
    %363 = vmatprep.subr.mxu0 0.0
    %364 = vmatpush1.msra.mxu0 0.0
    %365 = vmatprep.subr.mxu0 0.0
    %366 = vmatpush1.msra.mxu0 0.0
    %367 = vmatprep.subr.mxu0 0.0
    %368 = vmatpush1.msra.mxu0 0.0
    %369 = vmatprep.subr.mxu0 0.0
    %370 = vmatpush1.msra.mxu0 0.0
    %371 = vmatprep.mubr.f32.mxu0 0.0
    %372 = vmatmul.mubr.f32.gmra.mrb[0].mxu0 %v62
    %v373 = vpop.f32.mrb[0].mxu0
    %v374 = vadd.f32 0.0, %v373
    %v375 = vpop.f32.mrb[0].mxu0
    %376 = vmatprep.mubr.f32.mxu0 0.0
    %377 = vmatmul.mubr.f32.gmra.mrb[0].mxu0 %v65
    %v378 = vpop.f32.mrb[0].mxu0
    %v379 = vadd.f32 0.0, %v378
    %v380 = vpop.f32.mrb[0].mxu0
    %381 = vmatprep.mubr.f32.mxu0 0.0
    %382 = vmatmul.mubr.f32.gmra.mrb[0].mxu0 %v68
    %v383 = vpop.f32.mrb[0].mxu0
    %v384 = vadd.f32 0.0, %v383
    %v385 = vpop.f32.mrb[0].mxu0
    %386 = vmatprep.mubr.f32.mxu0 0.0
    %387 = vmatmul.mubr.f32.gmra.mrb[0].mxu0 %v71
    %v388 = vpop.f32.mrb[0].mxu0
    %v389 = vadd.f32 0.0, %v388
    %v390 = vpop.f32.mrb[0].mxu0
    %391 = vmatprep.mubr.f32.mxu0 0.0
    %392 = vmatmul.mubr.f32.gmra.mrb[0].mxu0 %v74
    %v393 = vpop.f32.mrb[0].mxu0
    %v394 = vadd.f32 0.0, %v393
    %v395 = vpop.f32.mrb[0].mxu0
    %396 = vmatprep.mubr.f32.mxu0 0.0
    %397 = vmatmul.mubr.f32.gmra.mrb[0].mxu0 %v77
    %v398 = vpop.f32.mrb[0].mxu0
    %v399 = vadd.f32 0.0, %v398
    %v400 = vpop.f32.mrb[0].mxu0
    %401 = vmatprep.mubr.f32.mxu0 0.0
    %402 = vmatmul.mubr.f32.gmra.mrb[0].mxu0 %v80
    %v403 = vpop.f32.mrb[0].mxu0
    %v404 = vadd.f32 0.0, %v403
    %v405 = vpop.f32.mrb[0].mxu0
    %406 = vmatprep.mubr.f32.mxu0 0.0
    %407 = vmatmul.mubr.f32.gmra.mrb[0].mxu0 %v192
    %v408 = vpop.f32.mrb[0].mxu0
    %v409 = vadd.f32 0.0, %v408
    %v410 = vpop.f32.mrb[0].mxu0
    %411 = vdwg.mxu0
    %v412 = vadd.f32 %v264, %v374
    %v413 = vadd.f32 %v269, %v379
    %v414 = vadd.f32 %v274, %v384
    %v415 = vadd.f32 %v279, %v389
    %v416 = vadd.f32 %v284, %v394
    %v417 = vadd.f32 %v289, %v399
    %v418 = vadd.f32 %v294, %v404
    %v419 = vadd.f32 %v299, %v409
    %v420 = vld [vmem:[#allocation7] sm:$0x1]
    %v422 = vlaneseq
    %v423 = vshrl.u32 %v422, 7
    %v424 = vsub.s32 0, %v423
    %v425 = vrot.slane %v420, %v424
    %v427 = vadd.f32 %v412, %v425
    %v428 = vadd.f32 %v413, %v425
    %v429 = vadd.f32 %v414, %v425
    %v430 = vadd.f32 %v415, %v425
    %v431 = vadd.f32 %v416, %v425
    %v432 = vadd.f32 %v417, %v425
    %v433 = vadd.f32 %v418, %v425
    %v434 = vadd.f32 %v419, %v425
    %v435 = vmax.f32 %v427, 0.0
    %v436 = vmax.f32 %v428, 0.0
    %v437 = vmax.f32 %v429, 0.0
    %v438 = vmax.f32 %v430, 0.0
    %v439 = vmax.f32 %v431, 0.0
    %v440 = vmax.f32 %v432, 0.0
    %v441 = vmax.f32 %v433, 0.0
    %v442 = vmax.f32 %v434, 0.0
    %v443 = vld [vmem:[%s3] sm:$0xff]
    %v444 = vld [vmem:[%s3 + $0x8] sm:$0xff]
    %v445 = vld [vmem:[%s3 + $0x10] sm:$0xff]
    %v446 = vld [vmem:[%s3 + $0x18] sm:$0xff]
    %v447 = vld [vmem:[%s3 + $0x20] sm:$0xff]
    %v448 = vld [vmem:[%s3 + $0x28] sm:$0xff]
    %v449 = vld [vmem:[%s3 + $0x30] sm:$0xff]
    %v450 = vld [vmem:[%s3 + $0x38] sm:$0xff]
    %v451 = vld [vmem:[%s3 + $0x40] sm:$0xff]
    %v452 = vld [vmem:[%s3 + $0x48] sm:$0xff]
    %v453 = vld [vmem:[%s3 + $0x50] sm:$0xff]
    %v454 = vld [vmem:[%s3 + $0x58] sm:$0xff]
    %v455 = vld [vmem:[%s3 + $0x60] sm:$0xff]
    %v456 = vld [vmem:[%s3 + $0x68] sm:$0xff]
    %v457 = vld [vmem:[%s3 + $0x70] sm:$0xff]
    %v458 = vld [vmem:[%s3 + $0x78] sm:$0xff]
    %v459 = vld [vmem:[%s4] sm:$0x3]
    %v461 = vlaneseq
    %v462 = vshrl.u32 %v461, 7
    %v463 = vsub.s32 0, %v462
    %v464 = vrot.slane %v459, %v463
    %v465 = vlaneseq
    %v466 = vshrl.u32 %v465, 7
    %v467 = vsub.s32 1, %v466
    %v468 = vrot.slane %v459, %v467
    %vm471 = vcmask 523264
    %v473 = vsel %vm471, %v435, 0
    %v476 = vsel %vm471, %v436, 0
    %v479 = vsel %vm471, %v437, 0
    %v482 = vsel %vm471, %v438, 0
    %v485 = vsel %vm471, %v439, 0
    %v488 = vsel %vm471, %v440, 0
    %v491 = vsel %vm471, %v441, 0
    %v494 = vsel %vm471, %v442, 0
    %496 = vmatprep.subr.mxu0 %v444
    %497 = vmatpush1.msra.mxu0 %v443
    %498 = vmatprep.subr.mxu0 %v446
    %499 = vmatpush1.msra.mxu0 %v445
    %500 = vmatprep.subr.mxu0 %v448
    %501 = vmatpush1.msra.mxu0 %v447
    %502 = vmatprep.subr.mxu0 %v450
    %503 = vmatpush1.msra.mxu0 %v449
    %504 = vmatprep.subr.mxu0 %v452
    %505 = vmatpush1.msra.mxu0 %v451
    %506 = vmatprep.subr.mxu0 %v454
    %507 = vmatpush1.msra.mxu0 %v453
    %508 = vmatprep.subr.mxu0 %v456
    %509 = vmatpush1.msra.mxu0 %v455
    %510 = vmatprep.subr.mxu0 %v458
    %511 = vmatpush1.msra.mxu0 %v457
    %512 = vmatprep.subr.mxu0 0.0
    %513 = vmatpush1.msra.mxu0 0.0
    %514 = vmatprep.subr.mxu0 0.0
    %515 = vmatpush1.msra.mxu0 0.0
    %516 = vmatprep.subr.mxu0 0.0
    %517 = vmatpush1.msra.mxu0 0.0
    %518 = vmatprep.subr.mxu0 0.0
    %519 = vmatpush1.msra.mxu0 0.0
    %520 = vmatprep.subr.mxu0 0.0
    %521 = vmatpush1.msra.mxu0 0.0
    %522 = vmatprep.subr.mxu0 0.0
    %523 = vmatpush1.msra.mxu0 0.0
    %524 = vmatprep.subr.mxu0 0.0
    %525 = vmatpush1.msra.mxu0 0.0
    %526 = vmatprep.subr.mxu0 0.0
    %527 = vmatpush1.msra.mxu0 0.0
    %528 = vmatprep.subr.mxu0 0.0
    %529 = vmatpush1.msra.mxu0 0.0
    %530 = vmatprep.subr.mxu0 0.0
    %531 = vmatpush1.msra.mxu0 0.0
    %532 = vmatprep.subr.mxu0 0.0
    %533 = vmatpush1.msra.mxu0 0.0
    %534 = vmatprep.subr.mxu0 0.0
    %535 = vmatpush1.msra.mxu0 0.0
    %536 = vmatprep.subr.mxu0 0.0
    %537 = vmatpush1.msra.mxu0 0.0
    %538 = vmatprep.subr.mxu0 0.0
    %539 = vmatpush1.msra.mxu0 0.0
    %540 = vmatprep.subr.mxu0 0.0
    %541 = vmatpush1.msra.mxu0 0.0
    %542 = vmatprep.subr.mxu0 0.0
    %543 = vmatpush1.msra.mxu0 0.0
    %544 = vmatprep.subr.mxu0 0.0
    %545 = vmatpush1.msra.mxu0 0.0
    %546 = vmatprep.subr.mxu0 0.0
    %547 = vmatpush1.msra.mxu0 0.0
    %548 = vmatprep.subr.mxu0 0.0
    %549 = vmatpush1.msra.mxu0 0.0
    %550 = vmatprep.subr.mxu0 0.0
    %551 = vmatpush1.msra.mxu0 0.0
    %552 = vmatprep.subr.mxu0 0.0
    %553 = vmatpush1.msra.mxu0 0.0
    %554 = vmatprep.subr.mxu0 0.0
    %555 = vmatpush1.msra.mxu0 0.0
    %556 = vmatprep.subr.mxu0 0.0
    %557 = vmatpush1.msra.mxu0 0.0
    %558 = vmatprep.subr.mxu0 0.0
    %559 = vmatpush1.msra.mxu0 0.0
    %560 = vmatprep.mubr.f32.mxu0 0.0
    %561 = vmatmul.mubr.f32.gmra.mrb[0].mxu0 %v473
    %v562 = vpop.f32.mrb[0].mxu0
    %v563 = vadd.f32 %v464, %v562
    %v564 = vpop.f32.mrb[0].mxu0
    %v565 = vadd.f32 %v468, %v564
    %566 = vmatprep.mubr.f32.mxu0 0.0
    %567 = vmatmul.mubr.f32.gmra.mrb[0].mxu0 %v476
    %v568 = vpop.f32.mrb[0].mxu0
    %v569 = vadd.f32 %v464, %v568
    %v570 = vpop.f32.mrb[0].mxu0
    %v571 = vadd.f32 %v468, %v570
    %572 = vmatprep.mubr.f32.mxu0 0.0
    %573 = vmatmul.mubr.f32.gmra.mrb[0].mxu0 %v479
    %v574 = vpop.f32.mrb[0].mxu0
    %v575 = vadd.f32 %v464, %v574
    %v576 = vpop.f32.mrb[0].mxu0
    %v577 = vadd.f32 %v468, %v576
    %578 = vmatprep.mubr.f32.mxu0 0.0
    %579 = vmatmul.mubr.f32.gmra.mrb[0].mxu0 %v482
    %v580 = vpop.f32.mrb[0].mxu0
    %v581 = vadd.f32 %v464, %v580
    %v582 = vpop.f32.mrb[0].mxu0
    %v583 = vadd.f32 %v468, %v582
    %584 = vmatprep.mubr.f32.mxu0 0.0
    %585 = vmatmul.mubr.f32.gmra.mrb[0].mxu0 %v485
    %v586 = vpop.f32.mrb[0].mxu0
    %v587 = vadd.f32 %v464, %v586
    %v588 = vpop.f32.mrb[0].mxu0
    %v589 = vadd.f32 %v468, %v588
    %590 = vmatprep.mubr.f32.mxu0 0.0
    %591 = vmatmul.mubr.f32.gmra.mrb[0].mxu0 %v488
    %v592 = vpop.f32.mrb[0].mxu0
    %v593 = vadd.f32 %v464, %v592
    %v594 = vpop.f32.mrb[0].mxu0
    %v595 = vadd.f32 %v468, %v594
    %596 = vmatprep.mubr.f32.mxu0 0.0
    %597 = vmatmul.mubr.f32.gmra.mrb[0].mxu0 %v491
    %v598 = vpop.f32.mrb[0].mxu0
    %v599 = vadd.f32 %v464, %v598
    %v600 = vpop.f32.mrb[0].mxu0
    %v601 = vadd.f32 %v468, %v600
    %602 = vmatprep.mubr.f32.mxu0 0.0
    %603 = vmatmul.mubr.f32.gmra.mrb[0].mxu0 %v494
    %v604 = vpop.f32.mrb[0].mxu0
    %v605 = vadd.f32 %v464, %v604
    %v606 = vpop.f32.mrb[0].mxu0
    %v607 = vadd.f32 %v468, %v606
    %608 = vdwg.mxu0
    %609 = vst [vmem:[#allocation2] sm:$0xff] %v563
    %610 = vst [vmem:[#allocation2 + $0x8] sm:$0xff] %v569
    %611 = vst [vmem:[#allocation2 + $0x10] sm:$0xff] %v575
    %612 = vst [vmem:[#allocation2 + $0x18] sm:$0xff] %v581
    %613 = vst [vmem:[#allocation2 + $0x20] sm:$0xff] %v587
    %614 = vst [vmem:[#allocation2 + $0x28] sm:$0xff] %v593
    %615 = vst [vmem:[#allocation2 + $0x30] sm:$0xff] %v599
    %616 = vst [vmem:[#allocation2 + $0x38] sm:$0xff] %v605
    %617 = vst [vmem:[#allocation3] sm:$0xff] %v565
    %618 = vst [vmem:[#allocation3 + $0x8] sm:$0xff] %v571
    %619 = vst [vmem:[#allocation3 + $0x10] sm:$0xff] %v577
    %620 = vst [vmem:[#allocation3 + $0x18] sm:$0xff] %v583
    %621 = vst [vmem:[#allocation3 + $0x20] sm:$0xff] %v589
    %622 = vst [vmem:[#allocation3 + $0x28] sm:$0xff] %v595
    %623 = vst [vmem:[#allocation3 + $0x30] sm:$0xff] %v601
    %624 = vst [vmem:[#allocation3 + $0x38] sm:$0xff] %v607
    %v625 = vld [vmem:[%s5] sm:$0xff]
    %v626 = vld [vmem:[%s5 + $0x8] sm:$0xff]
    %v627 = vld [vmem:[%s5 + $0x10] sm:$0xff]
    %v628 = vld [vmem:[%s5 + $0x18] sm:$0xff]
    %v629 = vld [vmem:[%s6] sm:$0xff]
    %v630 = vld [vmem:[%s6 + $0x8] sm:$0xff]
    %v631 = vld [vmem:[%s6 + $0x10] sm:$0xff]
    %v632 = vld [vmem:[%s6 + $0x18] sm:$0xff]
    %v633 = vld [vmem:[#allocation2] sm:$0xff]
    %vm634 = vcmask 261120
    %v635 = vsel %vm634, 0.0, 0
    %637 = vmatprep.subr.mxu0 0.0
    %638 = vmatpush1.msra.mxu0 %v625
    %639 = vmatprep.subr.mxu0 0.0
    %640 = vmatpush1.msra.mxu0 %v626
    %641 = vmatprep.subr.mxu0 0.0
    %642 = vmatpush1.msra.mxu0 %v627
    %643 = vmatprep.subr.mxu0 0.0
    %644 = vmatpush1.msra.mxu0 %v628
    %645 = vmatprep.subr.mxu0 0.0
    %646 = vmatpush1.msra.mxu0 0.0
    %647 = vmatprep.subr.mxu0 0.0
    %648 = vmatpush1.msra.mxu0 0.0
    %649 = vmatprep.subr.mxu0 0.0
    %650 = vmatpush1.msra.mxu0 0.0
    %651 = vmatprep.subr.mxu0 0.0
    %652 = vmatpush1.msra.mxu0 0.0
    %653 = vmatprep.subr.mxu0 0.0
    %654 = vmatpush1.msra.mxu0 0.0
    %655 = vmatprep.subr.mxu0 0.0
    %656 = vmatpush1.msra.mxu0 0.0
    %657 = vmatprep.subr.mxu0 0.0
    %658 = vmatpush1.msra.mxu0 0.0
    %659 = vmatprep.subr.mxu0 0.0
    %660 = vmatpush1.msra.mxu0 0.0
    %661 = vmatprep.subr.mxu0 0.0
    %662 = vmatpush1.msra.mxu0 0.0
    %663 = vmatprep.subr.mxu0 0.0
    %664 = vmatpush1.msra.mxu0 0.0
    %665 = vmatprep.subr.mxu0 0.0
    %666 = vmatpush1.msra.mxu0 0.0
    %667 = vmatprep.subr.mxu0 0.0
    %668 = vmatpush1.msra.mxu0 0.0
    %669 = vmatprep.subr.mxu0 0.0
    %670 = vmatpush1.msra.mxu0 0.0
    %671 = vmatprep.subr.mxu0 0.0
    %672 = vmatpush1.msra.mxu0 0.0
    %673 = vmatprep.subr.mxu0 0.0
    %674 = vmatpush1.msra.mxu0 0.0
    %675 = vmatprep.subr.mxu0 0.0
    %676 = vmatpush1.msra.mxu0 0.0
    %677 = vmatprep.subr.mxu0 0.0
    %678 = vmatpush1.msra.mxu0 0.0
    %679 = vmatprep.subr.mxu0 0.0
    %680 = vmatpush1.msra.mxu0 0.0
    %681 = vmatprep.subr.mxu0 0.0
    %682 = vmatpush1.msra.mxu0 0.0
    %683 = vmatprep.subr.mxu0 0.0
    %684 = vmatpush1.msra.mxu0 0.0
    %685 = vmatprep.subr.mxu0 0.0
    %686 = vmatpush1.msra.mxu0 0.0
    %687 = vmatprep.subr.mxu0 0.0
    %688 = vmatpush1.msra.mxu0 0.0
    %689 = vmatprep.subr.mxu0 0.0
    %690 = vmatpush1.msra.mxu0 0.0
    %691 = vmatprep.subr.mxu0 0.0
    %692 = vmatpush1.msra.mxu0 0.0
    %693 = vmatprep.subr.mxu0 0.0
    %694 = vmatpush1.msra.mxu0 0.0
    %695 = vmatprep.subr.mxu0 0.0
    %696 = vmatpush1.msra.mxu0 0.0
    %697 = vmatprep.subr.mxu0 0.0
    %698 = vmatpush1.msra.mxu0 0.0
    %699 = vmatprep.subr.mxu0 0.0
    %700 = vmatpush1.msra.mxu0 0.0
    %701 = vmatprep.mubr.f32.mxu0 0.0
    %702 = vmatmul.mubr.f32.gmra.mrb[0].mxu0 %v635
    %v703 = vpop.f32.mrb[0].mxu0
    %v704 = vadd.f32 0.0, %v703
    %v705 = vpop.f32.mrb[0].mxu0
    %706 = vdwg.mxu0
    %v707 = vadd.f32 %v633, %v704
    %s708 = scalar_lea.vmem [#allocation3], 56
    %v709 = vld [vmem:[%s708] sm:$0xff]
    %710 = vmatprep.subr.mxu0 0.0
    %711 = vmatpush1.msra.mxu0 %v629
    %712 = vmatprep.subr.mxu0 0.0
    %713 = vmatpush1.msra.mxu0 %v630
    %714 = vmatprep.subr.mxu0 0.0
    %715 = vmatpush1.msra.mxu0 %v631
    %716 = vmatprep.subr.mxu0 0.0
    %717 = vmatpush1.msra.mxu0 %v632
    %718 = vmatprep.subr.mxu0 0.0
    %719 = vmatpush1.msra.mxu0 0.0
    %720 = vmatprep.subr.mxu0 0.0
    %721 = vmatpush1.msra.mxu0 0.0
    %722 = vmatprep.subr.mxu0 0.0
    %723 = vmatpush1.msra.mxu0 0.0
    %724 = vmatprep.subr.mxu0 0.0
    %725 = vmatpush1.msra.mxu0 0.0
    %726 = vmatprep.subr.mxu0 0.0
    %727 = vmatpush1.msra.mxu0 0.0
    %728 = vmatprep.subr.mxu0 0.0
    %729 = vmatpush1.msra.mxu0 0.0
    %730 = vmatprep.subr.mxu0 0.0
    %731 = vmatpush1.msra.mxu0 0.0
    %732 = vmatprep.subr.mxu0 0.0
    %733 = vmatpush1.msra.mxu0 0.0
    %734 = vmatprep.subr.mxu0 0.0
    %735 = vmatpush1.msra.mxu0 0.0
    %736 = vmatprep.subr.mxu0 0.0
    %737 = vmatpush1.msra.mxu0 0.0
    %738 = vmatprep.subr.mxu0 0.0
    %739 = vmatpush1.msra.mxu0 0.0
    %740 = vmatprep.subr.mxu0 0.0
    %741 = vmatpush1.msra.mxu0 0.0
    %742 = vmatprep.subr.mxu0 0.0
    %743 = vmatpush1.msra.mxu0 0.0
    %744 = vmatprep.subr.mxu0 0.0
    %745 = vmatpush1.msra.mxu0 0.0
    %746 = vmatprep.subr.mxu0 0.0
    %747 = vmatpush1.msra.mxu0 0.0
    %748 = vmatprep.subr.mxu0 0.0
    %749 = vmatpush1.msra.mxu0 0.0
    %750 = vmatprep.subr.mxu0 0.0
    %751 = vmatpush1.msra.mxu0 0.0
    %752 = vmatprep.subr.mxu0 0.0
    %753 = vmatpush1.msra.mxu0 0.0
    %754 = vmatprep.subr.mxu0 0.0
    %755 = vmatpush1.msra.mxu0 0.0
    %756 = vmatprep.subr.mxu0 0.0
    %757 = vmatpush1.msra.mxu0 0.0
    %758 = vmatprep.subr.mxu0 0.0
    %759 = vmatpush1.msra.mxu0 0.0
    %760 = vmatprep.subr.mxu0 0.0
    %761 = vmatpush1.msra.mxu0 0.0
    %762 = vmatprep.subr.mxu0 0.0
    %763 = vmatpush1.msra.mxu0 0.0
    %764 = vmatprep.subr.mxu0 0.0
    %765 = vmatpush1.msra.mxu0 0.0
    %766 = vmatprep.subr.mxu0 0.0
    %767 = vmatpush1.msra.mxu0 0.0
    %768 = vmatprep.subr.mxu0 0.0
    %769 = vmatpush1.msra.mxu0 0.0
    %770 = vmatprep.subr.mxu0 0.0
    %771 = vmatpush1.msra.mxu0 0.0
    %772 = vmatprep.subr.mxu0 0.0
    %773 = vmatpush1.msra.mxu0 0.0
    %774 = vmatprep.mubr.f32.mxu0 0.0
    %775 = vmatmul.mubr.f32.gmra.mrb[0].mxu0 %v635
    %v776 = vpop.f32.mrb[0].mxu0
    %v777 = vadd.f32 0.0, %v776
    %v778 = vpop.f32.mrb[0].mxu0
    %779 = vdwg.mxu0
    %v780 = vadd.f32 %v709, %v777
    %v781 = vxor.u32 %v707, 2147483648
    %v782 = vmul.f32 %v781, 1.442695
    %v783 = vpow.pop %v782
    %v784 = vadd.f32 %v783, 1.0
    %v785 = vrcp.pop %v784
    %v786 = vmul.f32 1.0, %v785
    %v787 = vxor.u32 %v780, 2147483648
    %v788 = vmul.f32 %v787, 1.442695
    %v789 = vpow.pop %v788
    %v790 = vadd.f32 %v789, 1.0
    %v791 = vrcp.pop %v790
    %v792 = vmul.f32 1.0, %v791
    %v793 = vtanh.pop %v707
    %v794 = vtanh.pop %v780
    %v795 = vmul.f32 %v786, 0.0
    %797 = vrot.lane.b32.xlu0 %v793, 64
    %v798 = vpop.permute.xlu0 %797
    %v800 = vmul.f32 %v786, %v798
    %802 = vrot.lane.b32.xlu0 %v800, 32
    %v803 = vpop.permute.xlu0 %802
    %v805 = vadd.f32 %v795, %v803
    %v806 = vmul.f32 %v792, 0.0
    %808 = vrot.lane.b32.xlu0 %v794, 64
    %v809 = vpop.permute.xlu0 %808
    %v811 = vmul.f32 %v792, %v809
    %813 = vrot.lane.b32.xlu0 %v811, 32
    %v814 = vpop.permute.xlu0 %813
    %v816 = vadd.f32 %v806, %v814
    %v817 = vtanh.pop %v805
    %819 = vrot.lane.b32.xlu0 %v817, 64
    %v820 = vpop.permute.xlu0 %819
    %v822 = vmul.f32 %v786, %v820
    %v823 = vtanh.pop %v816
    %825 = vrot.lane.b32.xlu0 %v823, 64
    %v826 = vpop.permute.xlu0 %825
    %v828 = vmul.f32 %v792, %v826
    %830 = vrot.lane.b32.xlu0 %v822, 32
    %v831 = vpop.permute.xlu0 %830
    %833 = vst.msk [vmem:[#allocation4] sm:$0xff] %vm634, %v831
    %835 = vrot.lane.b32.xlu0 %v828, 32
    %v836 = vpop.permute.xlu0 %835
    %s838 = scalar_lea.vmem [#allocation5], 56
    %839 = vst.msk [vmem:[%s838] sm:$0xff] %vm634, %v836
    %s840 = scalar_lea.vmem [#allocation2], 8
    %v841 = vld [vmem:[%s840] sm:$0xff]
    %v842 = vsel %vm634, %v831, 0
    %844 = vmatprep.subr.mxu0 0.0
    %845 = vmatpush1.msra.mxu0 %v625
    %846 = vmatprep.subr.mxu0 0.0
    %847 = vmatpush1.msra.mxu0 %v626
    %848 = vmatprep.subr.mxu0 0.0
    %849 = vmatpush1.msra.mxu0 %v627
    %850 = vmatprep.subr.mxu0 0.0
    %851 = vmatpush1.msra.mxu0 %v628
    %852 = vmatprep.subr.mxu0 0.0
    %853 = vmatpush1.msra.mxu0 0.0
    %854 = vmatprep.subr.mxu0 0.0
    %855 = vmatpush1.msra.mxu0 0.0
    %856 = vmatprep.subr.mxu0 0.0
    %857 = vmatpush1.msra.mxu0 0.0
    %858 = vmatprep.subr.mxu0 0.0
    %859 = vmatpush1.msra.mxu0 0.0
    %860 = vmatprep.subr.mxu0 0.0
    %861 = vmatpush1.msra.mxu0 0.0
    %862 = vmatprep.subr.mxu0 0.0
    %863 = vmatpush1.msra.mxu0 0.0
    %864 = vmatprep.subr.mxu0 0.0
    %865 = vmatpush1.msra.mxu0 0.0
    %866 = vmatprep.subr.mxu0 0.0
    %867 = vmatpush1.msra.mxu0 0.0
    %868 = vmatprep.subr.mxu0 0.0
    %869 = vmatpush1.msra.mxu0 0.0
    %870 = vmatprep.subr.mxu0 0.0
    %871 = vmatpush1.msra.mxu0 0.0
    %872 = vmatprep.subr.mxu0 0.0
    %873 = vmatpush1.msra.mxu0 0.0
    %874 = vmatprep.subr.mxu0 0.0
    %875 = vmatpush1.msra.mxu0 0.0
    %876 = vmatprep.subr.mxu0 0.0
    %877 = vmatpush1.msra.mxu0 0.0
    %878 = vmatprep.subr.mxu0 0.0
    %879 = vmatpush1.msra.mxu0 0.0
    %880 = vmatprep.subr.mxu0 0.0
    %881 = vmatpush1.msra.mxu0 0.0
    %882 = vmatprep.subr.mxu0 0.0
    %883 = vmatpush1.msra.mxu0 0.0
    %884 = vmatprep.subr.mxu0 0.0
    %885 = vmatpush1.msra.mxu0 0.0
    %886 = vmatprep.subr.mxu0 0.0
    %887 = vmatpush1.msra.mxu0 0.0
    %888 = vmatprep.subr.mxu0 0.0
    %889 = vmatpush1.msra.mxu0 0.0
    %890 = vmatprep.subr.mxu0 0.0
    %891 = vmatpush1.msra.mxu0 0.0
    %892 = vmatprep.subr.mxu0 0.0
    %893 = vmatpush1.msra.mxu0 0.0
    %894 = vmatprep.subr.mxu0 0.0
    %895 = vmatpush1.msra.mxu0 0.0
    %896 = vmatprep.subr.mxu0 0.0
    %897 = vmatpush1.msra.mxu0 0.0
    %898 = vmatprep.subr.mxu0 0.0
    %899 = vmatpush1.msra.mxu0 0.0
    %900 = vmatprep.subr.mxu0 0.0
    %901 = vmatpush1.msra.mxu0 0.0
    %902 = vmatprep.subr.mxu0 0.0
    %903 = vmatpush1.msra.mxu0 0.0
    %904 = vmatprep.subr.mxu0 0.0
    %905 = vmatpush1.msra.mxu0 0.0
    %906 = vmatprep.subr.mxu0 0.0
    %907 = vmatpush1.msra.mxu0 0.0
    %908 = vmatprep.mubr.f32.mxu0 0.0
    %909 = vmatmul.mubr.f32.gmra.mrb[0].mxu0 %v842
    %v910 = vpop.f32.mrb[0].mxu0
    %v911 = vadd.f32 0.0, %v910
    %v912 = vpop.f32.mrb[0].mxu0
    %913 = vdwg.mxu0
    %v914 = vadd.f32 %v841, %v911
    %s915 = scalar_lea.vmem [#allocation3], 48
    %v916 = vld [vmem:[%s915] sm:$0xff]
    %v917 = vsel %vm634, %v836, 0
    %919 = vmatprep.subr.mxu0 0.0
    %920 = vmatpush1.msra.mxu0 %v629
    %921 = vmatprep.subr.mxu0 0.0
    %922 = vmatpush1.msra.mxu0 %v630
    %923 = vmatprep.subr.mxu0 0.0
    %924 = vmatpush1.msra.mxu0 %v631
    %925 = vmatprep.subr.mxu0 0.0
    %926 = vmatpush1.msra.mxu0 %v632
    %927 = vmatprep.subr.mxu0 0.0
    %928 = vmatpush1.msra.mxu0 0.0
    %929 = vmatprep.subr.mxu0 0.0
    %930 = vmatpush1.msra.mxu0 0.0
    %931 = vmatprep.subr.mxu0 0.0
    %932 = vmatpush1.msra.mxu0 0.0
    %933 = vmatprep.subr.mxu0 0.0
    %934 = vmatpush1.msra.mxu0 0.0
    %935 = vmatprep.subr.mxu0 0.0
    %936 = vmatpush1.msra.mxu0 0.0
    %937 = vmatprep.subr.mxu0 0.0
    %938 = vmatpush1.msra.mxu0 0.0
    %939 = vmatprep.subr.mxu0 0.0
    %940 = vmatpush1.msra.mxu0 0.0
    %941 = vmatprep.subr.mxu0 0.0
    %942 = vmatpush1.msra.mxu0 0.0
    %943 = vmatprep.subr.mxu0 0.0
    %944 = vmatpush1.msra.mxu0 0.0
    %945 = vmatprep.subr.mxu0 0.0
    %946 = vmatpush1.msra.mxu0 0.0
    %947 = vmatprep.subr.mxu0 0.0
    %948 = vmatpush1.msra.mxu0 0.0
    %949 = vmatprep.subr.mxu0 0.0
    %950 = vmatpush1.msra.mxu0 0.0
    %951 = vmatprep.subr.mxu0 0.0
    %952 = vmatpush1.msra.mxu0 0.0
    %953 = vmatprep.subr.mxu0 0.0
    %954 = vmatpush1.msra.mxu0 0.0
    %955 = vmatprep.subr.mxu0 0.0
    %956 = vmatpush1.msra.mxu0 0.0
    %957 = vmatprep.subr.mxu0 0.0
    %958 = vmatpush1.msra.mxu0 0.0
    %959 = vmatprep.subr.mxu0 0.0
    %960 = vmatpush1.msra.mxu0 0.0
    %961 = vmatprep.subr.mxu0 0.0
    %962 = vmatpush1.msra.mxu0 0.0
    %963 = vmatprep.subr.mxu0 0.0
    %964 = vmatpush1.msra.mxu0 0.0
    %965 = vmatprep.subr.mxu0 0.0
    %966 = vmatpush1.msra.mxu0 0.0
    %967 = vmatprep.subr.mxu0 0.0
    %968 = vmatpush1.msra.mxu0 0.0
    %969 = vmatprep.subr.mxu0 0.0
    %970 = vmatpush1.msra.mxu0 0.0
    %971 = vmatprep.subr.mxu0 0.0
    %972 = vmatpush1.msra.mxu0 0.0
    %973 = vmatprep.subr.mxu0 0.0
    %974 = vmatpush1.msra.mxu0 0.0
    %975 = vmatprep.subr.mxu0 0.0
    %976 = vmatpush1.msra.mxu0 0.0
    %977 = vmatprep.subr.mxu0 0.0
    %978 = vmatpush1.msra.mxu0 0.0
    %979 = vmatprep.subr.mxu0 0.0
    %980 = vmatpush1.msra.mxu0 0.0
    %981 = vmatprep.subr.mxu0 0.0
    %982 = vmatpush1.msra.mxu0 0.0
    %983 = vmatprep.mubr.f32.mxu0 0.0
    %984 = vmatmul.mubr.f32.gmra.mrb[0].mxu0 %v917
    %v985 = vpop.f32.mrb[0].mxu0
    %v986 = vadd.f32 0.0, %v985
    %v987 = vpop.f32.mrb[0].mxu0
    %988 = vdwg.mxu0
    %v989 = vadd.f32 %v916, %v986
    %v990 = vxor.u32 %v914, 2147483648
    %v991 = vmul.f32 %v990, 1.442695
    %v992 = vpow.pop %v991
    %v993 = vadd.f32 %v992, 1.0
    %v994 = vrcp.pop %v993
    %v995 = vmul.f32 1.0, %v994
    %v996 = vxor.u32 %v989, 2147483648
    %v997 = vmul.f32 %v996, 1.442695
    %v998 = vpow.pop %v997
    %v999 = vadd.f32 %v998, 1.0
    %v1000 = vrcp.pop %v999
    %v1001 = vmul.f32 1.0, %v1000
    %v1002 = vtanh.pop %v914
    %v1003 = vtanh.pop %v989
    %v1004 = vmul.f32 %v995, %v805
    %1006 = vrot.lane.b32.xlu0 %v1002, 64
    %v1007 = vpop.permute.xlu0 %1006
    %v1009 = vmul.f32 %v995, %v1007
    %1011 = vrot.lane.b32.xlu0 %v1009, 32
    %v1012 = vpop.permute.xlu0 %1011
    %v1014 = vadd.f32 %v1004, %v1012
    %v1015 = vmul.f32 %v1001, %v816
    %1017 = vrot.lane.b32.xlu0 %v1003, 64
    %v1018 = vpop.permute.xlu0 %1017
    %v1020 = vmul.f32 %v1001, %v1018
    %1022 = vrot.lane.b32.xlu0 %v1020, 32
    %v1023 = vpop.permute.xlu0 %1022
    %v1025 = vadd.f32 %v1015, %v1023
    %v1026 = vtanh.pop %v1014
    %1028 = vrot.lane.b32.xlu0 %v1026, 64
    %v1029 = vpop.permute.xlu0 %1028
    %v1031 = vmul.f32 %v995, %v1029
    %v1032 = vtanh.pop %v1025
    %1034 = vrot.lane.b32.xlu0 %v1032, 64
    %v1035 = vpop.permute.xlu0 %1034
    %v1037 = vmul.f32 %v1001, %v1035
    %1039 = vrot.lane.b32.xlu0 %v1031, 32
    %v1040 = vpop.permute.xlu0 %1039
    %s1042 = scalar_lea.vmem [#allocation4], 8
    %1043 = vst.msk [vmem:[%s1042] sm:$0xff] %vm634, %v1040
    %1045 = vrot.lane.b32.xlu0 %v1037, 32
    %v1046 = vpop.permute.xlu0 %1045
    %s1048 = scalar_lea.vmem [#allocation5], 48
    %1049 = vst.msk [vmem:[%s1048] sm:$0xff] %vm634, %v1046
    %s1050 = scalar_lea.vmem [#allocation2], 16
    %v1051 = vld [vmem:[%s1050] sm:$0xff]
    %v1052 = vsel %vm634, %v1040, 0
    %1054 = vmatprep.subr.mxu0 0.0
    %1055 = vmatpush1.msra.mxu0 %v625
    %1056 = vmatprep.subr.mxu0 0.0
    %1057 = vmatpush1.msra.mxu0 %v626
    %1058 = vmatprep.subr.mxu0 0.0
    %1059 = vmatpush1.msra.mxu0 %v627
    %1060 = vmatprep.subr.mxu0 0.0
    %1061 = vmatpush1.msra.mxu0 %v628
    %1062 = vmatprep.subr.mxu0 0.0
    %1063 = vmatpush1.msra.mxu0 0.0
    %1064 = vmatprep.subr.mxu0 0.0
    %1065 = vmatpush1.msra.mxu0 0.0
    %1066 = vmatprep.subr.mxu0 0.0
    %1067 = vmatpush1.msra.mxu0 0.0
    %1068 = vmatprep.subr.mxu0 0.0
    %1069 = vmatpush1.msra.mxu0 0.0
    %1070 = vmatprep.subr.mxu0 0.0
    %1071 = vmatpush1.msra.mxu0 0.0
    %1072 = vmatprep.subr.mxu0 0.0
    %1073 = vmatpush1.msra.mxu0 0.0
    %1074 = vmatprep.subr.mxu0 0.0
    %1075 = vmatpush1.msra.mxu0 0.0
    %1076 = vmatprep.subr.mxu0 0.0
    %1077 = vmatpush1.msra.mxu0 0.0
    %1078 = vmatprep.subr.mxu0 0.0
    %1079 = vmatpush1.msra.mxu0 0.0
    %1080 = vmatprep.subr.mxu0 0.0
    %1081 = vmatpush1.msra.mxu0 0.0
    %1082 = vmatprep.subr.mxu0 0.0
    %1083 = vmatpush1.msra.mxu0 0.0
    %1084 = vmatprep.subr.mxu0 0.0
    %1085 = vmatpush1.msra.mxu0 0.0
    %1086 = vmatprep.subr.mxu0 0.0
    %1087 = vmatpush1.msra.mxu0 0.0
    %1088 = vmatprep.subr.mxu0 0.0
    %1089 = vmatpush1.msra.mxu0 0.0
    %1090 = vmatprep.subr.mxu0 0.0
    %1091 = vmatpush1.msra.mxu0 0.0
    %1092 = vmatprep.subr.mxu0 0.0
    %1093 = vmatpush1.msra.mxu0 0.0
    %1094 = vmatprep.subr.mxu0 0.0
    %1095 = vmatpush1.msra.mxu0 0.0
    %1096 = vmatprep.subr.mxu0 0.0
    %1097 = vmatpush1.msra.mxu0 0.0
    %1098 = vmatprep.subr.mxu0 0.0
    %1099 = vmatpush1.msra.mxu0 0.0
    %1100 = vmatprep.subr.mxu0 0.0
    %1101 = vmatpush1.msra.mxu0 0.0
    %1102 = vmatprep.subr.mxu0 0.0
    %1103 = vmatpush1.msra.mxu0 0.0
    %1104 = vmatprep.subr.mxu0 0.0
    %1105 = vmatpush1.msra.mxu0 0.0
    %1106 = vmatprep.subr.mxu0 0.0
    %1107 = vmatpush1.msra.mxu0 0.0
    %1108 = vmatprep.subr.mxu0 0.0
    %1109 = vmatpush1.msra.mxu0 0.0
    %1110 = vmatprep.subr.mxu0 0.0
    %1111 = vmatpush1.msra.mxu0 0.0
    %1112 = vmatprep.subr.mxu0 0.0
    %1113 = vmatpush1.msra.mxu0 0.0
    %1114 = vmatprep.subr.mxu0 0.0
    %1115 = vmatpush1.msra.mxu0 0.0
    %1116 = vmatprep.subr.mxu0 0.0
    %1117 = vmatpush1.msra.mxu0 0.0
    %1118 = vmatprep.mubr.f32.mxu0 0.0
    %1119 = vmatmul.mubr.f32.gmra.mrb[0].mxu0 %v1052
    %v1120 = vpop.f32.mrb[0].mxu0
    %v1121 = vadd.f32 0.0, %v1120
    %v1122 = vpop.f32.mrb[0].mxu0
    %1123 = vdwg.mxu0
    %v1124 = vadd.f32 %v1051, %v1121
    %s1125 = scalar_lea.vmem [#allocation3], 40
    %v1126 = vld [vmem:[%s1125] sm:$0xff]
    %v1127 = vsel %vm634, %v1046, 0
    %1129 = vmatprep.subr.mxu0 0.0
    %1130 = vmatpush1.msra.mxu0 %v629
    %1131 = vmatprep.subr.mxu0 0.0
    %1132 = vmatpush1.msra.mxu0 %v630
    %1133 = vmatprep.subr.mxu0 0.0
    %1134 = vmatpush1.msra.mxu0 %v631
    %1135 = vmatprep.subr.mxu0 0.0
    %1136 = vmatpush1.msra.mxu0 %v632
    %1137 = vmatprep.subr.mxu0 0.0
    %1138 = vmatpush1.msra.mxu0 0.0
    %1139 = vmatprep.subr.mxu0 0.0
    %1140 = vmatpush1.msra.mxu0 0.0
    %1141 = vmatprep.subr.mxu0 0.0
    %1142 = vmatpush1.msra.mxu0 0.0
    %1143 = vmatprep.subr.mxu0 0.0
    %1144 = vmatpush1.msra.mxu0 0.0
    %1145 = vmatprep.subr.mxu0 0.0
    %1146 = vmatpush1.msra.mxu0 0.0
    %1147 = vmatprep.subr.mxu0 0.0
    %1148 = vmatpush1.msra.mxu0 0.0
    %1149 = vmatprep.subr.mxu0 0.0
    %1150 = vmatpush1.msra.mxu0 0.0
    %1151 = vmatprep.subr.mxu0 0.0
    %1152 = vmatpush1.msra.mxu0 0.0
    %1153 = vmatprep.subr.mxu0 0.0
    %1154 = vmatpush1.msra.mxu0 0.0
    %1155 = vmatprep.subr.mxu0 0.0
    %1156 = vmatpush1.msra.mxu0 0.0
    %1157 = vmatprep.subr.mxu0 0.0
    %1158 = vmatpush1.msra.mxu0 0.0
    %1159 = vmatprep.subr.mxu0 0.0
    %1160 = vmatpush1.msra.mxu0 0.0
    %1161 = vmatprep.subr.mxu0 0.0
    %1162 = vmatpush1.msra.mxu0 0.0
    %1163 = vmatprep.subr.mxu0 0.0
    %1164 = vmatpush1.msra.mxu0 0.0
    %1165 = vmatprep.subr.mxu0 0.0
    %1166 = vmatpush1.msra.mxu0 0.0
    %1167 = vmatprep.subr.mxu0 0.0
    %1168 = vmatpush1.msra.mxu0 0.0
    %1169 = vmatprep.subr.mxu0 0.0
    %1170 = vmatpush1.msra.mxu0 0.0
    %1171 = vmatprep.subr.mxu0 0.0
    %1172 = vmatpush1.msra.mxu0 0.0
    %1173 = vmatprep.subr.mxu0 0.0
    %1174 = vmatpush1.msra.mxu0 0.0
    %1175 = vmatprep.subr.mxu0 0.0
    %1176 = vmatpush1.msra.mxu0 0.0
    %1177 = vmatprep.subr.mxu0 0.0
    %1178 = vmatpush1.msra.mxu0 0.0
    %1179 = vmatprep.subr.mxu0 0.0
    %1180 = vmatpush1.msra.mxu0 0.0
    %1181 = vmatprep.subr.mxu0 0.0
    %1182 = vmatpush1.msra.mxu0 0.0
    %1183 = vmatprep.subr.mxu0 0.0
    %1184 = vmatpush1.msra.mxu0 0.0
    %1185 = vmatprep.subr.mxu0 0.0
    %1186 = vmatpush1.msra.mxu0 0.0
    %1187 = vmatprep.subr.mxu0 0.0
    %1188 = vmatpush1.msra.mxu0 0.0
    %1189 = vmatprep.subr.mxu0 0.0
    %1190 = vmatpush1.msra.mxu0 0.0
    %1191 = vmatprep.subr.mxu0 0.0
    %1192 = vmatpush1.msra.mxu0 0.0
    %1193 = vmatprep.mubr.f32.mxu0 0.0
    %1194 = vmatmul.mubr.f32.gmra.mrb[0].mxu0 %v1127
    %v1195 = vpop.f32.mrb[0].mxu0
    %v1196 = vadd.f32 0.0, %v1195
    %v1197 = vpop.f32.mrb[0].mxu0
    %1198 = vdwg.mxu0
    %v1199 = vadd.f32 %v1126, %v1196
    %v1200 = vxor.u32 %v1124, 2147483648
    %v1201 = vmul.f32 %v1200, 1.442695
    %v1202 = vpow.pop %v1201
    %v1203 = vadd.f32 %v1202, 1.0
    %v1204 = vrcp.pop %v1203
    %v1205 = vmul.f32 1.0, %v1204
    %v1206 = vxor.u32 %v1199, 2147483648
    %v1207 = vmul.f32 %v1206, 1.442695
    %v1208 = vpow.pop %v1207
    %v1209 = vadd.f32 %v1208, 1.0
    %v1210 = vrcp.pop %v1209
    %v1211 = vmul.f32 1.0, %v1210
    %v1212 = vtanh.pop %v1124
    %v1213 = vtanh.pop %v1199
    %v1214 = vmul.f32 %v1205, %v1014
    %1216 = vrot.lane.b32.xlu0 %v1212, 64
    %v1217 = vpop.permute.xlu0 %1216
    %v1219 = vmul.f32 %v1205, %v1217
    %1221 = vrot.lane.b32.xlu0 %v1219, 32
    %v1222 = vpop.permute.xlu0 %1221
    %v1224 = vadd.f32 %v1214, %v1222
    %v1225 = vmul.f32 %v1211, %v1025
    %1227 = vrot.lane.b32.xlu0 %v1213, 64
    %v1228 = vpop.permute.xlu0 %1227
    %v1230 = vmul.f32 %v1211, %v1228
    %1232 = vrot.lane.b32.xlu0 %v1230, 32
    %v1233 = vpop.permute.xlu0 %1232
    %v1235 = vadd.f32 %v1225, %v1233
    %v1236 = vtanh.pop %v1224
    %1238 = vrot.lane.b32.xlu0 %v1236, 64
    %v1239 = vpop.permute.xlu0 %1238
    %v1241 = vmul.f32 %v1205, %v1239
    %v1242 = vtanh.pop %v1235
    %1244 = vrot.lane.b32.xlu0 %v1242, 64
    %v1245 = vpop.permute.xlu0 %1244
    %v1247 = vmul.f32 %v1211, %v1245
    %1249 = vrot.lane.b32.xlu0 %v1241, 32
    %v1250 = vpop.permute.xlu0 %1249
    %s1252 = scalar_lea.vmem [#allocation4], 16
    %1253 = vst.msk [vmem:[%s1252] sm:$0xff] %vm634, %v1250
    %1255 = vrot.lane.b32.xlu0 %v1247, 32
    %v1256 = vpop.permute.xlu0 %1255
    %s1258 = scalar_lea.vmem [#allocation5], 40
    %1259 = vst.msk [vmem:[%s1258] sm:$0xff] %vm634, %v1256
    %s1260 = scalar_lea.vmem [#allocation2], 24
    %v1261 = vld [vmem:[%s1260] sm:$0xff]
    %v1262 = vsel %vm634, %v1250, 0
    %1264 = vmatprep.subr.mxu0 0.0
    %1265 = vmatpush1.msra.mxu0 %v625
    %1266 = vmatprep.subr.mxu0 0.0
    %1267 = vmatpush1.msra.mxu0 %v626
    %1268 = vmatprep.subr.mxu0 0.0
    %1269 = vmatpush1.msra.mxu0 %v627
    %1270 = vmatprep.subr.mxu0 0.0
    %1271 = vmatpush1.msra.mxu0 %v628
    %1272 = vmatprep.subr.mxu0 0.0
    %1273 = vmatpush1.msra.mxu0 0.0
    %1274 = vmatprep.subr.mxu0 0.0
    %1275 = vmatpush1.msra.mxu0 0.0
    %1276 = vmatprep.subr.mxu0 0.0
    %1277 = vmatpush1.msra.mxu0 0.0
    %1278 = vmatprep.subr.mxu0 0.0
    %1279 = vmatpush1.msra.mxu0 0.0
    %1280 = vmatprep.subr.mxu0 0.0
    %1281 = vmatpush1.msra.mxu0 0.0
    %1282 = vmatprep.subr.mxu0 0.0
    %1283 = vmatpush1.msra.mxu0 0.0
    %1284 = vmatprep.subr.mxu0 0.0
    %1285 = vmatpush1.msra.mxu0 0.0
    %1286 = vmatprep.subr.mxu0 0.0
    %1287 = vmatpush1.msra.mxu0 0.0
    %1288 = vmatprep.subr.mxu0 0.0
    %1289 = vmatpush1.msra.mxu0 0.0
    %1290 = vmatprep.subr.mxu0 0.0
    %1291 = vmatpush1.msra.mxu0 0.0
    %1292 = vmatprep.subr.mxu0 0.0
    %1293 = vmatpush1.msra.mxu0 0.0
    %1294 = vmatprep.subr.mxu0 0.0
    %1295 = vmatpush1.msra.mxu0 0.0
    %1296 = vmatprep.subr.mxu0 0.0
    %1297 = vmatpush1.msra.mxu0 0.0
    %1298 = vmatprep.subr.mxu0 0.0
    %1299 = vmatpush1.msra.mxu0 0.0
    %1300 = vmatprep.subr.mxu0 0.0
    %1301 = vmatpush1.msra.mxu0 0.0
    %1302 = vmatprep.subr.mxu0 0.0
    %1303 = vmatpush1.msra.mxu0 0.0
    %1304 = vmatprep.subr.mxu0 0.0
    %1305 = vmatpush1.msra.mxu0 0.0
    %1306 = vmatprep.subr.mxu0 0.0
    %1307 = vmatpush1.msra.mxu0 0.0
    %1308 = vmatprep.subr.mxu0 0.0
    %1309 = vmatpush1.msra.mxu0 0.0
    %1310 = vmatprep.subr.mxu0 0.0
    %1311 = vmatpush1.msra.mxu0 0.0
    %1312 = vmatprep.subr.mxu0 0.0
    %1313 = vmatpush1.msra.mxu0 0.0
    %1314 = vmatprep.subr.mxu0 0.0
    %1315 = vmatpush1.msra.mxu0 0.0
    %1316 = vmatprep.subr.mxu0 0.0
    %1317 = vmatpush1.msra.mxu0 0.0
    %1318 = vmatprep.subr.mxu0 0.0
    %1319 = vmatpush1.msra.mxu0 0.0
    %1320 = vmatprep.subr.mxu0 0.0
    %1321 = vmatpush1.msra.mxu0 0.0
    %1322 = vmatprep.subr.mxu0 0.0
    %1323 = vmatpush1.msra.mxu0 0.0
    %1324 = vmatprep.subr.mxu0 0.0
    %1325 = vmatpush1.msra.mxu0 0.0
    %1326 = vmatprep.subr.mxu0 0.0
    %1327 = vmatpush1.msra.mxu0 0.0
    %1328 = vmatprep.mubr.f32.mxu0 0.0
    %1329 = vmatmul.mubr.f32.gmra.mrb[0].mxu0 %v1262
    %v1330 = vpop.f32.mrb[0].mxu0
    %v1331 = vadd.f32 0.0, %v1330
    %v1332 = vpop.f32.mrb[0].mxu0
    %1333 = vdwg.mxu0
    %v1334 = vadd.f32 %v1261, %v1331
    %s1335 = scalar_lea.vmem [#allocation3], 32
    %v1336 = vld [vmem:[%s1335] sm:$0xff]
    %v1337 = vsel %vm634, %v1256, 0
    %1339 = vmatprep.subr.mxu0 0.0
    %1340 = vmatpush1.msra.mxu0 %v629
    %1341 = vmatprep.subr.mxu0 0.0
    %1342 = vmatpush1.msra.mxu0 %v630
    %1343 = vmatprep.subr.mxu0 0.0
    %1344 = vmatpush1.msra.mxu0 %v631
    %1345 = vmatprep.subr.mxu0 0.0
    %1346 = vmatpush1.msra.mxu0 %v632
    %1347 = vmatprep.subr.mxu0 0.0
    %1348 = vmatpush1.msra.mxu0 0.0
    %1349 = vmatprep.subr.mxu0 0.0
    %1350 = vmatpush1.msra.mxu0 0.0
    %1351 = vmatprep.subr.mxu0 0.0
    %1352 = vmatpush1.msra.mxu0 0.0
    %1353 = vmatprep.subr.mxu0 0.0
    %1354 = vmatpush1.msra.mxu0 0.0
    %1355 = vmatprep.subr.mxu0 0.0
    %1356 = vmatpush1.msra.mxu0 0.0
    %1357 = vmatprep.subr.mxu0 0.0
    %1358 = vmatpush1.msra.mxu0 0.0
    %1359 = vmatprep.subr.mxu0 0.0
    %1360 = vmatpush1.msra.mxu0 0.0
    %1361 = vmatprep.subr.mxu0 0.0
    %1362 = vmatpush1.msra.mxu0 0.0
    %1363 = vmatprep.subr.mxu0 0.0
    %1364 = vmatpush1.msra.mxu0 0.0
    %1365 = vmatprep.subr.mxu0 0.0
    %1366 = vmatpush1.msra.mxu0 0.0
    %1367 = vmatprep.subr.mxu0 0.0
    %1368 = vmatpush1.msra.mxu0 0.0
    %1369 = vmatprep.subr.mxu0 0.0
    %1370 = vmatpush1.msra.mxu0 0.0
    %1371 = vmatprep.subr.mxu0 0.0
    %1372 = vmatpush1.msra.mxu0 0.0
    %1373 = vmatprep.subr.mxu0 0.0
    %1374 = vmatpush1.msra.mxu0 0.0
    %1375 = vmatprep.subr.mxu0 0.0
    %1376 = vmatpush1.msra.mxu0 0.0
    %1377 = vmatprep.subr.mxu0 0.0
    %1378 = vmatpush1.msra.mxu0 0.0
    %1379 = vmatprep.subr.mxu0 0.0
    %1380 = vmatpush1.msra.mxu0 0.0
    %1381 = vmatprep.subr.mxu0 0.0
    %1382 = vmatpush1.msra.mxu0 0.0
    %1383 = vmatprep.subr.mxu0 0.0
    %1384 = vmatpush1.msra.mxu0 0.0
    %1385 = vmatprep.subr.mxu0 0.0
    %1386 = vmatpush1.msra.mxu0 0.0
    %1387 = vmatprep.subr.mxu0 0.0
    %1388 = vmatpush1.msra.mxu0 0.0
    %1389 = vmatprep.subr.mxu0 0.0
    %1390 = vmatpush1.msra.mxu0 0.0
    %1391 = vmatprep.subr.mxu0 0.0
    %1392 = vmatpush1.msra.mxu0 0.0
    %1393 = vmatprep.subr.mxu0 0.0
    %1394 = vmatpush1.msra.mxu0 0.0
    %1395 = vmatprep.subr.mxu0 0.0
    %1396 = vmatpush1.msra.mxu0 0.0
    %1397 = vmatprep.subr.mxu0 0.0
    %1398 = vmatpush1.msra.mxu0 0.0
    %1399 = vmatprep.subr.mxu0 0.0
    %1400 = vmatpush1.msra.mxu0 0.0
    %1401 = vmatprep.subr.mxu0 0.0
    %1402 = vmatpush1.msra.mxu0 0.0
    %1403 = vmatprep.mubr.f32.mxu0 0.0
    %1404 = vmatmul.mubr.f32.gmra.mrb[0].mxu0 %v1337
    %v1405 = vpop.f32.mrb[0].mxu0
    %v1406 = vadd.f32 0.0, %v1405
    %v1407 = vpop.f32.mrb[0].mxu0
    %1408 = vdwg.mxu0
    %v1409 = vadd.f32 %v1336, %v1406
    %v1410 = vxor.u32 %v1334, 2147483648
    %v1411 = vmul.f32 %v1410, 1.442695
    %v1412 = vpow.pop %v1411
    %v1413 = vadd.f32 %v1412, 1.0
    %v1414 = vrcp.pop %v1413
    %v1415 = vmul.f32 1.0, %v1414
    %v1416 = vxor.u32 %v1409, 2147483648
    %v1417 = vmul.f32 %v1416, 1.442695
    %v1418 = vpow.pop %v1417
    %v1419 = vadd.f32 %v1418, 1.0
    %v1420 = vrcp.pop %v1419
    %v1421 = vmul.f32 1.0, %v1420
    %v1422 = vtanh.pop %v1334
    %v1423 = vtanh.pop %v1409
    %v1424 = vmul.f32 %v1415, %v1224
    %1426 = vrot.lane.b32.xlu0 %v1422, 64
    %v1427 = vpop.permute.xlu0 %1426
    %v1429 = vmul.f32 %v1415, %v1427
    %1431 = vrot.lane.b32.xlu0 %v1429, 32
    %v1432 = vpop.permute.xlu0 %1431
    %v1434 = vadd.f32 %v1424, %v1432
    %v1435 = vmul.f32 %v1421, %v1235
    %1437 = vrot.lane.b32.xlu0 %v1423, 64
    %v1438 = vpop.permute.xlu0 %1437
    %v1440 = vmul.f32 %v1421, %v1438
    %1442 = vrot.lane.b32.xlu0 %v1440, 32
    %v1443 = vpop.permute.xlu0 %1442
    %v1445 = vadd.f32 %v1435, %v1443
    %v1446 = vtanh.pop %v1434
    %1448 = vrot.lane.b32.xlu0 %v1446, 64
    %v1449 = vpop.permute.xlu0 %1448
    %v1451 = vmul.f32 %v1415, %v1449
    %v1452 = vtanh.pop %v1445
    %1454 = vrot.lane.b32.xlu0 %v1452, 64
    %v1455 = vpop.permute.xlu0 %1454
    %v1457 = vmul.f32 %v1421, %v1455
    %1459 = vrot.lane.b32.xlu0 %v1451, 32
    %v1460 = vpop.permute.xlu0 %1459
    %s1462 = scalar_lea.vmem [#allocation4], 24
    %1463 = vst.msk [vmem:[%s1462] sm:$0xff] %vm634, %v1460
    %1465 = vrot.lane.b32.xlu0 %v1457, 32
    %v1466 = vpop.permute.xlu0 %1465
    %s1468 = scalar_lea.vmem [#allocation5], 32
    %1469 = vst.msk [vmem:[%s1468] sm:$0xff] %vm634, %v1466
    %s1470 = scalar_lea.vmem [#allocation2], 32
    %v1471 = vld [vmem:[%s1470] sm:$0xff]
    %v1472 = vsel %vm634, %v1460, 0
    %1474 = vmatprep.subr.mxu0 0.0
    %1475 = vmatpush1.msra.mxu0 %v625
    %1476 = vmatprep.subr.mxu0 0.0
    %1477 = vmatpush1.msra.mxu0 %v626
    %1478 = vmatprep.subr.mxu0 0.0
    %1479 = vmatpush1.msra.mxu0 %v627
    %1480 = vmatprep.subr.mxu0 0.0
    %1481 = vmatpush1.msra.mxu0 %v628
    %1482 = vmatprep.subr.mxu0 0.0
    %1483 = vmatpush1.msra.mxu0 0.0
    %1484 = vmatprep.subr.mxu0 0.0
    %1485 = vmatpush1.msra.mxu0 0.0
    %1486 = vmatprep.subr.mxu0 0.0
    %1487 = vmatpush1.msra.mxu0 0.0
    %1488 = vmatprep.subr.mxu0 0.0
    %1489 = vmatpush1.msra.mxu0 0.0
    %1490 = vmatprep.subr.mxu0 0.0
    %1491 = vmatpush1.msra.mxu0 0.0
    %1492 = vmatprep.subr.mxu0 0.0
    %1493 = vmatpush1.msra.mxu0 0.0
    %1494 = vmatprep.subr.mxu0 0.0
    %1495 = vmatpush1.msra.mxu0 0.0
    %1496 = vmatprep.subr.mxu0 0.0
    %1497 = vmatpush1.msra.mxu0 0.0
    %1498 = vmatprep.subr.mxu0 0.0
    %1499 = vmatpush1.msra.mxu0 0.0
    %1500 = vmatprep.subr.mxu0 0.0
    %1501 = vmatpush1.msra.mxu0 0.0
    %1502 = vmatprep.subr.mxu0 0.0
    %1503 = vmatpush1.msra.mxu0 0.0
    %1504 = vmatprep.subr.mxu0 0.0
    %1505 = vmatpush1.msra.mxu0 0.0
    %1506 = vmatprep.subr.mxu0 0.0
    %1507 = vmatpush1.msra.mxu0 0.0
    %1508 = vmatprep.subr.mxu0 0.0
    %1509 = vmatpush1.msra.mxu0 0.0
    %1510 = vmatprep.subr.mxu0 0.0
    %1511 = vmatpush1.msra.mxu0 0.0
    %1512 = vmatprep.subr.mxu0 0.0
    %1513 = vmatpush1.msra.mxu0 0.0
    %1514 = vmatprep.subr.mxu0 0.0
    %1515 = vmatpush1.msra.mxu0 0.0
    %1516 = vmatprep.subr.mxu0 0.0
    %1517 = vmatpush1.msra.mxu0 0.0
    %1518 = vmatprep.subr.mxu0 0.0
    %1519 = vmatpush1.msra.mxu0 0.0
    %1520 = vmatprep.subr.mxu0 0.0
    %1521 = vmatpush1.msra.mxu0 0.0
    %1522 = vmatprep.subr.mxu0 0.0
    %1523 = vmatpush1.msra.mxu0 0.0
    %1524 = vmatprep.subr.mxu0 0.0
    %1525 = vmatpush1.msra.mxu0 0.0
    %1526 = vmatprep.subr.mxu0 0.0
    %1527 = vmatpush1.msra.mxu0 0.0
    %1528 = vmatprep.subr.mxu0 0.0
    %1529 = vmatpush1.msra.mxu0 0.0
    %1530 = vmatprep.subr.mxu0 0.0
    %1531 = vmatpush1.msra.mxu0 0.0
    %1532 = vmatprep.subr.mxu0 0.0
    %1533 = vmatpush1.msra.mxu0 0.0
    %1534 = vmatprep.subr.mxu0 0.0
    %1535 = vmatpush1.msra.mxu0 0.0
    %1536 = vmatprep.subr.mxu0 0.0
    %1537 = vmatpush1.msra.mxu0 0.0
    %1538 = vmatprep.mubr.f32.mxu0 0.0
    %1539 = vmatmul.mubr.f32.gmra.mrb[0].mxu0 %v1472
    %v1540 = vpop.f32.mrb[0].mxu0
    %v1541 = vadd.f32 0.0, %v1540
    %v1542 = vpop.f32.mrb[0].mxu0
    %1543 = vdwg.mxu0
    %v1544 = vadd.f32 %v1471, %v1541
    %s1545 = scalar_lea.vmem [#allocation3], 24
    %v1546 = vld [vmem:[%s1545] sm:$0xff]
    %v1547 = vsel %vm634, %v1466, 0
    %1549 = vmatprep.subr.mxu0 0.0
    %1550 = vmatpush1.msra.mxu0 %v629
    %1551 = vmatprep.subr.mxu0 0.0
    %1552 = vmatpush1.msra.mxu0 %v630
    %1553 = vmatprep.subr.mxu0 0.0
    %1554 = vmatpush1.msra.mxu0 %v631
    %1555 = vmatprep.subr.mxu0 0.0
    %1556 = vmatpush1.msra.mxu0 %v632
    %1557 = vmatprep.subr.mxu0 0.0
    %1558 = vmatpush1.msra.mxu0 0.0
    %1559 = vmatprep.subr.mxu0 0.0
    %1560 = vmatpush1.msra.mxu0 0.0
    %1561 = vmatprep.subr.mxu0 0.0
    %1562 = vmatpush1.msra.mxu0 0.0
    %1563 = vmatprep.subr.mxu0 0.0
    %1564 = vmatpush1.msra.mxu0 0.0
    %1565 = vmatprep.subr.mxu0 0.0
    %1566 = vmatpush1.msra.mxu0 0.0
    %1567 = vmatprep.subr.mxu0 0.0
    %1568 = vmatpush1.msra.mxu0 0.0
    %1569 = vmatprep.subr.mxu0 0.0
    %1570 = vmatpush1.msra.mxu0 0.0
    %1571 = vmatprep.subr.mxu0 0.0
    %1572 = vmatpush1.msra.mxu0 0.0
    %1573 = vmatprep.subr.mxu0 0.0
    %1574 = vmatpush1.msra.mxu0 0.0
    %1575 = vmatprep.subr.mxu0 0.0
    %1576 = vmatpush1.msra.mxu0 0.0
    %1577 = vmatprep.subr.mxu0 0.0
    %1578 = vmatpush1.msra.mxu0 0.0
    %1579 = vmatprep.subr.mxu0 0.0
    %1580 = vmatpush1.msra.mxu0 0.0
    %1581 = vmatprep.subr.mxu0 0.0
    %1582 = vmatpush1.msra.mxu0 0.0
    %1583 = vmatprep.subr.mxu0 0.0
    %1584 = vmatpush1.msra.mxu0 0.0
    %1585 = vmatprep.subr.mxu0 0.0
    %1586 = vmatpush1.msra.mxu0 0.0
    %1587 = vmatprep.subr.mxu0 0.0
    %1588 = vmatpush1.msra.mxu0 0.0
    %1589 = vmatprep.subr.mxu0 0.0
    %1590 = vmatpush1.msra.mxu0 0.0
    %1591 = vmatprep.subr.mxu0 0.0
    %1592 = vmatpush1.msra.mxu0 0.0
    %1593 = vmatprep.subr.mxu0 0.0
    %1594 = vmatpush1.msra.mxu0 0.0
    %1595 = vmatprep.subr.mxu0 0.0
    %1596 = vmatpush1.msra.mxu0 0.0
    %1597 = vmatprep.subr.mxu0 0.0
    %1598 = vmatpush1.msra.mxu0 0.0
    %1599 = vmatprep.subr.mxu0 0.0
    %1600 = vmatpush1.msra.mxu0 0.0
    %1601 = vmatprep.subr.mxu0 0.0
    %1602 = vmatpush1.msra.mxu0 0.0
    %1603 = vmatprep.subr.mxu0 0.0
    %1604 = vmatpush1.msra.mxu0 0.0
    %1605 = vmatprep.subr.mxu0 0.0
    %1606 = vmatpush1.msra.mxu0 0.0
    %1607 = vmatprep.subr.mxu0 0.0
    %1608 = vmatpush1.msra.mxu0 0.0
    %1609 = vmatprep.subr.mxu0 0.0
    %1610 = vmatpush1.msra.mxu0 0.0
    %1611 = vmatprep.subr.mxu0 0.0
    %1612 = vmatpush1.msra.mxu0 0.0
    %1613 = vmatprep.mubr.f32.mxu0 0.0
    %1614 = vmatmul.mubr.f32.gmra.mrb[0].mxu0 %v1547
    %v1615 = vpop.f32.mrb[0].mxu0
    %v1616 = vadd.f32 0.0, %v1615
    %v1617 = vpop.f32.mrb[0].mxu0
    %1618 = vdwg.mxu0
    %v1619 = vadd.f32 %v1546, %v1616
    %v1620 = vxor.u32 %v1544, 2147483648
    %v1621 = vmul.f32 %v1620, 1.442695
    %v1622 = vpow.pop %v1621
    %v1623 = vadd.f32 %v1622, 1.0
    %v1624 = vrcp.pop %v1623
    %v1625 = vmul.f32 1.0, %v1624
    %v1626 = vxor.u32 %v1619, 2147483648
    %v1627 = vmul.f32 %v1626, 1.442695
    %v1628 = vpow.pop %v1627
    %v1629 = vadd.f32 %v1628, 1.0
    %v1630 = vrcp.pop %v1629
    %v1631 = vmul.f32 1.0, %v1630
    %v1632 = vtanh.pop %v1544
    %v1633 = vtanh.pop %v1619
    %v1634 = vmul.f32 %v1625, %v1434
    %1636 = vrot.lane.b32.xlu0 %v1632, 64
    %v1637 = vpop.permute.xlu0 %1636
    %v1639 = vmul.f32 %v1625, %v1637
    %1641 = vrot.lane.b32.xlu0 %v1639, 32
    %v1642 = vpop.permute.xlu0 %1641
    %v1644 = vadd.f32 %v1634, %v1642
    %v1645 = vmul.f32 %v1631, %v1445
    %1647 = vrot.lane.b32.xlu0 %v1633, 64
    %v1648 = vpop.permute.xlu0 %1647
    %v1650 = vmul.f32 %v1631, %v1648
    %1652 = vrot.lane.b32.xlu0 %v1650, 32
    %v1653 = vpop.permute.xlu0 %1652
    %v1655 = vadd.f32 %v1645, %v1653
    %v1656 = vtanh.pop %v1644
    %1658 = vrot.lane.b32.xlu0 %v1656, 64
    %v1659 = vpop.permute.xlu0 %1658
    %v1661 = vmul.f32 %v1625, %v1659
    %v1662 = vtanh.pop %v1655
    %1664 = vrot.lane.b32.xlu0 %v1662, 64
    %v1665 = vpop.permute.xlu0 %1664
    %v1667 = vmul.f32 %v1631, %v1665
    %1669 = vrot.lane.b32.xlu0 %v1661, 32
    %v1670 = vpop.permute.xlu0 %1669
    %s1672 = scalar_lea.vmem [#allocation4], 32
    %1673 = vst.msk [vmem:[%s1672] sm:$0xff] %vm634, %v1670
    %1675 = vrot.lane.b32.xlu0 %v1667, 32
    %v1676 = vpop.permute.xlu0 %1675
    %s1678 = scalar_lea.vmem [#allocation5], 24
    %1679 = vst.msk [vmem:[%s1678] sm:$0xff] %vm634, %v1676
    %s1680 = scalar_lea.vmem [#allocation2], 40
    %v1681 = vld [vmem:[%s1680] sm:$0xff]
    %v1682 = vsel %vm634, %v1670, 0
    %1684 = vmatprep.subr.mxu0 0.0
    %1685 = vmatpush1.msra.mxu0 %v625
    %1686 = vmatprep.subr.mxu0 0.0
    %1687 = vmatpush1.msra.mxu0 %v626
    %1688 = vmatprep.subr.mxu0 0.0
    %1689 = vmatpush1.msra.mxu0 %v627
    %1690 = vmatprep.subr.mxu0 0.0
    %1691 = vmatpush1.msra.mxu0 %v628
    %1692 = vmatprep.subr.mxu0 0.0
    %1693 = vmatpush1.msra.mxu0 0.0
    %1694 = vmatprep.subr.mxu0 0.0
    %1695 = vmatpush1.msra.mxu0 0.0
    %1696 = vmatprep.subr.mxu0 0.0
    %1697 = vmatpush1.msra.mxu0 0.0
    %1698 = vmatprep.subr.mxu0 0.0
    %1699 = vmatpush1.msra.mxu0 0.0
    %1700 = vmatprep.subr.mxu0 0.0
    %1701 = vmatpush1.msra.mxu0 0.0
    %1702 = vmatprep.subr.mxu0 0.0
    %1703 = vmatpush1.msra.mxu0 0.0
    %1704 = vmatprep.subr.mxu0 0.0
    %1705 = vmatpush1.msra.mxu0 0.0
    %1706 = vmatprep.subr.mxu0 0.0
    %1707 = vmatpush1.msra.mxu0 0.0
    %1708 = vmatprep.subr.mxu0 0.0
    %1709 = vmatpush1.msra.mxu0 0.0
    %1710 = vmatprep.subr.mxu0 0.0
    %1711 = vmatpush1.msra.mxu0 0.0
    %1712 = vmatprep.subr.mxu0 0.0
    %1713 = vmatpush1.msra.mxu0 0.0
    %1714 = vmatprep.subr.mxu0 0.0
    %1715 = vmatpush1.msra.mxu0 0.0
    %1716 = vmatprep.subr.mxu0 0.0
    %1717 = vmatpush1.msra.mxu0 0.0
    %1718 = vmatprep.subr.mxu0 0.0
    %1719 = vmatpush1.msra.mxu0 0.0
    %1720 = vmatprep.subr.mxu0 0.0
    %1721 = vmatpush1.msra.mxu0 0.0
    %1722 = vmatprep.subr.mxu0 0.0
    %1723 = vmatpush1.msra.mxu0 0.0
    %1724 = vmatprep.subr.mxu0 0.0
    %1725 = vmatpush1.msra.mxu0 0.0
    %1726 = vmatprep.subr.mxu0 0.0
    %1727 = vmatpush1.msra.mxu0 0.0
    %1728 = vmatprep.subr.mxu0 0.0
    %1729 = vmatpush1.msra.mxu0 0.0
    %1730 = vmatprep.subr.mxu0 0.0
    %1731 = vmatpush1.msra.mxu0 0.0
    %1732 = vmatprep.subr.mxu0 0.0
    %1733 = vmatpush1.msra.mxu0 0.0
    %1734 = vmatprep.subr.mxu0 0.0
    %1735 = vmatpush1.msra.mxu0 0.0
    %1736 = vmatprep.subr.mxu0 0.0
    %1737 = vmatpush1.msra.mxu0 0.0
    %1738 = vmatprep.subr.mxu0 0.0
    %1739 = vmatpush1.msra.mxu0 0.0
    %1740 = vmatprep.subr.mxu0 0.0
    %1741 = vmatpush1.msra.mxu0 0.0
    %1742 = vmatprep.subr.mxu0 0.0
    %1743 = vmatpush1.msra.mxu0 0.0
    %1744 = vmatprep.subr.mxu0 0.0
    %1745 = vmatpush1.msra.mxu0 0.0
    %1746 = vmatprep.subr.mxu0 0.0
    %1747 = vmatpush1.msra.mxu0 0.0
    %1748 = vmatprep.mubr.f32.mxu0 0.0
    %1749 = vmatmul.mubr.f32.gmra.mrb[0].mxu0 %v1682
    %v1750 = vpop.f32.mrb[0].mxu0
    %v1751 = vadd.f32 0.0, %v1750
    %v1752 = vpop.f32.mrb[0].mxu0
    %1753 = vdwg.mxu0
    %v1754 = vadd.f32 %v1681, %v1751
    %s1755 = scalar_lea.vmem [#allocation3], 16
    %v1756 = vld [vmem:[%s1755] sm:$0xff]
    %v1757 = vsel %vm634, %v1676, 0
    %1759 = vmatprep.subr.mxu0 0.0
    %1760 = vmatpush1.msra.mxu0 %v629
    %1761 = vmatprep.subr.mxu0 0.0
    %1762 = vmatpush1.msra.mxu0 %v630
    %1763 = vmatprep.subr.mxu0 0.0
    %1764 = vmatpush1.msra.mxu0 %v631
    %1765 = vmatprep.subr.mxu0 0.0
    %1766 = vmatpush1.msra.mxu0 %v632
    %1767 = vmatprep.subr.mxu0 0.0
    %1768 = vmatpush1.msra.mxu0 0.0
    %1769 = vmatprep.subr.mxu0 0.0
    %1770 = vmatpush1.msra.mxu0 0.0
    %1771 = vmatprep.subr.mxu0 0.0
    %1772 = vmatpush1.msra.mxu0 0.0
    %1773 = vmatprep.subr.mxu0 0.0
    %1774 = vmatpush1.msra.mxu0 0.0
    %1775 = vmatprep.subr.mxu0 0.0
    %1776 = vmatpush1.msra.mxu0 0.0
    %1777 = vmatprep.subr.mxu0 0.0
    %1778 = vmatpush1.msra.mxu0 0.0
    %1779 = vmatprep.subr.mxu0 0.0
    %1780 = vmatpush1.msra.mxu0 0.0
    %1781 = vmatprep.subr.mxu0 0.0
    %1782 = vmatpush1.msra.mxu0 0.0
    %1783 = vmatprep.subr.mxu0 0.0
    %1784 = vmatpush1.msra.mxu0 0.0
    %1785 = vmatprep.subr.mxu0 0.0
    %1786 = vmatpush1.msra.mxu0 0.0
    %1787 = vmatprep.subr.mxu0 0.0
    %1788 = vmatpush1.msra.mxu0 0.0
    %1789 = vmatprep.subr.mxu0 0.0
    %1790 = vmatpush1.msra.mxu0 0.0
    %1791 = vmatprep.subr.mxu0 0.0
    %1792 = vmatpush1.msra.mxu0 0.0
    %1793 = vmatprep.subr.mxu0 0.0
    %1794 = vmatpush1.msra.mxu0 0.0
    %1795 = vmatprep.subr.mxu0 0.0
    %1796 = vmatpush1.msra.mxu0 0.0
    %1797 = vmatprep.subr.mxu0 0.0
    %1798 = vmatpush1.msra.mxu0 0.0
    %1799 = vmatprep.subr.mxu0 0.0
    %1800 = vmatpush1.msra.mxu0 0.0
    %1801 = vmatprep.subr.mxu0 0.0
    %1802 = vmatpush1.msra.mxu0 0.0
    %1803 = vmatprep.subr.mxu0 0.0
    %1804 = vmatpush1.msra.mxu0 0.0
    %1805 = vmatprep.subr.mxu0 0.0
    %1806 = vmatpush1.msra.mxu0 0.0
    %1807 = vmatprep.subr.mxu0 0.0
    %1808 = vmatpush1.msra.mxu0 0.0
    %1809 = vmatprep.subr.mxu0 0.0
    %1810 = vmatpush1.msra.mxu0 0.0
    %1811 = vmatprep.subr.mxu0 0.0
    %1812 = vmatpush1.msra.mxu0 0.0
    %1813 = vmatprep.subr.mxu0 0.0
    %1814 = vmatpush1.msra.mxu0 0.0
    %1815 = vmatprep.subr.mxu0 0.0
    %1816 = vmatpush1.msra.mxu0 0.0
    %1817 = vmatprep.subr.mxu0 0.0
    %1818 = vmatpush1.msra.mxu0 0.0
    %1819 = vmatprep.subr.mxu0 0.0
    %1820 = vmatpush1.msra.mxu0 0.0
    %1821 = vmatprep.subr.mxu0 0.0
    %1822 = vmatpush1.msra.mxu0 0.0
    %1823 = vmatprep.mubr.f32.mxu0 0.0
    %1824 = vmatmul.mubr.f32.gmra.mrb[0].mxu0 %v1757
    %v1825 = vpop.f32.mrb[0].mxu0
    %v1826 = vadd.f32 0.0, %v1825
    %v1827 = vpop.f32.mrb[0].mxu0
    %1828 = vdwg.mxu0
    %v1829 = vadd.f32 %v1756, %v1826
    %v1830 = vxor.u32 %v1754, 2147483648
    %v1831 = vmul.f32 %v1830, 1.442695
    %v1832 = vpow.pop %v1831
    %v1833 = vadd.f32 %v1832, 1.0
    %v1834 = vrcp.pop %v1833
    %v1835 = vmul.f32 1.0, %v1834
    %v1836 = vxor.u32 %v1829, 2147483648
    %v1837 = vmul.f32 %v1836, 1.442695
    %v1838 = vpow.pop %v1837
    %v1839 = vadd.f32 %v1838, 1.0
    %v1840 = vrcp.pop %v1839
    %v1841 = vmul.f32 1.0, %v1840
    %v1842 = vtanh.pop %v1754
    %v1843 = vtanh.pop %v1829
    %v1844 = vmul.f32 %v1835, %v1644
    %1846 = vrot.lane.b32.xlu0 %v1842, 64
    %v1847 = vpop.permute.xlu0 %1846
    %v1849 = vmul.f32 %v1835, %v1847
    %1851 = vrot.lane.b32.xlu0 %v1849, 32
    %v1852 = vpop.permute.xlu0 %1851
    %v1854 = vadd.f32 %v1844, %v1852
    %v1855 = vmul.f32 %v1841, %v1655
    %1857 = vrot.lane.b32.xlu0 %v1843, 64
    %v1858 = vpop.permute.xlu0 %1857
    %v1860 = vmul.f32 %v1841, %v1858
    %1862 = vrot.lane.b32.xlu0 %v1860, 32
    %v1863 = vpop.permute.xlu0 %1862
    %v1865 = vadd.f32 %v1855, %v1863
    %v1866 = vtanh.pop %v1854
    %1868 = vrot.lane.b32.xlu0 %v1866, 64
    %v1869 = vpop.permute.xlu0 %1868
    %v1871 = vmul.f32 %v1835, %v1869
    %v1872 = vtanh.pop %v1865
    %1874 = vrot.lane.b32.xlu0 %v1872, 64
    %v1875 = vpop.permute.xlu0 %1874
    %v1877 = vmul.f32 %v1841, %v1875
    %1879 = vrot.lane.b32.xlu0 %v1871, 32
    %v1880 = vpop.permute.xlu0 %1879
    %s1882 = scalar_lea.vmem [#allocation4], 40
    %1883 = vst.msk [vmem:[%s1882] sm:$0xff] %vm634, %v1880
    %1885 = vrot.lane.b32.xlu0 %v1877, 32
    %v1886 = vpop.permute.xlu0 %1885
    %s1888 = scalar_lea.vmem [#allocation5], 16
    %1889 = vst.msk [vmem:[%s1888] sm:$0xff] %vm634, %v1886
    %s1890 = scalar_lea.vmem [#allocation2], 48
    %v1891 = vld [vmem:[%s1890] sm:$0xff]
    %v1892 = vsel %vm634, %v1880, 0
    %1894 = vmatprep.subr.mxu0 0.0
    %1895 = vmatpush1.msra.mxu0 %v625
    %1896 = vmatprep.subr.mxu0 0.0
    %1897 = vmatpush1.msra.mxu0 %v626
    %1898 = vmatprep.subr.mxu0 0.0
    %1899 = vmatpush1.msra.mxu0 %v627
    %1900 = vmatprep.subr.mxu0 0.0
    %1901 = vmatpush1.msra.mxu0 %v628
    %1902 = vmatprep.subr.mxu0 0.0
    %1903 = vmatpush1.msra.mxu0 0.0
    %1904 = vmatprep.subr.mxu0 0.0
    %1905 = vmatpush1.msra.mxu0 0.0
    %1906 = vmatprep.subr.mxu0 0.0
    %1907 = vmatpush1.msra.mxu0 0.0
    %1908 = vmatprep.subr.mxu0 0.0
    %1909 = vmatpush1.msra.mxu0 0.0
    %1910 = vmatprep.subr.mxu0 0.0
    %1911 = vmatpush1.msra.mxu0 0.0
    %1912 = vmatprep.subr.mxu0 0.0
    %1913 = vmatpush1.msra.mxu0 0.0
    %1914 = vmatprep.subr.mxu0 0.0
    %1915 = vmatpush1.msra.mxu0 0.0
    %1916 = vmatprep.subr.mxu0 0.0
    %1917 = vmatpush1.msra.mxu0 0.0
    %1918 = vmatprep.subr.mxu0 0.0
    %1919 = vmatpush1.msra.mxu0 0.0
    %1920 = vmatprep.subr.mxu0 0.0
    %1921 = vmatpush1.msra.mxu0 0.0
    %1922 = vmatprep.subr.mxu0 0.0
    %1923 = vmatpush1.msra.mxu0 0.0
    %1924 = vmatprep.subr.mxu0 0.0
    %1925 = vmatpush1.msra.mxu0 0.0
    %1926 = vmatprep.subr.mxu0 0.0
    %1927 = vmatpush1.msra.mxu0 0.0
    %1928 = vmatprep.subr.mxu0 0.0
    %1929 = vmatpush1.msra.mxu0 0.0
    %1930 = vmatprep.subr.mxu0 0.0
    %1931 = vmatpush1.msra.mxu0 0.0
    %1932 = vmatprep.subr.mxu0 0.0
    %1933 = vmatpush1.msra.mxu0 0.0
    %1934 = vmatprep.subr.mxu0 0.0
    %1935 = vmatpush1.msra.mxu0 0.0
    %1936 = vmatprep.subr.mxu0 0.0
    %1937 = vmatpush1.msra.mxu0 0.0
    %1938 = vmatprep.subr.mxu0 0.0
    %1939 = vmatpush1.msra.mxu0 0.0
    %1940 = vmatprep.subr.mxu0 0.0
    %1941 = vmatpush1.msra.mxu0 0.0
    %1942 = vmatprep.subr.mxu0 0.0
    %1943 = vmatpush1.msra.mxu0 0.0
    %1944 = vmatprep.subr.mxu0 0.0
    %1945 = vmatpush1.msra.mxu0 0.0
    %1946 = vmatprep.subr.mxu0 0.0
    %1947 = vmatpush1.msra.mxu0 0.0
    %1948 = vmatprep.subr.mxu0 0.0
    %1949 = vmatpush1.msra.mxu0 0.0
    %1950 = vmatprep.subr.mxu0 0.0
    %1951 = vmatpush1.msra.mxu0 0.0
    %1952 = vmatprep.subr.mxu0 0.0
    %1953 = vmatpush1.msra.mxu0 0.0
    %1954 = vmatprep.subr.mxu0 0.0
    %1955 = vmatpush1.msra.mxu0 0.0
    %1956 = vmatprep.subr.mxu0 0.0
    %1957 = vmatpush1.msra.mxu0 0.0
    %1958 = vmatprep.mubr.f32.mxu0 0.0
    %1959 = vmatmul.mubr.f32.gmra.mrb[0].mxu0 %v1892
    %v1960 = vpop.f32.mrb[0].mxu0
    %v1961 = vadd.f32 0.0, %v1960
    %v1962 = vpop.f32.mrb[0].mxu0
    %1963 = vdwg.mxu0
    %v1964 = vadd.f32 %v1891, %v1961
    %s1965 = scalar_lea.vmem [#allocation3], 8
    %v1966 = vld [vmem:[%s1965] sm:$0xff]
    %v1967 = vsel %vm634, %v1886, 0
    %1969 = vmatprep.subr.mxu0 0.0
    %1970 = vmatpush1.msra.mxu0 %v629
    %1971 = vmatprep.subr.mxu0 0.0
    %1972 = vmatpush1.msra.mxu0 %v630
    %1973 = vmatprep.subr.mxu0 0.0
    %1974 = vmatpush1.msra.mxu0 %v631
    %1975 = vmatprep.subr.mxu0 0.0
    %1976 = vmatpush1.msra.mxu0 %v632
    %1977 = vmatprep.subr.mxu0 0.0
    %1978 = vmatpush1.msra.mxu0 0.0
    %1979 = vmatprep.subr.mxu0 0.0
    %1980 = vmatpush1.msra.mxu0 0.0
    %1981 = vmatprep.subr.mxu0 0.0
    %1982 = vmatpush1.msra.mxu0 0.0
    %1983 = vmatprep.subr.mxu0 0.0
    %1984 = vmatpush1.msra.mxu0 0.0
    %1985 = vmatprep.subr.mxu0 0.0
    %1986 = vmatpush1.msra.mxu0 0.0
    %1987 = vmatprep.subr.mxu0 0.0
    %1988 = vmatpush1.msra.mxu0 0.0
    %1989 = vmatprep.subr.mxu0 0.0
    %1990 = vmatpush1.msra.mxu0 0.0
    %1991 = vmatprep.subr.mxu0 0.0
    %1992 = vmatpush1.msra.mxu0 0.0
    %1993 = vmatprep.subr.mxu0 0.0
    %1994 = vmatpush1.msra.mxu0 0.0
    %1995 = vmatprep.subr.mxu0 0.0
    %1996 = vmatpush1.msra.mxu0 0.0
    %1997 = vmatprep.subr.mxu0 0.0
    %1998 = vmatpush1.msra.mxu0 0.0
    %1999 = vmatprep.subr.mxu0 0.0
    %2000 = vmatpush1.msra.mxu0 0.0
    %2001 = vmatprep.subr.mxu0 0.0
    %2002 = vmatpush1.msra.mxu0 0.0
    %2003 = vmatprep.subr.mxu0 0.0
    %2004 = vmatpush1.msra.mxu0 0.0
    %2005 = vmatprep.subr.mxu0 0.0
    %2006 = vmatpush1.msra.mxu0 0.0
    %2007 = vmatprep.subr.mxu0 0.0
    %2008 = vmatpush1.msra.mxu0 0.0
    %2009 = vmatprep.subr.mxu0 0.0
    %2010 = vmatpush1.msra.mxu0 0.0
    %2011 = vmatprep.subr.mxu0 0.0
    %2012 = vmatpush1.msra.mxu0 0.0
    %2013 = vmatprep.subr.mxu0 0.0
    %2014 = vmatpush1.msra.mxu0 0.0
    %2015 = vmatprep.subr.mxu0 0.0
    %2016 = vmatpush1.msra.mxu0 0.0
    %2017 = vmatprep.subr.mxu0 0.0
    %2018 = vmatpush1.msra.mxu0 0.0
    %2019 = vmatprep.subr.mxu0 0.0
    %2020 = vmatpush1.msra.mxu0 0.0
    %2021 = vmatprep.subr.mxu0 0.0
    %2022 = vmatpush1.msra.mxu0 0.0
    %2023 = vmatprep.subr.mxu0 0.0
    %2024 = vmatpush1.msra.mxu0 0.0
    %2025 = vmatprep.subr.mxu0 0.0
    %2026 = vmatpush1.msra.mxu0 0.0
    %2027 = vmatprep.subr.mxu0 0.0
    %2028 = vmatpush1.msra.mxu0 0.0
    %2029 = vmatprep.subr.mxu0 0.0
    %2030 = vmatpush1.msra.mxu0 0.0
    %2031 = vmatprep.subr.mxu0 0.0
    %2032 = vmatpush1.msra.mxu0 0.0
    %2033 = vmatprep.mubr.f32.mxu0 0.0
    %2034 = vmatmul.mubr.f32.gmra.mrb[0].mxu0 %v1967
    %v2035 = vpop.f32.mrb[0].mxu0
    %v2036 = vadd.f32 0.0, %v2035
    %v2037 = vpop.f32.mrb[0].mxu0
    %2038 = vdwg.mxu0
    %v2039 = vadd.f32 %v1966, %v2036
    %v2040 = vxor.u32 %v1964, 2147483648
    %v2041 = vmul.f32 %v2040, 1.442695
    %v2042 = vpow.pop %v2041
    %v2043 = vadd.f32 %v2042, 1.0
    %v2044 = vrcp.pop %v2043
    %v2045 = vmul.f32 1.0, %v2044
    %v2046 = vxor.u32 %v2039, 2147483648
    %v2047 = vmul.f32 %v2046, 1.442695
    %v2048 = vpow.pop %v2047
    %v2049 = vadd.f32 %v2048, 1.0
    %v2050 = vrcp.pop %v2049
    %v2051 = vmul.f32 1.0, %v2050
    %v2052 = vtanh.pop %v1964
    %v2053 = vtanh.pop %v2039
    %v2054 = vmul.f32 %v2045, %v1854
    %2056 = vrot.lane.b32.xlu0 %v2052, 64
    %v2057 = vpop.permute.xlu0 %2056
    %v2059 = vmul.f32 %v2045, %v2057
    %2061 = vrot.lane.b32.xlu0 %v2059, 32
    %v2062 = vpop.permute.xlu0 %2061
    %v2064 = vadd.f32 %v2054, %v2062
    %v2065 = vmul.f32 %v2051, %v1865
    %2067 = vrot.lane.b32.xlu0 %v2053, 64
    %v2068 = vpop.permute.xlu0 %2067
    %v2070 = vmul.f32 %v2051, %v2068
    %2072 = vrot.lane.b32.xlu0 %v2070, 32
    %v2073 = vpop.permute.xlu0 %2072
    %v2075 = vadd.f32 %v2065, %v2073
    %v2076 = vtanh.pop %v2064
    %2078 = vrot.lane.b32.xlu0 %v2076, 64
    %v2079 = vpop.permute.xlu0 %2078
    %v2081 = vmul.f32 %v2045, %v2079
    %v2082 = vtanh.pop %v2075
    %2084 = vrot.lane.b32.xlu0 %v2082, 64
    %v2085 = vpop.permute.xlu0 %2084
    %v2087 = vmul.f32 %v2051, %v2085
    %2089 = vrot.lane.b32.xlu0 %v2081, 32
    %v2090 = vpop.permute.xlu0 %2089
    %s2092 = scalar_lea.vmem [#allocation4], 48
    %2093 = vst.msk [vmem:[%s2092] sm:$0xff] %vm634, %v2090
    %2095 = vrot.lane.b32.xlu0 %v2087, 32
    %v2096 = vpop.permute.xlu0 %2095
    %s2098 = scalar_lea.vmem [#allocation5], 8
    %2099 = vst.msk [vmem:[%s2098] sm:$0xff] %vm634, %v2096
    %s2100 = scalar_lea.vmem [#allocation2], 56
    %v2101 = vld [vmem:[%s2100] sm:$0xff]
    %v2102 = vsel %vm634, %v2090, 0
    %2104 = vmatprep.subr.mxu0 0.0
    %2105 = vmatpush1.msra.mxu0 %v625
    %2106 = vmatprep.subr.mxu0 0.0
    %2107 = vmatpush1.msra.mxu0 %v626
    %2108 = vmatprep.subr.mxu0 0.0
    %2109 = vmatpush1.msra.mxu0 %v627
    %2110 = vmatprep.subr.mxu0 0.0
    %2111 = vmatpush1.msra.mxu0 %v628
    %2112 = vmatprep.subr.mxu0 0.0
    %2113 = vmatpush1.msra.mxu0 0.0
    %2114 = vmatprep.subr.mxu0 0.0
    %2115 = vmatpush1.msra.mxu0 0.0
    %2116 = vmatprep.subr.mxu0 0.0
    %2117 = vmatpush1.msra.mxu0 0.0
    %2118 = vmatprep.subr.mxu0 0.0
    %2119 = vmatpush1.msra.mxu0 0.0
    %2120 = vmatprep.subr.mxu0 0.0
    %2121 = vmatpush1.msra.mxu0 0.0
    %2122 = vmatprep.subr.mxu0 0.0
    %2123 = vmatpush1.msra.mxu0 0.0
    %2124 = vmatprep.subr.mxu0 0.0
    %2125 = vmatpush1.msra.mxu0 0.0
    %2126 = vmatprep.subr.mxu0 0.0
    %2127 = vmatpush1.msra.mxu0 0.0
    %2128 = vmatprep.subr.mxu0 0.0
    %2129 = vmatpush1.msra.mxu0 0.0
    %2130 = vmatprep.subr.mxu0 0.0
    %2131 = vmatpush1.msra.mxu0 0.0
    %2132 = vmatprep.subr.mxu0 0.0
    %2133 = vmatpush1.msra.mxu0 0.0
    %2134 = vmatprep.subr.mxu0 0.0
    %2135 = vmatpush1.msra.mxu0 0.0
    %2136 = vmatprep.subr.mxu0 0.0
    %2137 = vmatpush1.msra.mxu0 0.0
    %2138 = vmatprep.subr.mxu0 0.0
    %2139 = vmatpush1.msra.mxu0 0.0
    %2140 = vmatprep.subr.mxu0 0.0
    %2141 = vmatpush1.msra.mxu0 0.0
    %2142 = vmatprep.subr.mxu0 0.0
    %2143 = vmatpush1.msra.mxu0 0.0
    %2144 = vmatprep.subr.mxu0 0.0
    %2145 = vmatpush1.msra.mxu0 0.0
    %2146 = vmatprep.subr.mxu0 0.0
    %2147 = vmatpush1.msra.mxu0 0.0
    %2148 = vmatprep.subr.mxu0 0.0
    %2149 = vmatpush1.msra.mxu0 0.0
    %2150 = vmatprep.subr.mxu0 0.0
    %2151 = vmatpush1.msra.mxu0 0.0
    %2152 = vmatprep.subr.mxu0 0.0
    %2153 = vmatpush1.msra.mxu0 0.0
    %2154 = vmatprep.subr.mxu0 0.0
    %2155 = vmatpush1.msra.mxu0 0.0
    %2156 = vmatprep.subr.mxu0 0.0
    %2157 = vmatpush1.msra.mxu0 0.0
    %2158 = vmatprep.subr.mxu0 0.0
    %2159 = vmatpush1.msra.mxu0 0.0
    %2160 = vmatprep.subr.mxu0 0.0
    %2161 = vmatpush1.msra.mxu0 0.0
    %2162 = vmatprep.subr.mxu0 0.0
    %2163 = vmatpush1.msra.mxu0 0.0
    %2164 = vmatprep.subr.mxu0 0.0
    %2165 = vmatpush1.msra.mxu0 0.0
    %2166 = vmatprep.subr.mxu0 0.0
    %2167 = vmatpush1.msra.mxu0 0.0
    %2168 = vmatprep.mubr.f32.mxu0 0.0
    %2169 = vmatmul.mubr.f32.gmra.mrb[0].mxu0 %v2102
    %v2170 = vpop.f32.mrb[0].mxu0
    %v2171 = vadd.f32 0.0, %v2170
    %v2172 = vpop.f32.mrb[0].mxu0
    %2173 = vdwg.mxu0
    %v2174 = vadd.f32 %v2101, %v2171
    %v2175 = vld [vmem:[#allocation3] sm:$0xff]
    %v2176 = vsel %vm634, %v2096, 0
    %2178 = vmatprep.subr.mxu0 0.0
    %2179 = vmatpush1.msra.mxu0 %v629
    %2180 = vmatprep.subr.mxu0 0.0
    %2181 = vmatpush1.msra.mxu0 %v630
    %2182 = vmatprep.subr.mxu0 0.0
    %2183 = vmatpush1.msra.mxu0 %v631
    %2184 = vmatprep.subr.mxu0 0.0
    %2185 = vmatpush1.msra.mxu0 %v632
    %2186 = vmatprep.subr.mxu0 0.0
    %2187 = vmatpush1.msra.mxu0 0.0
    %2188 = vmatprep.subr.mxu0 0.0
    %2189 = vmatpush1.msra.mxu0 0.0
    %2190 = vmatprep.subr.mxu0 0.0
    %2191 = vmatpush1.msra.mxu0 0.0
    %2192 = vmatprep.subr.mxu0 0.0
    %2193 = vmatpush1.msra.mxu0 0.0
    %2194 = vmatprep.subr.mxu0 0.0
    %2195 = vmatpush1.msra.mxu0 0.0
    %2196 = vmatprep.subr.mxu0 0.0
    %2197 = vmatpush1.msra.mxu0 0.0
    %2198 = vmatprep.subr.mxu0 0.0
    %2199 = vmatpush1.msra.mxu0 0.0
    %2200 = vmatprep.subr.mxu0 0.0
    %2201 = vmatpush1.msra.mxu0 0.0
    %2202 = vmatprep.subr.mxu0 0.0
    %2203 = vmatpush1.msra.mxu0 0.0
    %2204 = vmatprep.subr.mxu0 0.0
    %2205 = vmatpush1.msra.mxu0 0.0
    %2206 = vmatprep.subr.mxu0 0.0
    %2207 = vmatpush1.msra.mxu0 0.0
    %2208 = vmatprep.subr.mxu0 0.0
    %2209 = vmatpush1.msra.mxu0 0.0
    %2210 = vmatprep.subr.mxu0 0.0
    %2211 = vmatpush1.msra.mxu0 0.0
    %2212 = vmatprep.subr.mxu0 0.0
    %2213 = vmatpush1.msra.mxu0 0.0
    %2214 = vmatprep.subr.mxu0 0.0
    %2215 = vmatpush1.msra.mxu0 0.0
    %2216 = vmatprep.subr.mxu0 0.0
    %2217 = vmatpush1.msra.mxu0 0.0
    %2218 = vmatprep.subr.mxu0 0.0
    %2219 = vmatpush1.msra.mxu0 0.0
    %2220 = vmatprep.subr.mxu0 0.0
    %2221 = vmatpush1.msra.mxu0 0.0
    %2222 = vmatprep.subr.mxu0 0.0
    %2223 = vmatpush1.msra.mxu0 0.0
    %2224 = vmatprep.subr.mxu0 0.0
    %2225 = vmatpush1.msra.mxu0 0.0
    %2226 = vmatprep.subr.mxu0 0.0
    %2227 = vmatpush1.msra.mxu0 0.0
    %2228 = vmatprep.subr.mxu0 0.0
    %2229 = vmatpush1.msra.mxu0 0.0
    %2230 = vmatprep.subr.mxu0 0.0
    %2231 = vmatpush1.msra.mxu0 0.0
    %2232 = vmatprep.subr.mxu0 0.0
    %2233 = vmatpush1.msra.mxu0 0.0
    %2234 = vmatprep.subr.mxu0 0.0
    %2235 = vmatpush1.msra.mxu0 0.0
    %2236 = vmatprep.subr.mxu0 0.0
    %2237 = vmatpush1.msra.mxu0 0.0
    %2238 = vmatprep.subr.mxu0 0.0
    %2239 = vmatpush1.msra.mxu0 0.0
    %2240 = vmatprep.subr.mxu0 0.0
    %2241 = vmatpush1.msra.mxu0 0.0
    %2242 = vmatprep.mubr.f32.mxu0 0.0
    %2243 = vmatmul.mubr.f32.gmra.mrb[0].mxu0 %v2176
    %v2244 = vpop.f32.mrb[0].mxu0
    %v2245 = vadd.f32 0.0, %v2244
    %v2246 = vpop.f32.mrb[0].mxu0
    %2247 = vdwg.mxu0
    %v2248 = vadd.f32 %v2175, %v2245
    %v2249 = vxor.u32 %v2174, 2147483648
    %v2250 = vmul.f32 %v2249, 1.442695
    %v2251 = vpow.pop %v2250
    %v2252 = vadd.f32 %v2251, 1.0
    %v2253 = vrcp.pop %v2252
    %v2254 = vmul.f32 1.0, %v2253
    %v2255 = vxor.u32 %v2248, 2147483648
    %v2256 = vmul.f32 %v2255, 1.442695
    %v2257 = vpow.pop %v2256
    %v2258 = vadd.f32 %v2257, 1.0
    %v2259 = vrcp.pop %v2258
    %v2260 = vmul.f32 1.0, %v2259
    %v2261 = vtanh.pop %v2174
    %v2262 = vtanh.pop %v2248
    %v2263 = vmul.f32 %v2254, %v2064
    %2265 = vrot.lane.b32.xlu0 %v2261, 64
    %v2266 = vpop.permute.xlu0 %2265
    %v2268 = vmul.f32 %v2254, %v2266
    %2270 = vrot.lane.b32.xlu0 %v2268, 32
    %v2271 = vpop.permute.xlu0 %2270
    %v2273 = vadd.f32 %v2263, %v2271
    %v2274 = vmul.f32 %v2260, %v2075
    %2276 = vrot.lane.b32.xlu0 %v2262, 64
    %v2277 = vpop.permute.xlu0 %2276
    %v2279 = vmul.f32 %v2260, %v2277
    %2281 = vrot.lane.b32.xlu0 %v2279, 32
    %v2282 = vpop.permute.xlu0 %2281
    %v2284 = vadd.f32 %v2274, %v2282
    %v2285 = vtanh.pop %v2273
    %2287 = vrot.lane.b32.xlu0 %v2285, 64
    %v2288 = vpop.permute.xlu0 %2287
    %v2290 = vmul.f32 %v2254, %v2288
    %v2291 = vtanh.pop %v2284
    %2293 = vrot.lane.b32.xlu0 %v2291, 64
    %v2294 = vpop.permute.xlu0 %2293
    %v2296 = vmul.f32 %v2260, %v2294
    %2298 = vrot.lane.b32.xlu0 %v2290, 32
    %v2299 = vpop.permute.xlu0 %2298
    %s2301 = scalar_lea.vmem [#allocation4], 56
    %2302 = vst.msk [vmem:[%s2301] sm:$0xff] %vm634, %v2299
    %2304 = vrot.lane.b32.xlu0 %v2296, 32
    %v2305 = vpop.permute.xlu0 %2304
    %2307 = vst.msk [vmem:[#allocation5] sm:$0xff] %vm634, %v2305
    %v2308 = vld [vmem:[#allocation4] sm:$0xff]
    %v2309 = vld [vmem:[#allocation4 + $0x8] sm:$0xff]
    %v2310 = vld [vmem:[#allocation4 + $0x10] sm:$0xff]
    %v2311 = vld [vmem:[#allocation4 + $0x18] sm:$0xff]
    %v2312 = vld [vmem:[#allocation4 + $0x20] sm:$0xff]
    %v2313 = vld [vmem:[#allocation4 + $0x28] sm:$0xff]
    %v2314 = vld [vmem:[#allocation4 + $0x30] sm:$0xff]
    %v2315 = vld [vmem:[#allocation4 + $0x38] sm:$0xff]
    %v2316 = vld [vmem:[#allocation5] sm:$0xff]
    %v2317 = vld [vmem:[#allocation5 + $0x8] sm:$0xff]
    %v2318 = vld [vmem:[#allocation5 + $0x10] sm:$0xff]
    %v2319 = vld [vmem:[#allocation5 + $0x18] sm:$0xff]
    %v2320 = vld [vmem:[#allocation5 + $0x20] sm:$0xff]
    %v2321 = vld [vmem:[#allocation5 + $0x28] sm:$0xff]
    %v2322 = vld [vmem:[#allocation5 + $0x30] sm:$0xff]
    %v2323 = vld [vmem:[#allocation5 + $0x38] sm:$0xff]
    %v2324 = vld [vmem:[%s7] sm:$0xff]
    %v2325 = vld [vmem:[%s7 + $0x8] sm:$0xff]
    %v2326 = vld [vmem:[%s7 + $0x10] sm:$0xff]
    %v2327 = vld [vmem:[%s7 + $0x18] sm:$0xff]
    %v2328 = vld [vmem:[%s7 + $0x20] sm:$0xff]
    %v2329 = vld [vmem:[%s7 + $0x28] sm:$0xff]
    %v2330 = vld [vmem:[%s7 + $0x30] sm:$0xff]
    %v2331 = vld [vmem:[%s7 + $0x38] sm:$0xff]
    %v2333 = vsel %vm634, %v2316, 0
    %v2336 = vsel %vm634, %v2317, 0
    %v2339 = vsel %vm634, %v2318, 0
    %v2342 = vsel %vm634, %v2319, 0
    %v2345 = vsel %vm634, %v2320, 0
    %v2348 = vsel %vm634, %v2321, 0
    %v2351 = vsel %vm634, %v2322, 0
    %v2354 = vsel %vm634, %v2323, 0
    %2356 = vmatprep.subr.mxu0 0.0
    %2357 = vmatpush1.msra.mxu0 %v2328
    %2358 = vmatprep.subr.mxu0 0.0
    %2359 = vmatpush1.msra.mxu0 %v2329
    %2360 = vmatprep.subr.mxu0 0.0
    %2361 = vmatpush1.msra.mxu0 %v2330
    %2362 = vmatprep.subr.mxu0 0.0
    %2363 = vmatpush1.msra.mxu0 %v2331
    %2364 = vmatprep.subr.mxu0 0.0
    %2365 = vmatpush1.msra.mxu0 0.0
    %2366 = vmatprep.subr.mxu0 0.0
    %2367 = vmatpush1.msra.mxu0 0.0
    %2368 = vmatprep.subr.mxu0 0.0
    %2369 = vmatpush1.msra.mxu0 0.0
    %2370 = vmatprep.subr.mxu0 0.0
    %2371 = vmatpush1.msra.mxu0 0.0
    %2372 = vmatprep.subr.mxu0 0.0
    %2373 = vmatpush1.msra.mxu0 0.0
    %2374 = vmatprep.subr.mxu0 0.0
    %2375 = vmatpush1.msra.mxu0 0.0
    %2376 = vmatprep.subr.mxu0 0.0
    %2377 = vmatpush1.msra.mxu0 0.0
    %2378 = vmatprep.subr.mxu0 0.0
    %2379 = vmatpush1.msra.mxu0 0.0
    %2380 = vmatprep.subr.mxu0 0.0
    %2381 = vmatpush1.msra.mxu0 0.0
    %2382 = vmatprep.subr.mxu0 0.0
    %2383 = vmatpush1.msra.mxu0 0.0
    %2384 = vmatprep.subr.mxu0 0.0
    %2385 = vmatpush1.msra.mxu0 0.0
    %2386 = vmatprep.subr.mxu0 0.0
    %2387 = vmatpush1.msra.mxu0 0.0
    %2388 = vmatprep.subr.mxu0 0.0
    %2389 = vmatpush1.msra.mxu0 0.0
    %2390 = vmatprep.subr.mxu0 0.0
    %2391 = vmatpush1.msra.mxu0 0.0
    %2392 = vmatprep.subr.mxu0 0.0
    %2393 = vmatpush1.msra.mxu0 0.0
    %2394 = vmatprep.subr.mxu0 0.0
    %2395 = vmatpush1.msra.mxu0 0.0
    %2396 = vmatprep.subr.mxu0 0.0
    %2397 = vmatpush1.msra.mxu0 0.0
    %2398 = vmatprep.subr.mxu0 0.0
    %2399 = vmatpush1.msra.mxu0 0.0
    %2400 = vmatprep.subr.mxu0 0.0
    %2401 = vmatpush1.msra.mxu0 0.0
    %2402 = vmatprep.subr.mxu0 0.0
    %2403 = vmatpush1.msra.mxu0 0.0
    %2404 = vmatprep.subr.mxu0 0.0
    %2405 = vmatpush1.msra.mxu0 0.0
    %2406 = vmatprep.subr.mxu0 0.0
    %2407 = vmatpush1.msra.mxu0 0.0
    %2408 = vmatprep.subr.mxu0 0.0
    %2409 = vmatpush1.msra.mxu0 0.0
    %2410 = vmatprep.subr.mxu0 0.0
    %2411 = vmatpush1.msra.mxu0 0.0
    %2412 = vmatprep.subr.mxu0 0.0
    %2413 = vmatpush1.msra.mxu0 0.0
    %2414 = vmatprep.subr.mxu0 0.0
    %2415 = vmatpush1.msra.mxu0 0.0
    %2416 = vmatprep.subr.mxu0 0.0
    %2417 = vmatpush1.msra.mxu0 0.0
    %2418 = vmatprep.subr.mxu0 0.0
    %2419 = vmatpush1.msra.mxu0 0.0
    %2420 = vmatprep.mubr.f32.mxu0 0.0
    %2421 = vmatmul.mubr.f32.gmra.mrb[0].mxu0 %v2333
    %v2422 = vpop.f32.mrb[0].mxu0
    %v2423 = vadd.f32 0.0, %v2422
    %v2424 = vpop.f32.mrb[0].mxu0
    %2425 = vmatprep.mubr.f32.mxu0 0.0
    %2426 = vmatmul.mubr.f32.gmra.mrb[0].mxu0 %v2336
    %v2427 = vpop.f32.mrb[0].mxu0
    %v2428 = vadd.f32 0.0, %v2427
    %v2429 = vpop.f32.mrb[0].mxu0
    %2430 = vmatprep.mubr.f32.mxu0 0.0
    %2431 = vmatmul.mubr.f32.gmra.mrb[0].mxu0 %v2339
    %v2432 = vpop.f32.mrb[0].mxu0
    %v2433 = vadd.f32 0.0, %v2432
    %v2434 = vpop.f32.mrb[0].mxu0
    %2435 = vmatprep.mubr.f32.mxu0 0.0
    %2436 = vmatmul.mubr.f32.gmra.mrb[0].mxu0 %v2342
    %v2437 = vpop.f32.mrb[0].mxu0
    %v2438 = vadd.f32 0.0, %v2437
    %v2439 = vpop.f32.mrb[0].mxu0
    %2440 = vmatprep.mubr.f32.mxu0 0.0
    %2441 = vmatmul.mubr.f32.gmra.mrb[0].mxu0 %v2345
    %v2442 = vpop.f32.mrb[0].mxu0
    %v2443 = vadd.f32 0.0, %v2442
    %v2444 = vpop.f32.mrb[0].mxu0
    %2445 = vmatprep.mubr.f32.mxu0 0.0
    %2446 = vmatmul.mubr.f32.gmra.mrb[0].mxu0 %v2348
    %v2447 = vpop.f32.mrb[0].mxu0
    %v2448 = vadd.f32 0.0, %v2447
    %v2449 = vpop.f32.mrb[0].mxu0
    %2450 = vmatprep.mubr.f32.mxu0 0.0
    %2451 = vmatmul.mubr.f32.gmra.mrb[0].mxu0 %v2351
    %v2452 = vpop.f32.mrb[0].mxu0
    %v2453 = vadd.f32 0.0, %v2452
    %v2454 = vpop.f32.mrb[0].mxu0
    %2455 = vmatprep.mubr.f32.mxu0 0.0
    %2456 = vmatmul.mubr.f32.gmra.mrb[0].mxu0 %v2354
    %v2457 = vpop.f32.mrb[0].mxu0
    %v2458 = vadd.f32 0.0, %v2457
    %v2459 = vpop.f32.mrb[0].mxu0
    %2460 = vdwg.mxu0
    %v2462 = vsel %vm634, %v2308, 0
    %v2465 = vsel %vm634, %v2309, 0
    %v2468 = vsel %vm634, %v2310, 0
    %v2471 = vsel %vm634, %v2311, 0
    %v2474 = vsel %vm634, %v2312, 0
    %v2477 = vsel %vm634, %v2313, 0
    %v2480 = vsel %vm634, %v2314, 0
    %v2483 = vsel %vm634, %v2315, 0
    %2485 = vmatprep.subr.mxu0 0.0
    %2486 = vmatpush1.msra.mxu0 %v2324
    %2487 = vmatprep.subr.mxu0 0.0
    %2488 = vmatpush1.msra.mxu0 %v2325
    %2489 = vmatprep.subr.mxu0 0.0
    %2490 = vmatpush1.msra.mxu0 %v2326
    %2491 = vmatprep.subr.mxu0 0.0
    %2492 = vmatpush1.msra.mxu0 %v2327
    %2493 = vmatprep.subr.mxu0 0.0
    %2494 = vmatpush1.msra.mxu0 0.0
    %2495 = vmatprep.subr.mxu0 0.0
    %2496 = vmatpush1.msra.mxu0 0.0
    %2497 = vmatprep.subr.mxu0 0.0
    %2498 = vmatpush1.msra.mxu0 0.0
    %2499 = vmatprep.subr.mxu0 0.0
    %2500 = vmatpush1.msra.mxu0 0.0
    %2501 = vmatprep.subr.mxu0 0.0
    %2502 = vmatpush1.msra.mxu0 0.0
    %2503 = vmatprep.subr.mxu0 0.0
    %2504 = vmatpush1.msra.mxu0 0.0
    %2505 = vmatprep.subr.mxu0 0.0
    %2506 = vmatpush1.msra.mxu0 0.0
    %2507 = vmatprep.subr.mxu0 0.0
    %2508 = vmatpush1.msra.mxu0 0.0
    %2509 = vmatprep.subr.mxu0 0.0
    %2510 = vmatpush1.msra.mxu0 0.0
    %2511 = vmatprep.subr.mxu0 0.0
    %2512 = vmatpush1.msra.mxu0 0.0
    %2513 = vmatprep.subr.mxu0 0.0
    %2514 = vmatpush1.msra.mxu0 0.0
    %2515 = vmatprep.subr.mxu0 0.0
    %2516 = vmatpush1.msra.mxu0 0.0
    %2517 = vmatprep.subr.mxu0 0.0
    %2518 = vmatpush1.msra.mxu0 0.0
    %2519 = vmatprep.subr.mxu0 0.0
    %2520 = vmatpush1.msra.mxu0 0.0
    %2521 = vmatprep.subr.mxu0 0.0
    %2522 = vmatpush1.msra.mxu0 0.0
    %2523 = vmatprep.subr.mxu0 0.0
    %2524 = vmatpush1.msra.mxu0 0.0
    %2525 = vmatprep.subr.mxu0 0.0
    %2526 = vmatpush1.msra.mxu0 0.0
    %2527 = vmatprep.subr.mxu0 0.0
    %2528 = vmatpush1.msra.mxu0 0.0
    %2529 = vmatprep.subr.mxu0 0.0
    %2530 = vmatpush1.msra.mxu0 0.0
    %2531 = vmatprep.subr.mxu0 0.0
    %2532 = vmatpush1.msra.mxu0 0.0
    %2533 = vmatprep.subr.mxu0 0.0
    %2534 = vmatpush1.msra.mxu0 0.0
    %2535 = vmatprep.subr.mxu0 0.0
    %2536 = vmatpush1.msra.mxu0 0.0
    %2537 = vmatprep.subr.mxu0 0.0
    %2538 = vmatpush1.msra.mxu0 0.0
    %2539 = vmatprep.subr.mxu0 0.0
    %2540 = vmatpush1.msra.mxu0 0.0
    %2541 = vmatprep.subr.mxu0 0.0
    %2542 = vmatpush1.msra.mxu0 0.0
    %2543 = vmatprep.subr.mxu0 0.0
    %2544 = vmatpush1.msra.mxu0 0.0
    %2545 = vmatprep.subr.mxu0 0.0
    %2546 = vmatpush1.msra.mxu0 0.0
    %2547 = vmatprep.subr.mxu0 0.0
    %2548 = vmatpush1.msra.mxu0 0.0
    %2549 = vmatprep.mubr.f32.mxu0 0.0
    %2550 = vmatmul.mubr.f32.gmra.mrb[0].mxu0 %v2462
    %v2551 = vpop.f32.mrb[0].mxu0
    %v2552 = vadd.f32 %v2423, %v2551
    %v2553 = vpop.f32.mrb[0].mxu0
    %2554 = vmatprep.mubr.f32.mxu0 0.0
    %2555 = vmatmul.mubr.f32.gmra.mrb[0].mxu0 %v2465
    %v2556 = vpop.f32.mrb[0].mxu0
    %v2557 = vadd.f32 %v2428, %v2556
    %v2558 = vpop.f32.mrb[0].mxu0
    %2559 = vmatprep.mubr.f32.mxu0 0.0
    %2560 = vmatmul.mubr.f32.gmra.mrb[0].mxu0 %v2468
    %v2561 = vpop.f32.mrb[0].mxu0
    %v2562 = vadd.f32 %v2433, %v2561
    %v2563 = vpop.f32.mrb[0].mxu0
    %2564 = vmatprep.mubr.f32.mxu0 0.0
    %2565 = vmatmul.mubr.f32.gmra.mrb[0].mxu0 %v2471
    %v2566 = vpop.f32.mrb[0].mxu0
    %v2567 = vadd.f32 %v2438, %v2566
    %v2568 = vpop.f32.mrb[0].mxu0
    %2569 = vmatprep.mubr.f32.mxu0 0.0
    %2570 = vmatmul.mubr.f32.gmra.mrb[0].mxu0 %v2474
    %v2571 = vpop.f32.mrb[0].mxu0
    %v2572 = vadd.f32 %v2443, %v2571
    %v2573 = vpop.f32.mrb[0].mxu0
    %2574 = vmatprep.mubr.f32.mxu0 0.0
    %2575 = vmatmul.mubr.f32.gmra.mrb[0].mxu0 %v2477
    %v2576 = vpop.f32.mrb[0].mxu0
    %v2577 = vadd.f32 %v2448, %v2576
    %v2578 = vpop.f32.mrb[0].mxu0
    %2579 = vmatprep.mubr.f32.mxu0 0.0
    %2580 = vmatmul.mubr.f32.gmra.mrb[0].mxu0 %v2480
    %v2581 = vpop.f32.mrb[0].mxu0
    %v2582 = vadd.f32 %v2453, %v2581
    %v2583 = vpop.f32.mrb[0].mxu0
    %2584 = vmatprep.mubr.f32.mxu0 0.0
    %2585 = vmatmul.mubr.f32.gmra.mrb[0].mxu0 %v2483
    %v2586 = vpop.f32.mrb[0].mxu0
    %v2587 = vadd.f32 %v2458, %v2586
    %v2588 = vpop.f32.mrb[0].mxu0
    %2589 = vdwg.mxu0
    %v2590 = vld [vmem:[#allocation6] sm:$0x1]
    %v2592 = vlaneseq
    %v2593 = vshrl.u32 %v2592, 7
    %v2594 = vsub.s32 0, %v2593
    %v2595 = vrot.slane %v2590, %v2594
    %v2597 = vadd.f32 %v2552, %v2595
    %v2598 = vadd.f32 %v2557, %v2595
    %v2599 = vadd.f32 %v2562, %v2595
    %v2600 = vadd.f32 %v2567, %v2595
    %v2601 = vadd.f32 %v2572, %v2595
    %v2602 = vadd.f32 %v2577, %v2595
    %v2603 = vadd.f32 %v2582, %v2595
    %v2604 = vadd.f32 %v2587, %v2595
    %vm2605 = vcmask 7168
    %v2606 = vsel %vm2605, %v2597, -inf
    %v2607 = vsel %vm2605, %v2598, -inf
    %v2608 = vsel %vm2605, %v2599, -inf
    %v2609 = vsel %vm2605, %v2600, -inf
    %v2610 = vsel %vm2605, %v2601, -inf
    %v2611 = vmax.f32 %v2606, %v2610
    %v2612 = vsel %vm2605, %v2602, -inf
    %v2613 = vmax.f32 %v2607, %v2612
    %v2614 = vsel %vm2605, %v2603, -inf
    %v2615 = vmax.f32 %v2608, %v2614
    %v2616 = vsel %vm2605, %v2604, -inf
    %v2617 = vmax.f32 %v2609, %v2616
    %v2618 = vmax.f32 %v2611, %v2613
    %v2619 = vmax.f32 %v2615, %v2617
    %v2620 = vmax.f32 %v2618, %v2619
    %v2621 = vsub.f32 %v2597, %v2620
    %v2622 = vsub.f32 %v2598, %v2620
    %v2623 = vsub.f32 %v2599, %v2620
    %v2624 = vsub.f32 %v2600, %v2620
    %v2625 = vsub.f32 %v2601, %v2620
    %v2626 = vsub.f32 %v2602, %v2620
    %v2627 = vsub.f32 %v2603, %v2620
    %v2628 = vsub.f32 %v2604, %v2620
    %v2629 = vmul.f32 %v2621, 1.442695
    %v2630 = vpow.pop %v2629
    %v2631 = vmul.f32 %v2622, 1.442695
    %v2632 = vpow.pop %v2631
    %v2633 = vmul.f32 %v2623, 1.442695
    %v2634 = vpow.pop %v2633
    %v2635 = vmul.f32 %v2624, 1.442695
    %v2636 = vpow.pop %v2635
    %v2637 = vmul.f32 %v2625, 1.442695
    %v2638 = vpow.pop %v2637
    %v2639 = vmul.f32 %v2626, 1.442695
    %v2640 = vpow.pop %v2639
    %v2641 = vmul.f32 %v2627, 1.442695
    %v2642 = vpow.pop %v2641
    %v2643 = vmul.f32 %v2628, 1.442695
    %v2644 = vpow.pop %v2643
    %v2645 = vsel %vm2605, %v2630, 0.0
    %v2646 = vsel %vm2605, %v2632, 0.0
    %v2647 = vadd.f32 %v2645, %v2646
    %v2648 = vsel %vm2605, %v2634, 0.0
    %v2649 = vadd.f32 %v2647, %v2648
    %v2650 = vsel %vm2605, %v2636, 0.0
    %v2651 = vadd.f32 %v2649, %v2650
    %v2652 = vsel %vm2605, %v2638, 0.0
    %v2653 = vadd.f32 %v2651, %v2652
    %v2654 = vsel %vm2605, %v2640, 0.0
    %v2655 = vadd.f32 %v2653, %v2654
    %v2656 = vsel %vm2605, %v2642, 0.0
    %v2657 = vadd.f32 %v2655, %v2656
    %v2658 = vsel %vm2605, %v2644, 0.0
    %v2659 = vadd.f32 %v2657, %v2658
    %v2660 = vrcp.pop %v2659
    %v2661 = vmul.f32 %v2630, %v2660
    %v2662 = vmul.f32 %v2632, %v2660
    %v2663 = vmul.f32 %v2634, %v2660
    %v2664 = vmul.f32 %v2636, %v2660
    %v2665 = vmul.f32 %v2638, %v2660
    %v2666 = vmul.f32 %v2640, %v2660
    %v2667 = vmul.f32 %v2642, %v2660
    %v2668 = vmul.f32 %v2644, %v2660
    %2670 = vset.pattern.permute.xlu0 0
    %2671 = vperm.xlu0 %2670, %v2661
    %v2672 = vpop.permute.xlu0 %2671
    %2675 = vset.pattern.permute.xlu0 0
    %2676 = vperm.xlu0 %2675, %v2662
    %v2677 = vpop.permute.xlu0 %2676
    %2680 = vset.pattern.permute.xlu0 0
    %2681 = vperm.xlu0 %2680, %v2663
    %v2682 = vpop.permute.xlu0 %2681
    %2685 = vset.pattern.permute.xlu0 0
    %2686 = vperm.xlu0 %2685, %v2664
    %v2687 = vpop.permute.xlu0 %2686
    %2690 = vset.pattern.permute.xlu0 0
    %2691 = vperm.xlu0 %2690, %v2665
    %v2692 = vpop.permute.xlu0 %2691
    %2695 = vset.pattern.permute.xlu0 0
    %2696 = vperm.xlu0 %2695, %v2666
    %v2697 = vpop.permute.xlu0 %2696
    %2700 = vset.pattern.permute.xlu0 0
    %2701 = vperm.xlu0 %2700, %v2667
    %v2702 = vpop.permute.xlu0 %2701
    %2705 = vset.pattern.permute.xlu0 0
    %2706 = vperm.xlu0 %2705, %v2668
    %v2707 = vpop.permute.xlu0 %2706
    %v2709 = vmul.f32 %v2308, %v2672
    %v2710 = vmul.f32 %v2309, %v2677
    %v2711 = vmul.f32 %v2310, %v2682
    %v2712 = vmul.f32 %v2311, %v2687
    %v2713 = vmul.f32 %v2312, %v2692
    %v2714 = vmul.f32 %v2313, %v2697
    %v2715 = vmul.f32 %v2314, %v2702
    %v2716 = vmul.f32 %v2315, %v2707
    %v2717 = vsel %vm634, %v2709, 0.0
    %v2718 = vsel %vm634, %v2710, 0.0
    %v2719 = vadd.f32 %v2717, %v2718
    %v2720 = vsel %vm634, %v2711, 0.0
    %v2721 = vadd.f32 %v2719, %v2720
    %v2722 = vsel %vm634, %v2712, 0.0
    %v2723 = vadd.f32 %v2721, %v2722
    %v2724 = vsel %vm634, %v2713, 0.0
    %v2725 = vadd.f32 %v2723, %v2724
    %v2726 = vsel %vm634, %v2714, 0.0
    %v2727 = vadd.f32 %v2725, %v2726
    %v2728 = vsel %vm634, %v2715, 0.0
    %v2729 = vadd.f32 %v2727, %v2728
    %v2730 = vsel %vm634, %v2716, 0.0
    %v2731 = vadd.f32 %v2729, %v2730
    %2732 = vst.msk [vmem:[%s9] sm:$0xff] %vm634, %v2731
    %v2733 = vmul.f32 %v2316, %v2672
    %v2734 = vmul.f32 %v2317, %v2677
    %v2735 = vmul.f32 %v2318, %v2682
    %v2736 = vmul.f32 %v2319, %v2687
    %v2737 = vmul.f32 %v2320, %v2692
    %v2738 = vmul.f32 %v2321, %v2697
    %v2739 = vmul.f32 %v2322, %v2702
    %v2740 = vmul.f32 %v2323, %v2707
    %v2741 = vsel %vm634, %v2733, 0.0
    %v2742 = vsel %vm634, %v2734, 0.0
    %v2743 = vadd.f32 %v2741, %v2742
    %v2744 = vsel %vm634, %v2735, 0.0
    %v2745 = vadd.f32 %v2743, %v2744
    %v2746 = vsel %vm634, %v2736, 0.0
    %v2747 = vadd.f32 %v2745, %v2746
    %v2748 = vsel %vm634, %v2737, 0.0
    %v2749 = vadd.f32 %v2747, %v2748
    %v2750 = vsel %vm634, %v2738, 0.0
    %v2751 = vadd.f32 %v2749, %v2750
    %v2752 = vsel %vm634, %v2739, 0.0
    %v2753 = vadd.f32 %v2751, %v2752
    %v2754 = vsel %vm634, %v2740, 0.0
    %v2755 = vadd.f32 %v2753, %v2754
    %2757 = vrot.lane.b32.xlu0 %v2755, 32
    %v2758 = vpop.permute.xlu0 %2757
    %vm2760 = vcmask 523520
    %2761 = vst.msk [vmem:[%s9] sm:$0xff] %vm2760, %v2758
    // Predicated region
    $region42: #{model_forward.1} parent=1 // pred_check
      _
    $region43: #{model_forward.1} parent=1 // pred_check_branch
      %2763 = sbr.rel (0) target = $region45
    $region44: #{model_forward.1} parent=1 // pred_region
      _
    $region45: #{model_forward.1} parent=1 // pred_fallthru
      _
    // Predicated region
    $region46: #{model_forward.1} parent=1 // pred_check
      _
    $region47: #{model_forward.1} parent=1 // pred_check_branch
      %2765 = sbr.rel (0) target = $region49
    $region48: #{model_forward.1} parent=1 // pred_region
      _
    $region49: #{model_forward.1} parent=1 // pred_fallthru
      _
    %2766 = vsyncpa [#allocation8], 1

</llo_original>
